<compile_context>
chip_gen: v7x
topology: tpu7x:2x2x1
jax: 0.10.0
libtpu: 0.0.40
codegen_flags: <defaults>
</compile_context>

<pallas_src>
import functools
import math

import jax
import jax.numpy as jnp
from jax import lax
from jax.experimental import pallas as pl
from jax.experimental.pallas import tpu as pltpu


def _ceil_to(x, m):
    return (x + m - 1) // m * m


# ---------------------------------------------------------------------------
# Pallas kernel: conv-as-matmul, y = relu(x @ w + b)   (x cast to bf16, f32 acc)
# ---------------------------------------------------------------------------
def _matmul_bias_relu_kernel(x_ref, w_ref, b_ref, o_ref):
    x = x_ref[...].astype(jnp.bfloat16)
    acc = jnp.dot(x, w_ref[...], preferred_element_type=jnp.float32)
    acc = acc + b_ref[...]                       # (1, Np) broadcasts over rows
    o_ref[...] = jnp.maximum(acc, 0.0)


def conv_linear(patches, w, b):
    """patches: (M, K) f32; w: (Kp, Np) bf16 pre-padded; b: (1, Np) f32.

    Returns the padded (Mp, Np) f32 ReLU'd output; caller slices the valid part.
    """
    M, K = patches.shape
    Kp, Np = w.shape
    n_steps = 2 if M >= 256 else 1               # >=2 steps lets v7x use both TCs
    Mp = _ceil_to(M, 8 * n_steps)
    tm = Mp // n_steps
    if Mp != M or Kp != K:
        patches = jnp.pad(patches, ((0, Mp - M), (0, Kp - K)))
    return pl.pallas_call(
        _matmul_bias_relu_kernel,
        out_shape=jax.ShapeDtypeStruct((Mp, Np), jnp.float32),
        grid=(n_steps,),
        in_specs=[
            pl.BlockSpec((tm, Kp), lambda i: (i, 0)),   # activation rows
            pl.BlockSpec((Kp, Np), lambda i: (0, 0)),   # full weight, resident
            pl.BlockSpec((1, Np), lambda i: (0, 0)),    # bias row
        ],
        out_specs=pl.BlockSpec((tm, Np), lambda i: (i, 0)),
        compiler_params=pltpu.CompilerParams(dimension_semantics=("parallel",)),
    )(patches, w, b)


# ---------------------------------------------------------------------------
# Pallas kernel: fused FC tail
#   out = (relu(relu(x @ W_hidden + b) @ W_linear + b) @ W_heads + b)
# All weights (~2.7 MB bf16) stay resident in VMEM; intermediates never touch HBM.
# ---------------------------------------------------------------------------
def _fc_tail_kernel(x_ref, w1_ref, b1_ref, w2_ref, b2_ref, w3_ref, b3_ref, o_ref):
    x = x_ref[...].astype(jnp.bfloat16)
    h = jnp.dot(x, w1_ref[...], preferred_element_type=jnp.float32) + b1_ref[...]
    h = jnp.maximum(h, 0.0).astype(jnp.bfloat16)
    h = jnp.dot(h, w2_ref[...], preferred_element_type=jnp.float32) + b2_ref[...]
    h = jnp.maximum(h, 0.0).astype(jnp.bfloat16)
    o_ref[...] = jnp.dot(h, w3_ref[...], preferred_element_type=jnp.float32) + b3_ref[...]


def fc_tail(feats, p):
    """feats: (B, 2304) f32 (HWC flatten). Returns (Mp, 128) f32: [pi | vf | pad]."""
    B, K1 = feats.shape
    Mp = _ceil_to(B, 8)
    x = jnp.pad(feats, ((0, Mp - B), (0, 0)))
    H1 = p["hidden_w"].shape[1]     # 512
    H2 = p["linear_w"].shape[1]     # 256
    NO = p["head_w"].shape[1]       # 128
    return pl.pallas_call(
        _fc_tail_kernel,
        out_shape=jax.ShapeDtypeStruct((Mp, NO), jnp.float32),
        grid=(1,),
        in_specs=[
            pl.BlockSpec((Mp, K1), lambda i: (0, 0)),
            pl.BlockSpec((K1, H1), lambda i: (0, 0)),
            pl.BlockSpec((1, H1), lambda i: (0, 0)),
            pl.BlockSpec((H1, H2), lambda i: (0, 0)),
            pl.BlockSpec((1, H2), lambda i: (0, 0)),
            pl.BlockSpec((H2, NO), lambda i: (0, 0)),
            pl.BlockSpec((1, NO), lambda i: (0, 0)),
        ],
        out_specs=pl.BlockSpec((Mp, NO), lambda i: (0, 0)),
        compiler_params=pltpu.CompilerParams(dimension_semantics=("arbitrary",)),
    )(x, p["hidden_w"], p["hidden_b"], p["linear_w"], p["linear_b"],
      p["head_w"], p["head_b"])


# ---------------------------------------------------------------------------
# Patch extraction (single XLA op per conv; features ordered (C, KH, KW))
# ---------------------------------------------------------------------------
def extract_patches(x_nhwc, kh, kw, stride):
    p = lax.conv_general_dilated_patches(
        x_nhwc, filter_shape=(kh, kw), window_strides=(stride, stride),
        padding="VALID", dimension_numbers=("NHWC", "HWIO", "NHWC"))
    B, oh, ow, f = p.shape
    return p.reshape(B * oh * ow, f), oh, ow


# ---------------------------------------------------------------------------
# Parameter construction — deterministic; all padding / layout / bf16 done here.
# ---------------------------------------------------------------------------
def normalized_columns_init(key, out_dim, in_dim, std):
    w = jax.random.normal(key, (out_dim, in_dim), dtype=jnp.float32)
    return w * std / jnp.sqrt(jnp.sum(w * w, axis=1, keepdims=True))   # (out, in)


def init_params(key, output_dims):
    ks = jax.random.split(key, 16)
    p = {}

    def conv_params(kw_key, kb_key, oc, ic, kh, kw):
        k = ic * kh * kw
        kp = _ceil_to(k, 128)
        np_ = _ceil_to(oc, 128)
        bound = 1.0 / math.sqrt(k)
        w = jax.random.uniform(kw_key, (oc, ic, kh, kw), jnp.float32, -bound, bound)
        b = jax.random.uniform(kb_key, (oc,), jnp.float32, -bound, bound)
        # (K, OC) with rows ordered (c, kh, kw) to match conv_general_dilated_patches
        w_flat = w.reshape(oc, k).T
        w_flat = jnp.pad(w_flat, ((0, kp - k), (0, np_ - oc))).astype(jnp.bfloat16)
        b_row = jnp.pad(b, (0, np_ - oc)).reshape(1, np_)
        return w_flat, b_row

    p["conv1_w"], p["conv1_b"] = conv_params(ks[0], ks[1], 32, 4, 8, 8)
    p["conv2_w"], p["conv2_b"] = conv_params(ks[2], ks[3], 64, 32, 4, 4)
    p["conv3_w"], p["conv3_b"] = conv_params(ks[4], ks[5], 64, 64, 3, 3)

    # hidden: Linear(2304, 512), normalized-columns std=0.01, default bias.
    # Rows permuted from PyTorch CHW flatten order to HWC so the NHWC conv features
    # can be flattened with a plain reshape (no activation transpose at runtime).
    hw = normalized_columns_init(ks[6], 512, 2304, 0.01)                 # (512, 2304) cols in (c,h,w)
    hw = jnp.transpose(hw.reshape(512, 64, 6, 6), (0, 2, 3, 1)).reshape(512, 2304)
    p["hidden_w"] = hw.T.astype(jnp.bfloat16)                            # (2304, 512) rows in (h,w,c)
    hb_bound = 1.0 / math.sqrt(2304.0)
    p["hidden_b"] = jax.random.uniform(ks[7], (1, 512), jnp.float32, -hb_bound, hb_bound)

    # linear: Linear(512, 256), PyTorch default init.
    lb_bound = 1.0 / math.sqrt(512.0)
    p["linear_w"] = jax.random.uniform(ks[8], (256, 512), jnp.float32,
                                       -lb_bound, lb_bound).T.astype(jnp.bfloat16)
    p["linear_b"] = jax.random.uniform(ks[9], (1, 256), jnp.float32, -lb_bound, lb_bound)

    # pi (256->output_dims, nc std=0.01) and vf (256->1, nc std=1.0) fused into one head.
    pi_w = normalized_columns_init(ks[10], output_dims, 256, 0.01).T     # (256, out)
    vf_w = normalized_columns_init(ks[11], 1, 256, 1.0).T                # (256, 1)
    hd_bound = 1.0 / math.sqrt(256.0)
    pi_b = jax.random.uniform(ks[12], (output_dims,), jnp.float32, -hd_bound, hd_bound)
    vf_b = jax.random.uniform(ks[13], (1,), jnp.float32, -hd_bound, hd_bound)
    n_head = output_dims + 1
    head_w = jnp.concatenate([pi_w, vf_w], axis=1)                       # (256, out+1)
    head_b = jnp.concatenate([pi_b, vf_b])
    p["head_w"] = jnp.pad(head_w, ((0, 0), (0, 128 - n_head))).astype(jnp.bfloat16)
    p["head_b"] = jnp.pad(head_b, (0, 128 - n_head)).reshape(1, 128)
    return p


# ---------------------------------------------------------------------------
# Forward pass (matches CNNPolicy.forward)
# ---------------------------------------------------------------------------
@functools.partial(jax.jit, static_argnames=("output_dims",))
def cnn_policy_forward(params, x_nchw, *, output_dims):
    B = x_nchw.shape[0]
    x = jnp.transpose(x_nchw, (0, 2, 3, 1))                              # NHWC

    # conv(4->32, 8, s4) + ReLU
    pt, oh, ow = extract_patches(x, 8, 8, 4)
    h = conv_linear(pt, params["conv1_w"], params["conv1_b"])
    x = h[:B * oh * ow, :32].reshape(B, oh, ow, 32)

    # conv(32->64, 4, s2) + ReLU
    pt, oh, ow = extract_patches(x, 4, 4, 2)
    h = conv_linear(pt, params["conv2_w"], params["conv2_b"])
    x = h[:B * oh * ow, :64].reshape(B, oh, ow, 64)

    # conv(64->64, 3, s1) + ReLU
    pt, oh, ow = extract_patches(x, 3, 3, 1)
    h = conv_linear(pt, params["conv3_w"], params["conv3_b"])
    x = h[:B * oh * ow, :64].reshape(B, oh, ow, 64)

    # flatten (HWC order; hidden_w rows were pre-permuted to match), fused FC tail
    feats = x.reshape(B, oh * ow * 64)                                   # (B, 2304)
    out = fc_tail(feats, params)                                         # (Mp, 128): [pi | vf | pad]
    logits = out[:B, :output_dims]
    vf = out[:B, output_dims:output_dims + 1]
    return logits, vf


if __name__ == "__main__":
    key = jax.random.PRNGKey(0)
    k_param, k_x = jax.random.split(key)

    OUTPUT_DIMS = 6                      # config.output_dims
    B, C, H, W = 2, 4, 80, 80            # 80x80 so the stem yields 6*6*64 = 2304

    params = init_params(k_param, OUTPUT_DIMS)
    x = jax.random.normal(k_x, (B, C, H, W), dtype=jnp.float32)

    logits, vf = cnn_policy_forward(params, x, output_dims=OUTPUT_DIMS)
    jax.block_until_ready((logits, vf))

    assert logits.shape == (B, OUTPUT_DIMS), logits.shape
    assert vf.shape == (B, 1), vf.shape
    assert jnp.all(jnp.isfinite(logits)) and jnp.all(jnp.isfinite(vf))
    print("KERNEL_OK")
</pallas_src>

<mosaic_0001>
module attributes {stable_mosaic.version = 11 : i64} {
  func.func @_matmul_bias_relu_kernel(%arg0: i32, %arg1: memref<368x256xf32, #tpu.memory_space<vmem>>, %arg2: memref<256x128xbf16, #tpu.memory_space<vmem>>, %arg3: memref<1x128xf32, #tpu.memory_space<vmem>>, %arg4: memref<368x128xf32, #tpu.memory_space<vmem>>) attributes {dimension_semantics = [#tpu.dimension_semantics<parallel>], iteration_bounds = array<i64: 2>, scalar_prefetch = 0 : i64, scratch_operands = 0 : i64, tpu.core_type = #tpu.core_type<tc>, window_params = [{transform_indices = @transform_0, window_bounds = array<i64: 368, 256>}, {pipeline_mode = #tpu.pipeline_mode<synchronous>, transform_indices = @transform_1, window_bounds = array<i64: 256, 128>}, {pipeline_mode = #tpu.pipeline_mode<synchronous>, transform_indices = @transform_2, window_bounds = array<i64: 1, 128>}, {transform_indices = @transform_3, window_bounds = array<i64: 368, 128>}]} {
    %c0 = arith.constant 0 : index
    %c0_0 = arith.constant 0 : index
    %0 = vector.load %arg1[%c0, %c0_0] : memref<368x256xf32, #tpu.memory_space<vmem>>, vector<368x256xf32>
    %1 = arith.truncf %0 : vector<368x256xf32> to vector<368x256xbf16>
    %c0_1 = arith.constant 0 : index
    %c0_2 = arith.constant 0 : index
    %2 = vector.load %arg2[%c0_1, %c0_2] : memref<256x128xbf16, #tpu.memory_space<vmem>>, vector<256x128xbf16>
    %cst = arith.constant dense<0.000000e+00> : vector<368x128xf32>
    %3 = tpu.matmul %1, %2, %cst {dimension_numbers = #tpu.dot_dimension_numbers<[1], [0], [0], [1], [0, 0, 1, 1], [], []>} : vector<368x256xbf16>, vector<256x128xbf16>, vector<368x128xf32> -> vector<368x128xf32>
    %c0_3 = arith.constant 0 : index
    %c0_4 = arith.constant 0 : index
    %4 = vector.load %arg3[%c0_3, %c0_4] : memref<1x128xf32, #tpu.memory_space<vmem>>, vector<1x128xf32>
    %5 = vector.broadcast %4 : vector<1x128xf32> to vector<368x128xf32>
    %6 = arith.addf %3, %5 : vector<368x128xf32>
    %cst_5 = arith.constant 0.000000e+00 : f32
    %7 = vector.broadcast %cst_5 : f32 to vector<368x128xf32>
    %8 = arith.maximumf %6, %7 : vector<368x128xf32>
    %c0_6 = arith.constant 0 : index
    %c0_7 = arith.constant 0 : index
    %9 = vector.load %arg4[%c0_6, %c0_7] : memref<368x128xf32, #tpu.memory_space<vmem>>, vector<368x128xf32>
    tpu.vector_store %arg4[%c0_6, %c0_7], %8 {strides = array<i32>} : memref<368x128xf32, #tpu.memory_space<vmem>>, vector<368x128xf32>,
    return
  }
  func.func @transform_0(%arg0: i32) -> (i32, i32) {
    %c0_i32 = arith.constant 0 : i32
    %c0_i32_0 = arith.constant 0 : i32
    return %arg0, %c0_i32 : i32, i32
  }
  func.func @transform_1(%arg0: i32) -> (i32, i32) {
    %c0_i32 = arith.constant 0 : i32
    %c0_i32_0 = arith.constant 0 : i32
    %c0_i32_1 = arith.constant 0 : i32
    return %c0_i32, %c0_i32_0 : i32, i32
  }
  func.func @transform_2(%arg0: i32) -> (i32, i32) {
    %c0_i32 = arith.constant 0 : i32
    %c0_i32_0 = arith.constant 0 : i32
    %c0_i32_1 = arith.constant 0 : i32
    return %c0_i32, %c0_i32_0 : i32, i32
  }
  func.func @transform_3(%arg0: i32) -> (i32, i32) {
    %c0_i32 = arith.constant 0 : i32
    %c0_i32_0 = arith.constant 0 : i32
    return %arg0, %c0_i32 : i32, i32
  }
}

module attributes {stable_mosaic.version = 11 : i64} {
  func.func @_matmul_bias_relu_kernel(%arg0: i32, %arg1: memref<128x512xf32, #tpu.memory_space<vmem>>, %arg2: memref<512x128xbf16, #tpu.memory_space<vmem>>, %arg3: memref<1x128xf32, #tpu.memory_space<vmem>>, %arg4: memref<128x128xf32, #tpu.memory_space<vmem>>) attributes {dimension_semantics = [#tpu.dimension_semantics<parallel>], iteration_bounds = array<i64: 1>, scalar_prefetch = 0 : i64, scratch_operands = 0 : i64, tpu.core_type = #tpu.core_type<tc>, window_params = [{transform_indices = @transform_0, window_bounds = array<i64: 128, 512>}, {pipeline_mode = #tpu.pipeline_mode<synchronous>, transform_indices = @transform_1, window_bounds = array<i64: 512, 128>}, {pipeline_mode = #tpu.pipeline_mode<synchronous>, transform_indices = @transform_2, window_bounds = array<i64: 1, 128>}, {transform_indices = @transform_3, window_bounds = array<i64: 128, 128>}]} {
    %c0 = arith.constant 0 : index
    %c0_0 = arith.constant 0 : index
    %0 = vector.load %arg1[%c0, %c0_0] : memref<128x512xf32, #tpu.memory_space<vmem>>, vector<128x512xf32>
    %1 = arith.truncf %0 : vector<128x512xf32> to vector<128x512xbf16>
    %c0_1 = arith.constant 0 : index
    %c0_2 = arith.constant 0 : index
    %2 = vector.load %arg2[%c0_1, %c0_2] : memref<512x128xbf16, #tpu.memory_space<vmem>>, vector<512x128xbf16>
    %cst = arith.constant dense<0.000000e+00> : vector<128x128xf32>
    %3 = tpu.matmul %1, %2, %cst {dimension_numbers = #tpu.dot_dimension_numbers<[1], [0], [0], [1], [0, 0, 1, 1], [], []>} : vector<128x512xbf16>, vector<512x128xbf16>, vector<128x128xf32> -> vector<128x128xf32>
    %c0_3 = arith.constant 0 : index
    %c0_4 = arith.constant 0 : index
    %4 = vector.load %arg3[%c0_3, %c0_4] : memref<1x128xf32, #tpu.memory_space<vmem>>, vector<1x128xf32>
    %5 = vector.broadcast %4 : vector<1x128xf32> to vector<128x128xf32>
    %6 = arith.addf %3, %5 : vector<128x128xf32>
    %cst_5 = arith.constant 0.000000e+00 : f32
    %7 = vector.broadcast %cst_5 : f32 to vector<128x128xf32>
    %8 = arith.maximumf %6, %7 : vector<128x128xf32>
    %c0_6 = arith.constant 0 : index
    %c0_7 = arith.constant 0 : index
    %9 = vector.load %arg4[%c0_6, %c0_7] : memref<128x128xf32, #tpu.memory_space<vmem>>, vector<128x128xf32>
    tpu.vector_store %arg4[%c0_6, %c0_7], %8 {strides = array<i32>} : memref<128x128xf32, #tpu.memory_space<vmem>>, vector<128x128xf32>,
    return
  }
  func.func @transform_0(%arg0: i32) -> (i32, i32) {
    %c0_i32 = arith.constant 0 : i32
    %c0_i32_0 = arith.constant 0 : i32
    return %arg0, %c0_i32 : i32, i32
  }
  func.func @transform_1(%arg0: i32) -> (i32, i32) {
    %c0_i32 = arith.constant 0 : i32
    %c0_i32_0 = arith.constant 0 : i32
    %c0_i32_1 = arith.constant 0 : i32
    return %c0_i32, %c0_i32_0 : i32, i32
  }
  func.func @transform_2(%arg0: i32) -> (i32, i32) {
    %c0_i32 = arith.constant 0 : i32
    %c0_i32_0 = arith.constant 0 : i32
    %c0_i32_1 = arith.constant 0 : i32
    return %c0_i32, %c0_i32_0 : i32, i32
  }
  func.func @transform_3(%arg0: i32) -> (i32, i32) {
    %c0_i32 = arith.constant 0 : i32
    %c0_i32_0 = arith.constant 0 : i32
    return %arg0, %c0_i32 : i32, i32
  }
}

module attributes {stable_mosaic.version = 11 : i64} {
  func.func @_matmul_bias_relu_kernel(%arg0: i32, %arg1: memref<72x640xf32, #tpu.memory_space<vmem>>, %arg2: memref<640x128xbf16, #tpu.memory_space<vmem>>, %arg3: memref<1x128xf32, #tpu.memory_space<vmem>>, %arg4: memref<72x128xf32, #tpu.memory_space<vmem>>) attributes {dimension_semantics = [#tpu.dimension_semantics<parallel>], iteration_bounds = array<i64: 1>, scalar_prefetch = 0 : i64, scratch_operands = 0 : i64, tpu.core_type = #tpu.core_type<tc>, window_params = [{transform_indices = @transform_0, window_bounds = array<i64: 72, 640>}, {pipeline_mode = #tpu.pipeline_mode<synchronous>, transform_indices = @transform_1, window_bounds = array<i64: 640, 128>}, {pipeline_mode = #tpu.pipeline_mode<synchronous>, transform_indices = @transform_2, window_bounds = array<i64: 1, 128>}, {transform_indices = @transform_3, window_bounds = array<i64: 72, 128>}]} {
    %c0 = arith.constant 0 : index
    %c0_0 = arith.constant 0 : index
    %0 = vector.load %arg1[%c0, %c0_0] : memref<72x640xf32, #tpu.memory_space<vmem>>, vector<72x640xf32>
    %1 = arith.truncf %0 : vector<72x640xf32> to vector<72x640xbf16>
    %c0_1 = arith.constant 0 : index
    %c0_2 = arith.constant 0 : index
    %2 = vector.load %arg2[%c0_1, %c0_2] : memref<640x128xbf16, #tpu.memory_space<vmem>>, vector<640x128xbf16>
    %cst = arith.constant dense<0.000000e+00> : vector<72x128xf32>
    %3 = tpu.matmul %1, %2, %cst {dimension_numbers = #tpu.dot_dimension_numbers<[1], [0], [0], [1], [0, 0, 1, 1], [], []>} : vector<72x640xbf16>, vector<640x128xbf16>, vector<72x128xf32> -> vector<72x128xf32>
    %c0_3 = arith.constant 0 : index
    %c0_4 = arith.constant 0 : index
    %4 = vector.load %arg3[%c0_3, %c0_4] : memref<1x128xf32, #tpu.memory_space<vmem>>, vector<1x128xf32>
    %5 = vector.broadcast %4 : vector<1x128xf32> to vector<72x128xf32>
    %6 = arith.addf %3, %5 : vector<72x128xf32>
    %cst_5 = arith.constant 0.000000e+00 : f32
    %7 = vector.broadcast %cst_5 : f32 to vector<72x128xf32>
    %8 = arith.maximumf %6, %7 : vector<72x128xf32>
    %c0_6 = arith.constant 0 : index
    %c0_7 = arith.constant 0 : index
    %9 = vector.load %arg4[%c0_6, %c0_7] : memref<72x128xf32, #tpu.memory_space<vmem>>, vector<72x128xf32>
    tpu.vector_store %arg4[%c0_6, %c0_7], %8 {strides = array<i32>} : memref<72x128xf32, #tpu.memory_space<vmem>>, vector<72x128xf32>,
    return
  }
  func.func @transform_0(%arg0: i32) -> (i32, i32) {
    %c0_i32 = arith.constant 0 : i32
    %c0_i32_0 = arith.constant 0 : i32
    return %arg0, %c0_i32 : i32, i32
  }
  func.func @transform_1(%arg0: i32) -> (i32, i32) {
    %c0_i32 = arith.constant 0 : i32
    %c0_i32_0 = arith.constant 0 : i32
    %c0_i32_1 = arith.constant 0 : i32
    return %c0_i32, %c0_i32_0 : i32, i32
  }
  func.func @transform_2(%arg0: i32) -> (i32, i32) {
    %c0_i32 = arith.constant 0 : i32
    %c0_i32_0 = arith.constant 0 : i32
    %c0_i32_1 = arith.constant 0 : i32
    return %c0_i32, %c0_i32_0 : i32, i32
  }
  func.func @transform_3(%arg0: i32) -> (i32, i32) {
    %c0_i32 = arith.constant 0 : i32
    %c0_i32_0 = arith.constant 0 : i32
    return %arg0, %c0_i32 : i32, i32
  }
}

module attributes {stable_mosaic.version = 11 : i64} {
  func.func @_fc_tail_kernel(%arg0: i32, %arg1: memref<8x2304xf32, #tpu.memory_space<vmem>>, %arg2: memref<2304x512xbf16, #tpu.memory_space<vmem>>, %arg3: memref<1x512xf32, #tpu.memory_space<vmem>>, %arg4: memref<512x256xbf16, #tpu.memory_space<vmem>>, %arg5: memref<1x256xf32, #tpu.memory_space<vmem>>, %arg6: memref<256x128xbf16, #tpu.memory_space<vmem>>, %arg7: memref<1x128xf32, #tpu.memory_space<vmem>>, %arg8: memref<8x128xf32, #tpu.memory_space<vmem>>) attributes {dimension_semantics = [#tpu.dimension_semantics<arbitrary>], iteration_bounds = array<i64: 1>, scalar_prefetch = 0 : i64, scratch_operands = 0 : i64, tpu.core_type = #tpu.core_type<tc>, window_params = [{pipeline_mode = #tpu.pipeline_mode<synchronous>, transform_indices = @transform_0, window_bounds = array<i64: 8, 2304>}, {pipeline_mode = #tpu.pipeline_mode<synchronous>, transform_indices = @transform_1, window_bounds = array<i64: 2304, 512>}, {pipeline_mode = #tpu.pipeline_mode<synchronous>, transform_indices = @transform_2, window_bounds = array<i64: 1, 512>}, {pipeline_mode = #tpu.pipeline_mode<synchronous>, transform_indices = @transform_3, window_bounds = array<i64: 512, 256>}, {pipeline_mode = #tpu.pipeline_mode<synchronous>, transform_indices = @transform_4, window_bounds = array<i64: 1, 256>}, {pipeline_mode = #tpu.pipeline_mode<synchronous>, transform_indices = @transform_5, window_bounds = array<i64: 256, 128>}, {pipeline_mode = #tpu.pipeline_mode<synchronous>, transform_indices = @transform_6, window_bounds = array<i64: 1, 128>}, {pipeline_mode = #tpu.pipeline_mode<synchronous>, transform_indices = @transform_7, window_bounds = array<i64: 8, 128>}]} {
    %c0 = arith.constant 0 : index
    %c0_0 = arith.constant 0 : index
    %0 = vector.load %arg1[%c0, %c0_0] : memref<8x2304xf32, #tpu.memory_space<vmem>>, vector<8x2304xf32>
    %1 = arith.truncf %0 : vector<8x2304xf32> to vector<8x2304xbf16>
    %c0_1 = arith.constant 0 : index
    %c0_2 = arith.constant 0 : index
    %2 = vector.load %arg2[%c0_1, %c0_2] : memref<2304x512xbf16, #tpu.memory_space<vmem>>, vector<2304x512xbf16>
    %cst = arith.constant dense<0.000000e+00> : vector<8x512xf32>
    %3 = tpu.matmul %1, %2, %cst {dimension_numbers = #tpu.dot_dimension_numbers<[1], [0], [0], [1], [0, 0, 1, 1], [], []>} : vector<8x2304xbf16>, vector<2304x512xbf16>, vector<8x512xf32> -> vector<8x512xf32>
    %c0_3 = arith.constant 0 : index
    %c0_4 = arith.constant 0 : index
    %4 = vector.load %arg3[%c0_3, %c0_4] : memref<1x512xf32, #tpu.memory_space<vmem>>, vector<1x512xf32>
    %5 = vector.broadcast %4 : vector<1x512xf32> to vector<8x512xf32>
    %6 = arith.addf %3, %5 : vector<8x512xf32>
    %cst_5 = arith.constant 0.000000e+00 : f32
    %7 = vector.broadcast %cst_5 : f32 to vector<8x512xf32>
    %8 = arith.maximumf %6, %7 : vector<8x512xf32>
    %9 = arith.truncf %8 : vector<8x512xf32> to vector<8x512xbf16>
    %c0_6 = arith.constant 0 : index
    %c0_7 = arith.constant 0 : index
    %10 = vector.load %arg4[%c0_6, %c0_7] : memref<512x256xbf16, #tpu.memory_space<vmem>>, vector<512x256xbf16>
    %cst_8 = arith.constant dense<0.000000e+00> : vector<8x256xf32>
    %11 = tpu.matmul %9, %10, %cst_8 {dimension_numbers = #tpu.dot_dimension_numbers<[1], [0], [0], [1], [0, 0, 1, 1], [], []>} : vector<8x512xbf16>, vector<512x256xbf16>, vector<8x256xf32> -> vector<8x256xf32>
    %c0_9 = arith.constant 0 : index
    %c0_10 = arith.constant 0 : index
    %12 = vector.load %arg5[%c0_9, %c0_10] : memref<1x256xf32, #tpu.memory_space<vmem>>, vector<1x256xf32>
    %13 = vector.broadcast %12 : vector<1x256xf32> to vector<8x256xf32>
    %14 = arith.addf %11, %13 : vector<8x256xf32>
    %cst_11 = arith.constant 0.000000e+00 : f32
    %15 = vector.broadcast %cst_11 : f32 to vector<8x256xf32>
    %16 = arith.maximumf %14, %15 : vector<8x256xf32>
    %17 = arith.truncf %16 : vector<8x256xf32> to vector<8x256xbf16>
    %c0_12 = arith.constant 0 : index
    %c0_13 = arith.constant 0 : index
    %18 = vector.load %arg6[%c0_12, %c0_13] : memref<256x128xbf16, #tpu.memory_space<vmem>>, vector<256x128xbf16>
    %cst_14 = arith.constant dense<0.000000e+00> : vector<8x128xf32>
    %19 = tpu.matmul %17, %18, %cst_14 {dimension_numbers = #tpu.dot_dimension_numbers<[1], [0], [0], [1], [0, 0, 1, 1], [], []>} : vector<8x256xbf16>, vector<256x128xbf16>, vector<8x128xf32> -> vector<8x128xf32>
    %c0_15 = arith.constant 0 : index
    %c0_16 = arith.constant 0 : index
    %20 = vector.load %arg7[%c0_15, %c0_16] : memref<1x128xf32, #tpu.memory_space<vmem>>, vector<1x128xf32>
    %21 = vector.broadcast %20 : vector<1x128xf32> to vector<8x128xf32>
    %22 = arith.addf %19, %21 : vector<8x128xf32>
    %c0_17 = arith.constant 0 : index
    %c0_18 = arith.constant 0 : index
    %23 = vector.load %arg8[%c0_17, %c0_18] : memref<8x128xf32, #tpu.memory_space<vmem>>, vector<8x128xf32>
    tpu.vector_store %arg8[%c0_17, %c0_18], %22 {strides = array<i32>} : memref<8x128xf32, #tpu.memory_space<vmem>>, vector<8x128xf32>,
    return
  }
  func.func @transform_0(%arg0: i32) -> (i32, i32) {
    %c0_i32 = arith.constant 0 : i32
    %c0_i32_0 = arith.constant 0 : i32
    %c0_i32_1 = arith.constant 0 : i32
    return %c0_i32, %c0_i32_0 : i32, i32
  }
  func.func @transform_1(%arg0: i32) -> (i32, i32) {
    %c0_i32 = arith.constant 0 : i32
    %c0_i32_0 = arith.constant 0 : i32
    %c0_i32_1 = arith.constant 0 : i32
    return %c0_i32, %c0_i32_0 : i32, i32
  }
  func.func @transform_2(%arg0: i32) -> (i32, i32) {
    %c0_i32 = arith.constant 0 : i32
    %c0_i32_0 = arith.constant 0 : i32
    %c0_i32_1 = arith.constant 0 : i32
    return %c0_i32, %c0_i32_0 : i32, i32
  }
  func.func @transform_3(%arg0: i32) -> (i32, i32) {
    %c0_i32 = arith.constant 0 : i32
    %c0_i32_0 = arith.constant 0 : i32
    %c0_i32_1 = arith.constant 0 : i32
    return %c0_i32, %c0_i32_0 : i32, i32
  }
  func.func @transform_4(%arg0: i32) -> (i32, i32) {
    %c0_i32 = arith.constant 0 : i32
    %c0_i32_0 = arith.constant 0 : i32
    %c0_i32_1 = arith.constant 0 : i32
    return %c0_i32, %c0_i32_0 : i32, i32
  }
  func.func @transform_5(%arg0: i32) -> (i32, i32) {
    %c0_i32 = arith.constant 0 : i32
    %c0_i32_0 = arith.constant 0 : i32
    %c0_i32_1 = arith.constant 0 : i32
    return %c0_i32, %c0_i32_0 : i32, i32
  }
  func.func @transform_6(%arg0: i32) -> (i32, i32) {
    %c0_i32 = arith.constant 0 : i32
    %c0_i32_0 = arith.constant 0 : i32
    %c0_i32_1 = arith.constant 0 : i32
    return %c0_i32, %c0_i32_0 : i32, i32
  }
  func.func @transform_7(%arg0: i32) -> (i32, i32) {
    %c0_i32 = arith.constant 0 : i32
    %c0_i32_0 = arith.constant 0 : i32
    %c0_i32_1 = arith.constant 0 : i32
    return %c0_i32, %c0_i32_0 : i32, i32
  }
}

</mosaic_0001>

<llo_original>
// kernel: cnn_policy_forward.4
$region0: #{cnn_policy_forward.4}
  #allocation0 [shape = 'u32[]', space=smem, size = 0x4, offset = 0x4, fixed_abs, tag = 'smem constant byte address 0x4 - core index']
  #allocation1 [shape = 'u32[144,128]{1,0:T(1,128)}', space=vmem, size = 0x12000, scoped, tag = 'internal scratch']
  %s0 = inlined_call_operand.vmem [shape: f32[736,256], index: 0, kind: input, shape index: {}]
  %s1 = inlined_call_operand.vmem [shape: bf16[256,128], index: 1, kind: input, shape index: {}]
  %s2 = inlined_call_operand.vmem [shape: f32[1,128], index: 2, kind: input, shape index: {}]
  %s3 = inlined_call_operand.vmem [shape: f32[736,128], index: 3, kind: output, shape index: {}]
  %s4 = sld [smem:[#allocation0]]
  $region45: #{cnn_policy_forward.4} parent=0
    _
  %s6 = ssub.s32 1, %s4
  %s7 = scalar_select 0, %s6, %s4
  loop: start=0, step=1, limit=4
  $region2: #{cnn_policy_forward.4} parent=0 // loop_pre_header
    _
  $region3: #{cnn_policy_forward.4} parent=0 // loop_header
    %s9 = sphi 0, %s13
    %p10 = scmp.ge.s32.totalorder %s9, 4
    %s19 = sphi 0, %s21
    %s22 = sphi 0, %s19
    %s23 = sphi 0, %s22
    %s39 = sphi 0, %s23
    %s43 = sphi 0, %s43
    %s45 = sphi 0, %s43
    %s46 = sphi 0, %s45
    %s60 = sphi 0, %s46
    %s64 = sphi 0, %s64
    %s66 = sphi 0, %s64
    %s67 = sphi 0, %s66
    %s81 = sphi 0, %s67
    %s87 = sphi 0, %s89
    %s90 = sphi 0, %s87
    %s91 = sphi 0, %s90
    %s107 = sphi 0, %s91
  $region4: #{cnn_policy_forward.4} parent=0 // loop_header_branch
    %12 = sbr.rel (%p10) target = $region8
  $region5: #{cnn_policy_forward.4} parent=0 // loop_body
    %s14 = ssub.s32 %s9, 1
    %s15 = ssub.s32 %s9, 2
    %s16 = sadd.s32 %s9, 1
    %s17 = ssub.s32 %s9, %s16
    %p18 = scmp.eq.s32.totalorder %s17, 0
    %s20 = sadd.s32 %s19, 1
    %s21 = scalar_select %p18, %s19, %s20
    %p24 = pneg %p18
    %p25 = scmp.eq.s32.totalorder %s9, 1
    %p26 = por %p24, %p25
    %p27 = scmp.ne.s32.totalorder %s19, %s22
    %p28 = scmp.eq.s32.totalorder %s9, 0
    %p29 = por %p27, %p28
    %p30 = scmp.ne.s32.totalorder %s19, %s22
    %p31 = scmp.eq.s32.totalorder %s14, 1
    %p32 = por %p30, %p31
    %p33 = scmp.ne.s32.totalorder %s22, %s23
    %p34 = scmp.eq.s32.totalorder %s14, 0
    %p35 = por %p33, %p34
    %p36 = scmp.ne.s32.totalorder %s22, %s23
    %p37 = scmp.eq.s32.totalorder %s15, 1
    %p38 = por %p36, %p37
    %p40 = scmp.ne.s32.totalorder %s23, %s39
    %p41 = scmp.eq.s32.totalorder %s15, 0
    %p42 = por %p40, %p41
    %s44 = sadd.s32 %s43, 1
    %p47 = scmp.eq.s32.totalorder %s9, 1
    %p48 = scmp.ne.s32.totalorder %s43, %s45
    %p49 = scmp.eq.s32.totalorder %s9, 0
    %p50 = por %p48, %p49
    %p51 = scmp.ne.s32.totalorder %s43, %s45
    %p52 = scmp.eq.s32.totalorder %s14, 1
    %p53 = por %p51, %p52
    %p54 = scmp.ne.s32.totalorder %s45, %s46
    %p55 = scmp.eq.s32.totalorder %s14, 0
    %p56 = por %p54, %p55
    %p57 = scmp.ne.s32.totalorder %s45, %s46
    %p58 = scmp.eq.s32.totalorder %s15, 1
    %p59 = por %p57, %p58
    %p61 = scmp.ne.s32.totalorder %s46, %s60
    %p62 = scmp.eq.s32.totalorder %s15, 0
    %p63 = por %p61, %p62
    %s65 = sadd.s32 %s64, 1
    %p68 = scmp.eq.s32.totalorder %s9, 1
    %p69 = scmp.ne.s32.totalorder %s64, %s66
    %p70 = scmp.eq.s32.totalorder %s9, 0
    %p71 = por %p69, %p70
    %p72 = scmp.ne.s32.totalorder %s64, %s66
    %p73 = scmp.eq.s32.totalorder %s14, 1
    %p74 = por %p72, %p73
    %p75 = scmp.ne.s32.totalorder %s66, %s67
    %p76 = scmp.eq.s32.totalorder %s14, 0
    %p77 = por %p75, %p76
    %p78 = scmp.ne.s32.totalorder %s66, %s67
    %p79 = scmp.eq.s32.totalorder %s15, 1
    %p80 = por %p78, %p79
    %p82 = scmp.ne.s32.totalorder %s67, %s81
    %p83 = scmp.eq.s32.totalorder %s15, 0
    %p84 = por %p82, %p83
    %s85 = ssub.s32 %s9, %s16
    %p86 = scmp.eq.s32.totalorder %s85, 0
    %s88 = sadd.s32 %s87, 1
    %s89 = scalar_select %p86, %s87, %s88
    %p92 = pneg %p86
    %p93 = scmp.eq.s32.totalorder %s9, 1
    %p94 = por %p92, %p93
    %p95 = scmp.ne.s32.totalorder %s87, %s90
    %p96 = scmp.eq.s32.totalorder %s9, 0
    %p97 = por %p95, %p96
    %p98 = scmp.ne.s32.totalorder %s87, %s90
    %p99 = scmp.eq.s32.totalorder %s14, 1
    %p100 = por %p98, %p99
    %p101 = scmp.ne.s32.totalorder %s90, %s91
    %p102 = scmp.eq.s32.totalorder %s14, 0
    %p103 = por %p101, %p102
    %p104 = scmp.ne.s32.totalorder %s90, %s91
    %p105 = scmp.eq.s32.totalorder %s15, 1
    %p106 = por %p104, %p105
    %p108 = scmp.ne.s32.totalorder %s91, %s107
    %p109 = scmp.eq.s32.totalorder %s15, 0
    %p110 = por %p108, %p109
    %p111 = scmp.le.s32.totalorder 1, %s9
    %p112 = scmp.lt.s32.totalorder %s9, 3
    %p113 = pnand %p111, %p112
    %p114 = pneg %p113
    // Predicated region
    $region9: #{cnn_policy_forward.4} parent=5 // pred_check
      _
    $region10: #{cnn_policy_forward.4} parent=5 // pred_check_branch
      %116 = sbr.rel (%p113) target = $region12
    $region11: #{cnn_policy_forward.4} parent=5 // pred_region
      %s117 = ssub.s32 %s9, 1
      // Predicated region
      $region13: #{cnn_policy_forward.4} parent=11 // pred_check
        %p118 = pneg %p56
      $region14: #{cnn_policy_forward.4} parent=11 // pred_check_branch
        %120 = sbr.rel (%p118) target = $region16
      $region15: #{cnn_policy_forward.4} parent=11 // pred_region
        _
      $region16: #{cnn_policy_forward.4} parent=11 // pred_fallthru
        _
      // Predicated region
      $region17: #{cnn_policy_forward.4} parent=11 // pred_check
        %p121 = pneg %p77
      $region18: #{cnn_policy_forward.4} parent=11 // pred_check_branch
        %123 = sbr.rel (%p121) target = $region20
      $region19: #{cnn_policy_forward.4} parent=11 // pred_region
        _
      $region20: #{cnn_policy_forward.4} parent=11 // pred_fallthru
        _
    $region12: #{cnn_policy_forward.4} parent=5 // pred_fallthru
      _
    %p124 = scmp.lt.s32.totalorder %s9, 2
    // Predicated region
    $region21: #{cnn_policy_forward.4} parent=5 // pred_check
      %p125 = pneg %p124
    $region22: #{cnn_policy_forward.4} parent=5 // pred_check_branch
      %127 = sbr.rel (%p125) target = $region24
    $region23: #{cnn_policy_forward.4} parent=5 // pred_region
      // Predicated region
      $region25: #{cnn_policy_forward.4} parent=23 // pred_check
        %p128 = pneg %p29
      $region26: #{cnn_policy_forward.4} parent=23 // pred_check_branch
        %130 = sbr.rel (%p128) target = $region28
      $region27: #{cnn_policy_forward.4} parent=23 // pred_region
        %s131 = smul.u32 46, %s9
        %p132 = scmp.lt.s32.totalorder %s131, 91
        %s133 = scalar_select %p132, %s131, 91
        %s134 = smul.addr %s133, 2
        %s135 = smul.addr %s134, 8
        %s136 = scalar_lea.vmem %s0, %s135
        %s137 = smul.u32 46, %s9
      $region28: #{cnn_policy_forward.4} parent=23 // pred_fallthru
        _
    $region24: #{cnn_policy_forward.4} parent=5 // pred_fallthru
      _
    %p138 = scmp.le.s32.totalorder 1, %s9
    %p139 = scmp.lt.s32.totalorder %s9, 3
    %p140 = pnand %p138, %p139
    %p141 = pneg %p140
    // Predicated region
    $region29: #{cnn_policy_forward.4} parent=5 // pred_check
      _
    $region30: #{cnn_policy_forward.4} parent=5 // pred_check_branch
      %143 = sbr.rel (%p140) target = $region32
    $region31: #{cnn_policy_forward.4} parent=5 // pred_region
      %s144 = ssub.s32 %s9, 1
      %s145 = smul.u32 46, %s14
      %p146 = scmp.lt.s32.totalorder %s145, 91
      %s147 = scalar_select %p146, %s145, 91
      %s148 = smul.addr %s147, 2
      %s149 = smul.addr %s148, 8
      %s150 = scalar_lea.vmem %s0, %s149
      %p151 = pneg %p35
      %p152 = pneg %p32
      %p153 = pneg %p56
      %p154 = pneg %p53
      %p155 = pneg %p77
      %p156 = pneg %p74
      %p157 = pneg %p103
      %p158 = pneg %p100
      %s159 = smul.u32 46, %s14
      %p160 = scmp.lt.s32.totalorder %s159, 91
      %s161 = scalar_select %p160, %s159, 91
      %s162 = smul.addr %s161, 8
      %s163 = scalar_lea.vmem %s3, %s162
      %s164 = smul.u32 46, %s14
      %p165 = scmp.lt.s32.totalorder %s164, 91
      %s166 = scalar_select %p165, %s164, 91
      %s167 = smul.addr %s166, 2
      %s168 = smul.addr %s167, 8
      %s169 = scalar_lea.vmem %s0, %s168
      %s170 = smul.u32 46, %s14
      %s171 = smul.u32 46, %s14
      %p172 = scmp.lt.s32.totalorder %s171, 91
      %s173 = scalar_select %p172, %s171, 91
      %s174 = smul.addr %s173, 8
      %s175 = scalar_lea.vmem %s3, %s174
      %s176 = smul.u32 46, %s14
      %v178 = vld [vmem:[%s169] sm:$0xff]
      %v179 = vld [vmem:[%s169 + $0x8] sm:$0xff]
      %v180 = vld [vmem:[%s169 + $0x10] sm:$0xff]
      %v181 = vld [vmem:[%s169 + $0x18] sm:$0xff]
      %v182 = vld [vmem:[%s169 + $0x20] sm:$0xff]
      %v183 = vld [vmem:[%s169 + $0x28] sm:$0xff]
      %v184 = vld [vmem:[%s169 + $0x30] sm:$0xff]
      %v185 = vld [vmem:[%s169 + $0x38] sm:$0xff]
      %v186 = vld [vmem:[%s169 + $0x40] sm:$0xff]
      %v187 = vld [vmem:[%s169 + $0x48] sm:$0xff]
      %v188 = vld [vmem:[%s169 + $0x50] sm:$0xff]
      %v189 = vld [vmem:[%s169 + $0x58] sm:$0xff]
      %v190 = vld [vmem:[%s169 + $0x60] sm:$0xff]
      %v191 = vld [vmem:[%s169 + $0x68] sm:$0xff]
      %v192 = vld [vmem:[%s169 + $0x70] sm:$0xff]
      %v193 = vld [vmem:[%s169 + $0x78] sm:$0xff]
      %v194 = vld [vmem:[%s169 + $0x80] sm:$0xff]
      %v195 = vld [vmem:[%s169 + $0x88] sm:$0xff]
      %v196 = vld [vmem:[%s169 + $0x90] sm:$0xff]
      %v197 = vld [vmem:[%s169 + $0x98] sm:$0xff]
      %v198 = vld [vmem:[%s169 + $0xa0] sm:$0xff]
      %v199 = vld [vmem:[%s169 + $0xa8] sm:$0xff]
      %v200 = vld [vmem:[%s169 + $0xb0] sm:$0xff]
      %v201 = vld [vmem:[%s169 + $0xb8] sm:$0xff]
      %v202 = vld [vmem:[%s169 + $0xc0] sm:$0xff]
      %v203 = vld [vmem:[%s169 + $0xc8] sm:$0xff]
      %v204 = vld [vmem:[%s169 + $0xd0] sm:$0xff]
      %v205 = vld [vmem:[%s169 + $0xd8] sm:$0xff]
      %v206 = vld [vmem:[%s169 + $0xe0] sm:$0xff]
      %v207 = vld [vmem:[%s169 + $0xe8] sm:$0xff]
      %v208 = vld [vmem:[%s169 + $0xf0] sm:$0xff]
      %v209 = vld [vmem:[%s169 + $0xf8] sm:$0xff]
      %v210 = vld [vmem:[%s169 + $0x100] sm:$0xff]
      %v211 = vld [vmem:[%s169 + $0x108] sm:$0xff]
      %v212 = vld [vmem:[%s169 + $0x110] sm:$0xff]
      %v213 = vld [vmem:[%s169 + $0x118] sm:$0xff]
      %v214 = vld [vmem:[%s169 + $0x120] sm:$0xff]
      %v215 = vld [vmem:[%s169 + $0x128] sm:$0xff]
      %v216 = vld [vmem:[%s169 + $0x130] sm:$0xff]
      %v217 = vld [vmem:[%s169 + $0x138] sm:$0xff]
      %v218 = vld [vmem:[%s169 + $0x140] sm:$0xff]
      %v219 = vld [vmem:[%s169 + $0x148] sm:$0xff]
      %v220 = vld [vmem:[%s169 + $0x150] sm:$0xff]
      %v221 = vld [vmem:[%s169 + $0x158] sm:$0xff]
      %v222 = vld [vmem:[%s169 + $0x160] sm:$0xff]
      %v223 = vld [vmem:[%s169 + $0x168] sm:$0xff]
      %v224 = vld [vmem:[%s169 + $0x170] sm:$0xff]
      %v225 = vld [vmem:[%s169 + $0x178] sm:$0xff]
      %v226 = vld [vmem:[%s169 + $0x180] sm:$0xff]
      %v227 = vld [vmem:[%s169 + $0x188] sm:$0xff]
      %v228 = vld [vmem:[%s169 + $0x190] sm:$0xff]
      %v229 = vld [vmem:[%s169 + $0x198] sm:$0xff]
      %v230 = vld [vmem:[%s169 + $0x1a0] sm:$0xff]
      %v231 = vld [vmem:[%s169 + $0x1a8] sm:$0xff]
      %v232 = vld [vmem:[%s169 + $0x1b0] sm:$0xff]
      %v233 = vld [vmem:[%s169 + $0x1b8] sm:$0xff]
      %v234 = vld [vmem:[%s169 + $0x1c0] sm:$0xff]
      %v235 = vld [vmem:[%s169 + $0x1c8] sm:$0xff]
      %v236 = vld [vmem:[%s169 + $0x1d0] sm:$0xff]
      %v237 = vld [vmem:[%s169 + $0x1d8] sm:$0xff]
      %v238 = vld [vmem:[%s169 + $0x1e0] sm:$0xff]
      %v239 = vld [vmem:[%s169 + $0x1e8] sm:$0xff]
      %v240 = vld [vmem:[%s169 + $0x1f0] sm:$0xff]
      %v241 = vld [vmem:[%s169 + $0x1f8] sm:$0xff]
      %v242 = vld [vmem:[%s169 + $0x200] sm:$0xff]
      %v243 = vld [vmem:[%s169 + $0x208] sm:$0xff]
      %v244 = vld [vmem:[%s169 + $0x210] sm:$0xff]
      %v245 = vld [vmem:[%s169 + $0x218] sm:$0xff]
      %v246 = vld [vmem:[%s169 + $0x220] sm:$0xff]
      %v247 = vld [vmem:[%s169 + $0x228] sm:$0xff]
      %v248 = vld [vmem:[%s169 + $0x230] sm:$0xff]
      %v249 = vld [vmem:[%s169 + $0x238] sm:$0xff]
      %v250 = vld [vmem:[%s169 + $0x240] sm:$0xff]
      %v251 = vld [vmem:[%s169 + $0x248] sm:$0xff]
      %v252 = vld [vmem:[%s169 + $0x250] sm:$0xff]
      %v253 = vld [vmem:[%s169 + $0x258] sm:$0xff]
      %v254 = vld [vmem:[%s169 + $0x260] sm:$0xff]
      %v255 = vld [vmem:[%s169 + $0x268] sm:$0xff]
      %v256 = vld [vmem:[%s169 + $0x270] sm:$0xff]
      %v257 = vld [vmem:[%s169 + $0x278] sm:$0xff]
      %v258 = vld [vmem:[%s169 + $0x280] sm:$0xff]
      %v259 = vld [vmem:[%s169 + $0x288] sm:$0xff]
      %v260 = vld [vmem:[%s169 + $0x290] sm:$0xff]
      %v261 = vld [vmem:[%s169 + $0x298] sm:$0xff]
      %v262 = vld [vmem:[%s169 + $0x2a0] sm:$0xff]
      %v263 = vld [vmem:[%s169 + $0x2a8] sm:$0xff]
      %v264 = vld [vmem:[%s169 + $0x2b0] sm:$0xff]
      %v265 = vld [vmem:[%s169 + $0x2b8] sm:$0xff]
      %v266 = vld [vmem:[%s169 + $0x2c0] sm:$0xff]
      %v267 = vld [vmem:[%s169 + $0x2c8] sm:$0xff]
      %v268 = vld [vmem:[%s169 + $0x2d0] sm:$0xff]
      %v269 = vld [vmem:[%s169 + $0x2d8] sm:$0xff]
      %v270 = vpack.c.bf16 %v180, %v178
      %v271 = vpack.c.bf16 %v181, %v179
      %v272 = vpack.c.bf16 %v184, %v182
      %v273 = vpack.c.bf16 %v185, %v183
      %v274 = vpack.c.bf16 %v188, %v186
      %v275 = vpack.c.bf16 %v189, %v187
      %v276 = vpack.c.bf16 %v192, %v190
      %v277 = vpack.c.bf16 %v193, %v191
      %v278 = vpack.c.bf16 %v196, %v194
      %v279 = vpack.c.bf16 %v197, %v195
      %v280 = vpack.c.bf16 %v200, %v198
      %v281 = vpack.c.bf16 %v201, %v199
      %v282 = vpack.c.bf16 %v204, %v202
      %v283 = vpack.c.bf16 %v205, %v203
      %v284 = vpack.c.bf16 %v208, %v206
      %v285 = vpack.c.bf16 %v209, %v207
      %v286 = vpack.c.bf16 %v212, %v210
      %v287 = vpack.c.bf16 %v213, %v211
      %v288 = vpack.c.bf16 %v216, %v214
      %v289 = vpack.c.bf16 %v217, %v215
      %v290 = vpack.c.bf16 %v220, %v218
      %v291 = vpack.c.bf16 %v221, %v219
      %v292 = vpack.c.bf16 %v224, %v222
      %v293 = vpack.c.bf16 %v225, %v223
      %v294 = vpack.c.bf16 %v228, %v226
      %v295 = vpack.c.bf16 %v229, %v227
      %v296 = vpack.c.bf16 %v232, %v230
      %v297 = vpack.c.bf16 %v233, %v231
      %v298 = vpack.c.bf16 %v236, %v234
      %v299 = vpack.c.bf16 %v237, %v235
      %v300 = vpack.c.bf16 %v240, %v238
      %v301 = vpack.c.bf16 %v241, %v239
      %v302 = vpack.c.bf16 %v244, %v242
      %v303 = vpack.c.bf16 %v245, %v243
      %v304 = vpack.c.bf16 %v248, %v246
      %v305 = vpack.c.bf16 %v249, %v247
      %v306 = vpack.c.bf16 %v252, %v250
      %v307 = vpack.c.bf16 %v253, %v251
      %v308 = vpack.c.bf16 %v256, %v254
      %v309 = vpack.c.bf16 %v257, %v255
      %v310 = vpack.c.bf16 %v260, %v258
      %v311 = vpack.c.bf16 %v261, %v259
      %v312 = vpack.c.bf16 %v264, %v262
      %v313 = vpack.c.bf16 %v265, %v263
      %v314 = vpack.c.bf16 %v268, %v266
      %v315 = vpack.c.bf16 %v269, %v267
      %v316 = vld [vmem:[%s1] sm:$0xf]
      %v317 = vld [vmem:[%s1 + $0x4] sm:$0xf]
      %v318 = vld [vmem:[%s1 + $0x8] sm:$0xf]
      %v319 = vld [vmem:[%s1 + $0xc] sm:$0xf]
      %v320 = vld [vmem:[%s1 + $0x10] sm:$0xf]
      %v321 = vld [vmem:[%s1 + $0x14] sm:$0xf]
      %v322 = vld [vmem:[%s1 + $0x18] sm:$0xf]
      %v323 = vld [vmem:[%s1 + $0x1c] sm:$0xf]
      %v324 = vld [vmem:[%s1 + $0x20] sm:$0xf]
      %v325 = vld [vmem:[%s1 + $0x24] sm:$0xf]
      %v326 = vld [vmem:[%s1 + $0x28] sm:$0xf]
      %v327 = vld [vmem:[%s1 + $0x2c] sm:$0xf]
      %v328 = vld [vmem:[%s1 + $0x30] sm:$0xf]
      %v329 = vld [vmem:[%s1 + $0x34] sm:$0xf]
      %v330 = vld [vmem:[%s1 + $0x38] sm:$0xf]
      %v331 = vld [vmem:[%s1 + $0x3c] sm:$0xf]
      %v332 = vld [vmem:[%s1 + $0x40] sm:$0xf]
      %v333 = vld [vmem:[%s1 + $0x44] sm:$0xf]
      %v334 = vld [vmem:[%s1 + $0x48] sm:$0xf]
      %v335 = vld [vmem:[%s1 + $0x4c] sm:$0xf]
      %v336 = vld [vmem:[%s1 + $0x50] sm:$0xf]
      %v337 = vld [vmem:[%s1 + $0x54] sm:$0xf]
      %v338 = vld [vmem:[%s1 + $0x58] sm:$0xf]
      %v339 = vld [vmem:[%s1 + $0x5c] sm:$0xf]
      %v340 = vld [vmem:[%s1 + $0x60] sm:$0xf]
      %v341 = vld [vmem:[%s1 + $0x64] sm:$0xf]
      %v342 = vld [vmem:[%s1 + $0x68] sm:$0xf]
      %v343 = vld [vmem:[%s1 + $0x6c] sm:$0xf]
      %v344 = vld [vmem:[%s1 + $0x70] sm:$0xf]
      %v345 = vld [vmem:[%s1 + $0x74] sm:$0xf]
      %v346 = vld [vmem:[%s1 + $0x78] sm:$0xf]
      %v347 = vld [vmem:[%s1 + $0x7c] sm:$0xf]
      %v348 = vld [vmem:[%s2] sm:$0x1]
      %v350 = vlaneseq
      %v351 = vshrl.u32 %v350, 7
      %v352 = vsub.s32 0, %v351
      %v353 = vrot.slane %v348, %v352
      %v387 = vunpack.c.l.b16 %v316
      %v388 = vunpack.c.l.b16 %v317
      %v389 = vunpack.c.l.b16 %v318
      %v390 = vunpack.c.l.b16 %v319
      %v391 = vunpack.c.l.b16 %v320
      %v392 = vunpack.c.l.b16 %v321
      %v393 = vunpack.c.l.b16 %v322
      %v394 = vunpack.c.l.b16 %v323
      %v395 = vunpack.c.l.b16 %v324
      %v396 = vunpack.c.l.b16 %v325
      %v397 = vunpack.c.l.b16 %v326
      %v398 = vunpack.c.l.b16 %v327
      %v399 = vunpack.c.l.b16 %v328
      %v400 = vunpack.c.l.b16 %v329
      %v401 = vunpack.c.l.b16 %v330
      %v402 = vunpack.c.l.b16 %v331
      %v403 = vunpack.c.l.b16 %v332
      %v404 = vunpack.c.l.b16 %v333
      %v405 = vunpack.c.l.b16 %v334
      %v406 = vunpack.c.l.b16 %v335
      %v407 = vunpack.c.l.b16 %v336
      %v408 = vunpack.c.l.b16 %v337
      %v409 = vunpack.c.l.b16 %v338
      %v410 = vunpack.c.l.b16 %v339
      %v411 = vunpack.c.l.b16 %v340
      %v412 = vunpack.c.l.b16 %v341
      %v413 = vunpack.c.l.b16 %v342
      %v414 = vunpack.c.l.b16 %v343
      %v415 = vunpack.c.l.b16 %v344
      %v416 = vunpack.c.l.b16 %v345
      %v417 = vunpack.c.l.b16 %v346
      %v418 = vunpack.c.l.b16 %v347
      %v419 = vpack.c.b16 %v388, %v387
      %v420 = vpack.c.b16 %v390, %v389
      %v421 = vpack.c.b16 %v392, %v391
      %v422 = vpack.c.b16 %v394, %v393
      %v423 = vpack.c.b16 %v396, %v395
      %v424 = vpack.c.b16 %v398, %v397
      %v425 = vpack.c.b16 %v400, %v399
      %v426 = vpack.c.b16 %v402, %v401
      %v427 = vpack.c.b16 %v404, %v403
      %v428 = vpack.c.b16 %v406, %v405
      %v429 = vpack.c.b16 %v408, %v407
      %v430 = vpack.c.b16 %v410, %v409
      %v431 = vpack.c.b16 %v412, %v411
      %v432 = vpack.c.b16 %v414, %v413
      %v433 = vpack.c.b16 %v416, %v415
      %v434 = vpack.c.b16 %v418, %v417
      %451 = vmatprep.subr.bf16.mxu0 0
      %452 = vmatpush1.bf16.msra.mxu0 %v419
      %453 = vmatprep.subr.bf16.mxu0 0
      %454 = vmatpush1.bf16.msra.mxu0 %v420
      %455 = vmatprep.subr.bf16.mxu0 0
      %456 = vmatpush1.bf16.msra.mxu0 %v421
      %457 = vmatprep.subr.bf16.mxu0 0
      %458 = vmatpush1.bf16.msra.mxu0 %v422
      %459 = vmatprep.subr.bf16.mxu0 0
      %460 = vmatpush1.bf16.msra.mxu0 %v423
      %461 = vmatprep.subr.bf16.mxu0 0
      %462 = vmatpush1.bf16.msra.mxu0 %v424
      %463 = vmatprep.subr.bf16.mxu0 0
      %464 = vmatpush1.bf16.msra.mxu0 %v425
      %465 = vmatprep.subr.bf16.mxu0 0
      %466 = vmatpush1.bf16.msra.mxu0 %v426
      %467 = vmatprep.subr.bf16.mxu0 0
      %468 = vmatpush1.bf16.msra.mxu0 %v427
      %469 = vmatprep.subr.bf16.mxu0 0
      %470 = vmatpush1.bf16.msra.mxu0 %v428
      %471 = vmatprep.subr.bf16.mxu0 0
      %472 = vmatpush1.bf16.msra.mxu0 %v429
      %473 = vmatprep.subr.bf16.mxu0 0
      %474 = vmatpush1.bf16.msra.mxu0 %v430
      %475 = vmatprep.subr.bf16.mxu0 0
      %476 = vmatpush1.bf16.msra.mxu0 %v431
      %477 = vmatprep.subr.bf16.mxu0 0
      %478 = vmatpush1.bf16.msra.mxu0 %v432
      %479 = vmatprep.subr.bf16.mxu0 0
      %480 = vmatpush1.bf16.msra.mxu0 %v433
      %481 = vmatprep.subr.bf16.mxu0 0
      %482 = vmatpush1.bf16.msra.mxu0 %v434
      %483 = vmatprep.mubr.bf16.mxu0 %v271
      %484 = vmatmul.mubr.bf16.gmra.mrb[0].mxu0 %v270
      %v485 = vpop.f32.mrb[0].mxu0
      %v486 = vadd.f32 %v353, %v485
      %v487 = vpop.f32.mrb[0].mxu0
      %v488 = vpop.f32.mrb[0].mxu0
      %v489 = vadd.f32 %v353, %v488
      %v490 = vpop.f32.mrb[0].mxu0
      %491 = vmatprep.mubr.bf16.mxu0 %v273
      %492 = vmatmul.mubr.bf16.gmra.mrb[0].mxu0 %v272
      %v493 = vpop.f32.mrb[0].mxu0
      %v494 = vadd.f32 %v353, %v493
      %v495 = vpop.f32.mrb[0].mxu0
      %v496 = vpop.f32.mrb[0].mxu0
      %v497 = vadd.f32 %v353, %v496
      %v498 = vpop.f32.mrb[0].mxu0
      %499 = vmatprep.mubr.bf16.mxu0 %v275
      %500 = vmatmul.mubr.bf16.gmra.mrb[0].mxu0 %v274
      %v501 = vpop.f32.mrb[0].mxu0
      %v502 = vadd.f32 %v353, %v501
      %v503 = vpop.f32.mrb[0].mxu0
      %v504 = vpop.f32.mrb[0].mxu0
      %v505 = vadd.f32 %v353, %v504
      %v506 = vpop.f32.mrb[0].mxu0
      %507 = vmatprep.mubr.bf16.mxu0 %v277
      %508 = vmatmul.mubr.bf16.gmra.mrb[0].mxu0 %v276
      %v509 = vpop.f32.mrb[0].mxu0
      %v510 = vadd.f32 %v353, %v509
      %v511 = vpop.f32.mrb[0].mxu0
      %v512 = vpop.f32.mrb[0].mxu0
      %v513 = vadd.f32 %v353, %v512
      %v514 = vpop.f32.mrb[0].mxu0
      %515 = vmatprep.mubr.bf16.mxu0 %v279
      %516 = vmatmul.mubr.bf16.gmra.mrb[0].mxu0 %v278
      %v517 = vpop.f32.mrb[0].mxu0
      %v518 = vadd.f32 %v353, %v517
      %v519 = vpop.f32.mrb[0].mxu0
      %v520 = vpop.f32.mrb[0].mxu0
      %v521 = vadd.f32 %v353, %v520
      %v522 = vpop.f32.mrb[0].mxu0
      %523 = vmatprep.mubr.bf16.mxu0 %v281
      %524 = vmatmul.mubr.bf16.gmra.mrb[0].mxu0 %v280
      %v525 = vpop.f32.mrb[0].mxu0
      %v526 = vadd.f32 %v353, %v525
      %v527 = vpop.f32.mrb[0].mxu0
      %v528 = vpop.f32.mrb[0].mxu0
      %v529 = vadd.f32 %v353, %v528
      %v530 = vpop.f32.mrb[0].mxu0
      %531 = vmatprep.mubr.bf16.mxu0 %v283
      %532 = vmatmul.mubr.bf16.gmra.mrb[0].mxu0 %v282
      %v533 = vpop.f32.mrb[0].mxu0
      %v534 = vadd.f32 %v353, %v533
      %v535 = vpop.f32.mrb[0].mxu0
      %v536 = vpop.f32.mrb[0].mxu0
      %v537 = vadd.f32 %v353, %v536
      %v538 = vpop.f32.mrb[0].mxu0
      %539 = vmatprep.mubr.bf16.mxu0 %v285
      %540 = vmatmul.mubr.bf16.gmra.mrb[0].mxu0 %v284
      %v541 = vpop.f32.mrb[0].mxu0
      %v542 = vadd.f32 %v353, %v541
      %v543 = vpop.f32.mrb[0].mxu0
      %v544 = vpop.f32.mrb[0].mxu0
      %v545 = vadd.f32 %v353, %v544
      %v546 = vpop.f32.mrb[0].mxu0
      %547 = vmatprep.mubr.bf16.mxu0 %v287
      %548 = vmatmul.mubr.bf16.gmra.mrb[0].mxu0 %v286
      %v549 = vpop.f32.mrb[0].mxu0
      %v550 = vadd.f32 %v353, %v549
      %v551 = vpop.f32.mrb[0].mxu0
      %v552 = vpop.f32.mrb[0].mxu0
      %v553 = vadd.f32 %v353, %v552
      %v554 = vpop.f32.mrb[0].mxu0
      %555 = vmatprep.mubr.bf16.mxu0 %v289
      %556 = vmatmul.mubr.bf16.gmra.mrb[0].mxu0 %v288
      %v557 = vpop.f32.mrb[0].mxu0
      %v558 = vadd.f32 %v353, %v557
      %v559 = vpop.f32.mrb[0].mxu0
      %v560 = vpop.f32.mrb[0].mxu0
      %v561 = vadd.f32 %v353, %v560
      %v562 = vpop.f32.mrb[0].mxu0
      %563 = vmatprep.mubr.bf16.mxu0 %v291
      %564 = vmatmul.mubr.bf16.gmra.mrb[0].mxu0 %v290
      %v565 = vpop.f32.mrb[0].mxu0
      %v566 = vadd.f32 %v353, %v565
      %v567 = vpop.f32.mrb[0].mxu0
      %v568 = vpop.f32.mrb[0].mxu0
      %v569 = vadd.f32 %v353, %v568
      %v570 = vpop.f32.mrb[0].mxu0
      %571 = vmatprep.mubr.bf16.mxu0 %v293
      %572 = vmatmul.mubr.bf16.gmra.mrb[0].mxu0 %v292
      %v573 = vpop.f32.mrb[0].mxu0
      %v574 = vadd.f32 %v353, %v573
      %v575 = vpop.f32.mrb[0].mxu0
      %v576 = vpop.f32.mrb[0].mxu0
      %v577 = vadd.f32 %v353, %v576
      %v578 = vpop.f32.mrb[0].mxu0
      %579 = vmatprep.mubr.bf16.mxu0 %v295
      %580 = vmatmul.mubr.bf16.gmra.mrb[0].mxu0 %v294
      %v581 = vpop.f32.mrb[0].mxu0
      %v582 = vadd.f32 %v353, %v581
      %v583 = vpop.f32.mrb[0].mxu0
      %v584 = vpop.f32.mrb[0].mxu0
      %v585 = vadd.f32 %v353, %v584
      %v586 = vpop.f32.mrb[0].mxu0
      %587 = vmatprep.mubr.bf16.mxu0 %v297
      %588 = vmatmul.mubr.bf16.gmra.mrb[0].mxu0 %v296
      %v589 = vpop.f32.mrb[0].mxu0
      %v590 = vadd.f32 %v353, %v589
      %v591 = vpop.f32.mrb[0].mxu0
      %v592 = vpop.f32.mrb[0].mxu0
      %v593 = vadd.f32 %v353, %v592
      %v594 = vpop.f32.mrb[0].mxu0
      %595 = vmatprep.mubr.bf16.mxu0 %v299
      %596 = vmatmul.mubr.bf16.gmra.mrb[0].mxu0 %v298
      %v597 = vpop.f32.mrb[0].mxu0
      %v598 = vadd.f32 %v353, %v597
      %v599 = vpop.f32.mrb[0].mxu0
      %v600 = vpop.f32.mrb[0].mxu0
      %v601 = vadd.f32 %v353, %v600
      %v602 = vpop.f32.mrb[0].mxu0
      %603 = vmatprep.mubr.bf16.mxu0 %v301
      %604 = vmatmul.mubr.bf16.gmra.mrb[0].mxu0 %v300
      %v605 = vpop.f32.mrb[0].mxu0
      %v606 = vadd.f32 %v353, %v605
      %v607 = vpop.f32.mrb[0].mxu0
      %v608 = vpop.f32.mrb[0].mxu0
      %v609 = vadd.f32 %v353, %v608
      %v610 = vpop.f32.mrb[0].mxu0
      %611 = vmatprep.mubr.bf16.mxu0 %v303
      %612 = vmatmul.mubr.bf16.gmra.mrb[0].mxu0 %v302
      %v613 = vpop.f32.mrb[0].mxu0
      %v614 = vadd.f32 %v353, %v613
      %v615 = vpop.f32.mrb[0].mxu0
      %v616 = vpop.f32.mrb[0].mxu0
      %v617 = vadd.f32 %v353, %v616
      %v618 = vpop.f32.mrb[0].mxu0
      %619 = vmatprep.mubr.bf16.mxu0 %v305
      %620 = vmatmul.mubr.bf16.gmra.mrb[0].mxu0 %v304
      %v621 = vpop.f32.mrb[0].mxu0
      %v622 = vadd.f32 %v353, %v621
      %v623 = vpop.f32.mrb[0].mxu0
      %v624 = vpop.f32.mrb[0].mxu0
      %v625 = vadd.f32 %v353, %v624
      %v626 = vpop.f32.mrb[0].mxu0
      %627 = vmatprep.mubr.bf16.mxu0 %v307
      %628 = vmatmul.mubr.bf16.gmra.mrb[0].mxu0 %v306
      %v629 = vpop.f32.mrb[0].mxu0
      %v630 = vadd.f32 %v353, %v629
      %v631 = vpop.f32.mrb[0].mxu0
      %v632 = vpop.f32.mrb[0].mxu0
      %v633 = vadd.f32 %v353, %v632
      %v634 = vpop.f32.mrb[0].mxu0
      %635 = vmatprep.mubr.bf16.mxu0 %v309
      %636 = vmatmul.mubr.bf16.gmra.mrb[0].mxu0 %v308
      %v637 = vpop.f32.mrb[0].mxu0
      %v638 = vadd.f32 %v353, %v637
      %v639 = vpop.f32.mrb[0].mxu0
      %v640 = vpop.f32.mrb[0].mxu0
      %v641 = vadd.f32 %v353, %v640
      %v642 = vpop.f32.mrb[0].mxu0
      %643 = vmatprep.mubr.bf16.mxu0 %v311
      %644 = vmatmul.mubr.bf16.gmra.mrb[0].mxu0 %v310
      %v645 = vpop.f32.mrb[0].mxu0
      %v646 = vadd.f32 %v353, %v645
      %v647 = vpop.f32.mrb[0].mxu0
      %v648 = vpop.f32.mrb[0].mxu0
      %v649 = vadd.f32 %v353, %v648
      %v650 = vpop.f32.mrb[0].mxu0
      %651 = vmatprep.mubr.bf16.mxu0 %v313
      %652 = vmatmul.mubr.bf16.gmra.mrb[0].mxu0 %v312
      %v653 = vpop.f32.mrb[0].mxu0
      %v654 = vadd.f32 %v353, %v653
      %v655 = vpop.f32.mrb[0].mxu0
      %v656 = vpop.f32.mrb[0].mxu0
      %v657 = vadd.f32 %v353, %v656
      %v658 = vpop.f32.mrb[0].mxu0
      %659 = vmatprep.mubr.bf16.mxu0 %v315
      %660 = vmatmul.mubr.bf16.gmra.mrb[0].mxu0 %v314
      %v661 = vpop.f32.mrb[0].mxu0
      %v662 = vadd.f32 %v353, %v661
      %v663 = vpop.f32.mrb[0].mxu0
      %v664 = vpop.f32.mrb[0].mxu0
      %v665 = vadd.f32 %v353, %v664
      %v666 = vpop.f32.mrb[0].mxu0
      %667 = vdwg.mxu0
      %v668 = vmax.f32 %v486, 0.0
      %v669 = vmax.f32 %v489, 0.0
      %v670 = vmax.f32 %v494, 0.0
      %v671 = vmax.f32 %v497, 0.0
      %v672 = vmax.f32 %v502, 0.0
      %v673 = vmax.f32 %v505, 0.0
      %v674 = vmax.f32 %v510, 0.0
      %v675 = vmax.f32 %v513, 0.0
      %v676 = vmax.f32 %v518, 0.0
      %v677 = vmax.f32 %v521, 0.0
      %v678 = vmax.f32 %v526, 0.0
      %v679 = vmax.f32 %v529, 0.0
      %v680 = vmax.f32 %v534, 0.0
      %v681 = vmax.f32 %v537, 0.0
      %v682 = vmax.f32 %v542, 0.0
      %v683 = vmax.f32 %v545, 0.0
      %v684 = vmax.f32 %v550, 0.0
      %v685 = vmax.f32 %v553, 0.0
      %v686 = vmax.f32 %v558, 0.0
      %v687 = vmax.f32 %v561, 0.0
      %v688 = vmax.f32 %v566, 0.0
      %v689 = vmax.f32 %v569, 0.0
      %v690 = vmax.f32 %v574, 0.0
      %v691 = vmax.f32 %v577, 0.0
      %v692 = vmax.f32 %v582, 0.0
      %v693 = vmax.f32 %v585, 0.0
      %v694 = vmax.f32 %v590, 0.0
      %v695 = vmax.f32 %v593, 0.0
      %v696 = vmax.f32 %v598, 0.0
      %v697 = vmax.f32 %v601, 0.0
      %v698 = vmax.f32 %v606, 0.0
      %v699 = vmax.f32 %v609, 0.0
      %v700 = vmax.f32 %v614, 0.0
      %v701 = vmax.f32 %v617, 0.0
      %v702 = vmax.f32 %v622, 0.0
      %v703 = vmax.f32 %v625, 0.0
      %v704 = vmax.f32 %v630, 0.0
      %v705 = vmax.f32 %v633, 0.0
      %v706 = vmax.f32 %v638, 0.0
      %v707 = vmax.f32 %v641, 0.0
      %v708 = vmax.f32 %v646, 0.0
      %v709 = vmax.f32 %v649, 0.0
      %v710 = vmax.f32 %v654, 0.0
      %v711 = vmax.f32 %v657, 0.0
      %v712 = vmax.f32 %v662, 0.0
      %v713 = vmax.f32 %v665, 0.0
      %714 = vst [vmem:[%s175] sm:$0xff] %v668
      %715 = vst [vmem:[%s175 + $0x8] sm:$0xff] %v669
      %716 = vst [vmem:[%s175 + $0x10] sm:$0xff] %v670
      %717 = vst [vmem:[%s175 + $0x18] sm:$0xff] %v671
      %718 = vst [vmem:[%s175 + $0x20] sm:$0xff] %v672
      %719 = vst [vmem:[%s175 + $0x28] sm:$0xff] %v673
      %720 = vst [vmem:[%s175 + $0x30] sm:$0xff] %v674
      %721 = vst [vmem:[%s175 + $0x38] sm:$0xff] %v675
      %722 = vst [vmem:[%s175 + $0x40] sm:$0xff] %v676
      %723 = vst [vmem:[%s175 + $0x48] sm:$0xff] %v677
      %724 = vst [vmem:[%s175 + $0x50] sm:$0xff] %v678
      %725 = vst [vmem:[%s175 + $0x58] sm:$0xff] %v679
      %726 = vst [vmem:[%s175 + $0x60] sm:$0xff] %v680
      %727 = vst [vmem:[%s175 + $0x68] sm:$0xff] %v681
      %728 = vst [vmem:[%s175 + $0x70] sm:$0xff] %v682
      %729 = vst [vmem:[%s175 + $0x78] sm:$0xff] %v683
      %730 = vst [vmem:[%s175 + $0x80] sm:$0xff] %v684
      %731 = vst [vmem:[%s175 + $0x88] sm:$0xff] %v685
      %732 = vst [vmem:[%s175 + $0x90] sm:$0xff] %v686
      %733 = vst [vmem:[%s175 + $0x98] sm:$0xff] %v687
      %734 = vst [vmem:[%s175 + $0xa0] sm:$0xff] %v688
      %735 = vst [vmem:[%s175 + $0xa8] sm:$0xff] %v689
      %736 = vst [vmem:[%s175 + $0xb0] sm:$0xff] %v690
      %737 = vst [vmem:[%s175 + $0xb8] sm:$0xff] %v691
      %738 = vst [vmem:[%s175 + $0xc0] sm:$0xff] %v692
      %739 = vst [vmem:[%s175 + $0xc8] sm:$0xff] %v693
      %740 = vst [vmem:[%s175 + $0xd0] sm:$0xff] %v694
      %741 = vst [vmem:[%s175 + $0xd8] sm:$0xff] %v695
      %742 = vst [vmem:[%s175 + $0xe0] sm:$0xff] %v696
      %743 = vst [vmem:[%s175 + $0xe8] sm:$0xff] %v697
      %744 = vst [vmem:[%s175 + $0xf0] sm:$0xff] %v698
      %745 = vst [vmem:[%s175 + $0xf8] sm:$0xff] %v699
      %746 = vst [vmem:[%s175 + $0x100] sm:$0xff] %v700
      %747 = vst [vmem:[%s175 + $0x108] sm:$0xff] %v701
      %748 = vst [vmem:[%s175 + $0x110] sm:$0xff] %v702
      %749 = vst [vmem:[%s175 + $0x118] sm:$0xff] %v703
      %750 = vst [vmem:[%s175 + $0x120] sm:$0xff] %v704
      %751 = vst [vmem:[%s175 + $0x128] sm:$0xff] %v705
      %752 = vst [vmem:[%s175 + $0x130] sm:$0xff] %v706
      %753 = vst [vmem:[%s175 + $0x138] sm:$0xff] %v707
      %754 = vst [vmem:[%s175 + $0x140] sm:$0xff] %v708
      %755 = vst [vmem:[%s175 + $0x148] sm:$0xff] %v709
      %756 = vst [vmem:[%s175 + $0x150] sm:$0xff] %v710
      %757 = vst [vmem:[%s175 + $0x158] sm:$0xff] %v711
      %758 = vst [vmem:[%s175 + $0x160] sm:$0xff] %v712
      %759 = vst [vmem:[%s175 + $0x168] sm:$0xff] %v713
      %s760 = smul.u32 46, %s14
      %p761 = scmp.lt.s32.totalorder %s760, 91
      %s762 = scalar_select %p761, %s760, 91
      %s763 = smul.addr %s762, 8
      %s764 = scalar_lea.vmem %s3, %s763
      // Predicated region
      $region33: #{cnn_policy_forward.4} parent=31 // pred_check
        %p765 = pneg %p100
      $region34: #{cnn_policy_forward.4} parent=31 // pred_check_branch
        %767 = sbr.rel (%p765) target = $region36
      $region35: #{cnn_policy_forward.4} parent=31 // pred_region
        %s768 = smul.u32 46, %s14
      $region36: #{cnn_policy_forward.4} parent=31 // pred_fallthru
        _
    $region32: #{cnn_policy_forward.4} parent=5 // pred_fallthru
      _
    %p769 = scmp.le.s32.totalorder 2, %s9
    // Predicated region
    $region37: #{cnn_policy_forward.4} parent=5 // pred_check
      %p770 = pneg %p769
    $region38: #{cnn_policy_forward.4} parent=5 // pred_check_branch
      %772 = sbr.rel (%p770) target = $region40
    $region39: #{cnn_policy_forward.4} parent=5 // pred_region
      %s773 = ssub.s32 %s9, 2
      // Predicated region
      $region41: #{cnn_policy_forward.4} parent=39 // pred_check
        %p774 = pneg %p106
      $region42: #{cnn_policy_forward.4} parent=39 // pred_check_branch
        %776 = sbr.rel (%p774) target = $region44
      $region43: #{cnn_policy_forward.4} parent=39 // pred_region
        %s777 = smul.u32 46, %s15
        %p778 = scmp.lt.s32.totalorder %s777, 91
        %s779 = scalar_select %p778, %s777, 91
        %s780 = smul.addr %s779, 8
        %s781 = scalar_lea.vmem %s3, %s780
      $region44: #{cnn_policy_forward.4} parent=39 // pred_fallthru
        _
    $region40: #{cnn_policy_forward.4} parent=5 // pred_fallthru
      _
  $region6: #{cnn_policy_forward.4} parent=0 // loop_footer
    %s13 = sadd.s32 1, %s9
  $region7: #{cnn_policy_forward.4} parent=0 // loop_footer_branch
    %8 = sbr.rel target = $region3
  $region8: #{cnn_policy_forward.4} parent=0 // loop_exit
    _

// kernel: cnn_policy_forward.5
$region0: #{cnn_policy_forward.5}
  #allocation0 [shape = 'u32[]', space=smem, size = 0x4, offset = 0x4, fixed_abs, tag = 'smem constant byte address 0x4 - core index']
  #allocation1 [shape = 'u32[144,128]{1,0:T(1,128)}', space=vmem, size = 0x12000, scoped, tag = 'internal scratch']
  %s0 = inlined_call_operand.vmem [shape: f32[128,512], index: 0, kind: input, shape index: {}]
  %s1 = inlined_call_operand.vmem [shape: bf16[512,128], index: 1, kind: input, shape index: {}]
  %s2 = inlined_call_operand.vmem [shape: f32[1,128], index: 2, kind: input, shape index: {}]
  %s3 = inlined_call_operand.vmem [shape: f32[128,128], index: 3, kind: output, shape index: {}]
  %s4 = sld [smem:[#allocation0]]
  $region22: #{cnn_policy_forward.5} parent=0
    _
  %s6 = ssub.s32 1, %s4
  %s7 = scalar_select 0, %s6, %s4
  // Predicated region
  $region2: #{cnn_policy_forward.5} parent=0 // pred_check
    _
  $region3: #{cnn_policy_forward.5} parent=0 // pred_check_branch
    %9 = sbr.rel (0) target = $region5
  $region4: #{cnn_policy_forward.5} parent=0 // pred_region
    _
  $region5: #{cnn_policy_forward.5} parent=0 // pred_fallthru
    _
  // Predicated region
  $region6: #{cnn_policy_forward.5} parent=0 // pred_check
    _
  $region7: #{cnn_policy_forward.5} parent=0 // pred_check_branch
    %11 = sbr.rel (0) target = $region9
  $region8: #{cnn_policy_forward.5} parent=0 // pred_region
    _
  $region9: #{cnn_policy_forward.5} parent=0 // pred_fallthru
    _
  // Predicated region
  $region10: #{cnn_policy_forward.5} parent=0 // pred_check
    _
  $region11: #{cnn_policy_forward.5} parent=0 // pred_check_branch
    %13 = sbr.rel (0) target = $region13
  $region12: #{cnn_policy_forward.5} parent=0 // pred_region
    _
  $region13: #{cnn_policy_forward.5} parent=0 // pred_fallthru
    _
  %v15 = vld [vmem:[%s0] sm:$0xff]
  %v16 = vld [vmem:[%s0 + $0x8] sm:$0xff]
  %v17 = vld [vmem:[%s0 + $0x10] sm:$0xff]
  %v18 = vld [vmem:[%s0 + $0x18] sm:$0xff]
  %v19 = vld [vmem:[%s0 + $0x20] sm:$0xff]
  %v20 = vld [vmem:[%s0 + $0x28] sm:$0xff]
  %v21 = vld [vmem:[%s0 + $0x30] sm:$0xff]
  %v22 = vld [vmem:[%s0 + $0x38] sm:$0xff]
  %v23 = vld [vmem:[%s0 + $0x40] sm:$0xff]
  %v24 = vld [vmem:[%s0 + $0x48] sm:$0xff]
  %v25 = vld [vmem:[%s0 + $0x50] sm:$0xff]
  %v26 = vld [vmem:[%s0 + $0x58] sm:$0xff]
  %v27 = vld [vmem:[%s0 + $0x60] sm:$0xff]
  %v28 = vld [vmem:[%s0 + $0x68] sm:$0xff]
  %v29 = vld [vmem:[%s0 + $0x70] sm:$0xff]
  %v30 = vld [vmem:[%s0 + $0x78] sm:$0xff]
  %v31 = vld [vmem:[%s0 + $0x80] sm:$0xff]
  %v32 = vld [vmem:[%s0 + $0x88] sm:$0xff]
  %v33 = vld [vmem:[%s0 + $0x90] sm:$0xff]
  %v34 = vld [vmem:[%s0 + $0x98] sm:$0xff]
  %v35 = vld [vmem:[%s0 + $0xa0] sm:$0xff]
  %v36 = vld [vmem:[%s0 + $0xa8] sm:$0xff]
  %v37 = vld [vmem:[%s0 + $0xb0] sm:$0xff]
  %v38 = vld [vmem:[%s0 + $0xb8] sm:$0xff]
  %v39 = vld [vmem:[%s0 + $0xc0] sm:$0xff]
  %v40 = vld [vmem:[%s0 + $0xc8] sm:$0xff]
  %v41 = vld [vmem:[%s0 + $0xd0] sm:$0xff]
  %v42 = vld [vmem:[%s0 + $0xd8] sm:$0xff]
  %v43 = vld [vmem:[%s0 + $0xe0] sm:$0xff]
  %v44 = vld [vmem:[%s0 + $0xe8] sm:$0xff]
  %v45 = vld [vmem:[%s0 + $0xf0] sm:$0xff]
  %v46 = vld [vmem:[%s0 + $0xf8] sm:$0xff]
  %v47 = vld [vmem:[%s0 + $0x100] sm:$0xff]
  %v48 = vld [vmem:[%s0 + $0x108] sm:$0xff]
  %v49 = vld [vmem:[%s0 + $0x110] sm:$0xff]
  %v50 = vld [vmem:[%s0 + $0x118] sm:$0xff]
  %v51 = vld [vmem:[%s0 + $0x120] sm:$0xff]
  %v52 = vld [vmem:[%s0 + $0x128] sm:$0xff]
  %v53 = vld [vmem:[%s0 + $0x130] sm:$0xff]
  %v54 = vld [vmem:[%s0 + $0x138] sm:$0xff]
  %v55 = vld [vmem:[%s0 + $0x140] sm:$0xff]
  %v56 = vld [vmem:[%s0 + $0x148] sm:$0xff]
  %v57 = vld [vmem:[%s0 + $0x150] sm:$0xff]
  %v58 = vld [vmem:[%s0 + $0x158] sm:$0xff]
  %v59 = vld [vmem:[%s0 + $0x160] sm:$0xff]
  %v60 = vld [vmem:[%s0 + $0x168] sm:$0xff]
  %v61 = vld [vmem:[%s0 + $0x170] sm:$0xff]
  %v62 = vld [vmem:[%s0 + $0x178] sm:$0xff]
  %v63 = vld [vmem:[%s0 + $0x180] sm:$0xff]
  %v64 = vld [vmem:[%s0 + $0x188] sm:$0xff]
  %v65 = vld [vmem:[%s0 + $0x190] sm:$0xff]
  %v66 = vld [vmem:[%s0 + $0x198] sm:$0xff]
  %v67 = vld [vmem:[%s0 + $0x1a0] sm:$0xff]
  %v68 = vld [vmem:[%s0 + $0x1a8] sm:$0xff]
  %v69 = vld [vmem:[%s0 + $0x1b0] sm:$0xff]
  %v70 = vld [vmem:[%s0 + $0x1b8] sm:$0xff]
  %v71 = vld [vmem:[%s0 + $0x1c0] sm:$0xff]
  %v72 = vld [vmem:[%s0 + $0x1c8] sm:$0xff]
  %v73 = vld [vmem:[%s0 + $0x1d0] sm:$0xff]
  %v74 = vld [vmem:[%s0 + $0x1d8] sm:$0xff]
  %v75 = vld [vmem:[%s0 + $0x1e0] sm:$0xff]
  %v76 = vld [vmem:[%s0 + $0x1e8] sm:$0xff]
  %v77 = vld [vmem:[%s0 + $0x1f0] sm:$0xff]
  %v78 = vld [vmem:[%s0 + $0x1f8] sm:$0xff]
  %v79 = vpack.c.bf16 %v19, %v15
  %v80 = vpack.c.bf16 %v20, %v16
  %v81 = vpack.c.bf16 %v21, %v17
  %v82 = vpack.c.bf16 %v22, %v18
  %v83 = vpack.c.bf16 %v27, %v23
  %v84 = vpack.c.bf16 %v28, %v24
  %v85 = vpack.c.bf16 %v29, %v25
  %v86 = vpack.c.bf16 %v30, %v26
  %v87 = vpack.c.bf16 %v35, %v31
  %v88 = vpack.c.bf16 %v36, %v32
  %v89 = vpack.c.bf16 %v37, %v33
  %v90 = vpack.c.bf16 %v38, %v34
  %v91 = vpack.c.bf16 %v43, %v39
  %v92 = vpack.c.bf16 %v44, %v40
  %v93 = vpack.c.bf16 %v45, %v41
  %v94 = vpack.c.bf16 %v46, %v42
  %v95 = vpack.c.bf16 %v51, %v47
  %v96 = vpack.c.bf16 %v52, %v48
  %v97 = vpack.c.bf16 %v53, %v49
  %v98 = vpack.c.bf16 %v54, %v50
  %v99 = vpack.c.bf16 %v59, %v55
  %v100 = vpack.c.bf16 %v60, %v56
  %v101 = vpack.c.bf16 %v61, %v57
  %v102 = vpack.c.bf16 %v62, %v58
  %v103 = vpack.c.bf16 %v67, %v63
  %v104 = vpack.c.bf16 %v68, %v64
  %v105 = vpack.c.bf16 %v69, %v65
  %v106 = vpack.c.bf16 %v70, %v66
  %v107 = vpack.c.bf16 %v75, %v71
  %v108 = vpack.c.bf16 %v76, %v72
  %v109 = vpack.c.bf16 %v77, %v73
  %v110 = vpack.c.bf16 %v78, %v74
  %v111 = vld [vmem:[%s1] sm:$0xf]
  %v112 = vld [vmem:[%s1 + $0x4] sm:$0xf]
  %v113 = vld [vmem:[%s1 + $0x8] sm:$0xf]
  %v114 = vld [vmem:[%s1 + $0xc] sm:$0xf]
  %v115 = vld [vmem:[%s1 + $0x10] sm:$0xf]
  %v116 = vld [vmem:[%s1 + $0x14] sm:$0xf]
  %v117 = vld [vmem:[%s1 + $0x18] sm:$0xf]
  %v118 = vld [vmem:[%s1 + $0x1c] sm:$0xf]
  %v119 = vld [vmem:[%s1 + $0x20] sm:$0xf]
  %v120 = vld [vmem:[%s1 + $0x24] sm:$0xf]
  %v121 = vld [vmem:[%s1 + $0x28] sm:$0xf]
  %v122 = vld [vmem:[%s1 + $0x2c] sm:$0xf]
  %v123 = vld [vmem:[%s1 + $0x30] sm:$0xf]
  %v124 = vld [vmem:[%s1 + $0x34] sm:$0xf]
  %v125 = vld [vmem:[%s1 + $0x38] sm:$0xf]
  %v126 = vld [vmem:[%s1 + $0x3c] sm:$0xf]
  %v127 = vld [vmem:[%s1 + $0x40] sm:$0xf]
  %v128 = vld [vmem:[%s1 + $0x44] sm:$0xf]
  %v129 = vld [vmem:[%s1 + $0x48] sm:$0xf]
  %v130 = vld [vmem:[%s1 + $0x4c] sm:$0xf]
  %v131 = vld [vmem:[%s1 + $0x50] sm:$0xf]
  %v132 = vld [vmem:[%s1 + $0x54] sm:$0xf]
  %v133 = vld [vmem:[%s1 + $0x58] sm:$0xf]
  %v134 = vld [vmem:[%s1 + $0x5c] sm:$0xf]
  %v135 = vld [vmem:[%s1 + $0x60] sm:$0xf]
  %v136 = vld [vmem:[%s1 + $0x64] sm:$0xf]
  %v137 = vld [vmem:[%s1 + $0x68] sm:$0xf]
  %v138 = vld [vmem:[%s1 + $0x6c] sm:$0xf]
  %v139 = vld [vmem:[%s1 + $0x70] sm:$0xf]
  %v140 = vld [vmem:[%s1 + $0x74] sm:$0xf]
  %v141 = vld [vmem:[%s1 + $0x78] sm:$0xf]
  %v142 = vld [vmem:[%s1 + $0x7c] sm:$0xf]
  %v143 = vld [vmem:[%s1 + $0x80] sm:$0xf]
  %v144 = vld [vmem:[%s1 + $0x84] sm:$0xf]
  %v145 = vld [vmem:[%s1 + $0x88] sm:$0xf]
  %v146 = vld [vmem:[%s1 + $0x8c] sm:$0xf]
  %v147 = vld [vmem:[%s1 + $0x90] sm:$0xf]
  %v148 = vld [vmem:[%s1 + $0x94] sm:$0xf]
  %v149 = vld [vmem:[%s1 + $0x98] sm:$0xf]
  %v150 = vld [vmem:[%s1 + $0x9c] sm:$0xf]
  %v151 = vld [vmem:[%s1 + $0xa0] sm:$0xf]
  %v152 = vld [vmem:[%s1 + $0xa4] sm:$0xf]
  %v153 = vld [vmem:[%s1 + $0xa8] sm:$0xf]
  %v154 = vld [vmem:[%s1 + $0xac] sm:$0xf]
  %v155 = vld [vmem:[%s1 + $0xb0] sm:$0xf]
  %v156 = vld [vmem:[%s1 + $0xb4] sm:$0xf]
  %v157 = vld [vmem:[%s1 + $0xb8] sm:$0xf]
  %v158 = vld [vmem:[%s1 + $0xbc] sm:$0xf]
  %v159 = vld [vmem:[%s1 + $0xc0] sm:$0xf]
  %v160 = vld [vmem:[%s1 + $0xc4] sm:$0xf]
  %v161 = vld [vmem:[%s1 + $0xc8] sm:$0xf]
  %v162 = vld [vmem:[%s1 + $0xcc] sm:$0xf]
  %v163 = vld [vmem:[%s1 + $0xd0] sm:$0xf]
  %v164 = vld [vmem:[%s1 + $0xd4] sm:$0xf]
  %v165 = vld [vmem:[%s1 + $0xd8] sm:$0xf]
  %v166 = vld [vmem:[%s1 + $0xdc] sm:$0xf]
  %v167 = vld [vmem:[%s1 + $0xe0] sm:$0xf]
  %v168 = vld [vmem:[%s1 + $0xe4] sm:$0xf]
  %v169 = vld [vmem:[%s1 + $0xe8] sm:$0xf]
  %v170 = vld [vmem:[%s1 + $0xec] sm:$0xf]
  %v171 = vld [vmem:[%s1 + $0xf0] sm:$0xf]
  %v172 = vld [vmem:[%s1 + $0xf4] sm:$0xf]
  %v173 = vld [vmem:[%s1 + $0xf8] sm:$0xf]
  %v174 = vld [vmem:[%s1 + $0xfc] sm:$0xf]
  %v175 = vld [vmem:[%s2] sm:$0x1]
  %v177 = vlaneseq
  %v178 = vshrl.u32 %v177, 7
  %v179 = vsub.s32 0, %v178
  %v180 = vrot.slane %v175, %v179
  %v246 = vunpack.c.l.b16 %v111
  %v247 = vunpack.c.l.b16 %v112
  %v248 = vunpack.c.l.b16 %v113
  %v249 = vunpack.c.l.b16 %v114
  %v250 = vunpack.c.l.b16 %v115
  %v251 = vunpack.c.l.b16 %v116
  %v252 = vunpack.c.l.b16 %v117
  %v253 = vunpack.c.l.b16 %v118
  %v254 = vunpack.c.l.b16 %v119
  %v255 = vunpack.c.l.b16 %v120
  %v256 = vunpack.c.l.b16 %v121
  %v257 = vunpack.c.l.b16 %v122
  %v258 = vunpack.c.l.b16 %v123
  %v259 = vunpack.c.l.b16 %v124
  %v260 = vunpack.c.l.b16 %v125
  %v261 = vunpack.c.l.b16 %v126
  %v262 = vunpack.c.l.b16 %v127
  %v263 = vunpack.c.l.b16 %v128
  %v264 = vunpack.c.l.b16 %v129
  %v265 = vunpack.c.l.b16 %v130
  %v266 = vunpack.c.l.b16 %v131
  %v267 = vunpack.c.l.b16 %v132
  %v268 = vunpack.c.l.b16 %v133
  %v269 = vunpack.c.l.b16 %v134
  %v270 = vunpack.c.l.b16 %v135
  %v271 = vunpack.c.l.b16 %v136
  %v272 = vunpack.c.l.b16 %v137
  %v273 = vunpack.c.l.b16 %v138
  %v274 = vunpack.c.l.b16 %v139
  %v275 = vunpack.c.l.b16 %v140
  %v276 = vunpack.c.l.b16 %v141
  %v277 = vunpack.c.l.b16 %v142
  %v278 = vunpack.c.l.b16 %v143
  %v279 = vunpack.c.l.b16 %v144
  %v280 = vunpack.c.l.b16 %v145
  %v281 = vunpack.c.l.b16 %v146
  %v282 = vunpack.c.l.b16 %v147
  %v283 = vunpack.c.l.b16 %v148
  %v284 = vunpack.c.l.b16 %v149
  %v285 = vunpack.c.l.b16 %v150
  %v286 = vunpack.c.l.b16 %v151
  %v287 = vunpack.c.l.b16 %v152
  %v288 = vunpack.c.l.b16 %v153
  %v289 = vunpack.c.l.b16 %v154
  %v290 = vunpack.c.l.b16 %v155
  %v291 = vunpack.c.l.b16 %v156
  %v292 = vunpack.c.l.b16 %v157
  %v293 = vunpack.c.l.b16 %v158
  %v294 = vunpack.c.l.b16 %v159
  %v295 = vunpack.c.l.b16 %v160
  %v296 = vunpack.c.l.b16 %v161
  %v297 = vunpack.c.l.b16 %v162
  %v298 = vunpack.c.l.b16 %v163
  %v299 = vunpack.c.l.b16 %v164
  %v300 = vunpack.c.l.b16 %v165
  %v301 = vunpack.c.l.b16 %v166
  %v302 = vunpack.c.l.b16 %v167
  %v303 = vunpack.c.l.b16 %v168
  %v304 = vunpack.c.l.b16 %v169
  %v305 = vunpack.c.l.b16 %v170
  %v306 = vunpack.c.l.b16 %v171
  %v307 = vunpack.c.l.b16 %v172
  %v308 = vunpack.c.l.b16 %v173
  %v309 = vunpack.c.l.b16 %v174
  %v310 = vpack.c.b16 %v247, %v246
  %v311 = vpack.c.b16 %v249, %v248
  %v312 = vpack.c.b16 %v251, %v250
  %v313 = vpack.c.b16 %v253, %v252
  %v314 = vpack.c.b16 %v255, %v254
  %v315 = vpack.c.b16 %v257, %v256
  %v316 = vpack.c.b16 %v259, %v258
  %v317 = vpack.c.b16 %v261, %v260
  %v318 = vpack.c.b16 %v263, %v262
  %v319 = vpack.c.b16 %v265, %v264
  %v320 = vpack.c.b16 %v267, %v266
  %v321 = vpack.c.b16 %v269, %v268
  %v322 = vpack.c.b16 %v271, %v270
  %v323 = vpack.c.b16 %v273, %v272
  %v324 = vpack.c.b16 %v275, %v274
  %v325 = vpack.c.b16 %v277, %v276
  %v326 = vpack.c.b16 %v279, %v278
  %v327 = vpack.c.b16 %v281, %v280
  %v328 = vpack.c.b16 %v283, %v282
  %v329 = vpack.c.b16 %v285, %v284
  %v330 = vpack.c.b16 %v287, %v286
  %v331 = vpack.c.b16 %v289, %v288
  %v332 = vpack.c.b16 %v291, %v290
  %v333 = vpack.c.b16 %v293, %v292
  %v334 = vpack.c.b16 %v295, %v294
  %v335 = vpack.c.b16 %v297, %v296
  %v336 = vpack.c.b16 %v299, %v298
  %v337 = vpack.c.b16 %v301, %v300
  %v338 = vpack.c.b16 %v303, %v302
  %v339 = vpack.c.b16 %v305, %v304
  %v340 = vpack.c.b16 %v307, %v306
  %v341 = vpack.c.b16 %v309, %v308
  %374 = vmatprep.subr.bf16.mxu0 0
  %375 = vmatpush1.bf16.msra.mxu0 %v310
  %376 = vmatprep.subr.bf16.mxu0 0
  %377 = vmatpush1.bf16.msra.mxu0 %v311
  %378 = vmatprep.subr.bf16.mxu0 0
  %379 = vmatpush1.bf16.msra.mxu0 %v312
  %380 = vmatprep.subr.bf16.mxu0 0
  %381 = vmatpush1.bf16.msra.mxu0 %v313
  %382 = vmatprep.subr.bf16.mxu0 0
  %383 = vmatpush1.bf16.msra.mxu0 %v314
  %384 = vmatprep.subr.bf16.mxu0 0
  %385 = vmatpush1.bf16.msra.mxu0 %v315
  %386 = vmatprep.subr.bf16.mxu0 0
  %387 = vmatpush1.bf16.msra.mxu0 %v316
  %388 = vmatprep.subr.bf16.mxu0 0
  %389 = vmatpush1.bf16.msra.mxu0 %v317
  %390 = vmatprep.subr.bf16.mxu0 0
  %391 = vmatpush1.bf16.msra.mxu0 %v318
  %392 = vmatprep.subr.bf16.mxu0 0
  %393 = vmatpush1.bf16.msra.mxu0 %v319
  %394 = vmatprep.subr.bf16.mxu0 0
  %395 = vmatpush1.bf16.msra.mxu0 %v320
  %396 = vmatprep.subr.bf16.mxu0 0
  %397 = vmatpush1.bf16.msra.mxu0 %v321
  %398 = vmatprep.subr.bf16.mxu0 0
  %399 = vmatpush1.bf16.msra.mxu0 %v322
  %400 = vmatprep.subr.bf16.mxu0 0
  %401 = vmatpush1.bf16.msra.mxu0 %v323
  %402 = vmatprep.subr.bf16.mxu0 0
  %403 = vmatpush1.bf16.msra.mxu0 %v324
  %404 = vmatprep.subr.bf16.mxu0 0
  %405 = vmatpush1.bf16.msra.mxu0 %v325
  %406 = vmatprep.mubr.bf16.mxu0 %v80
  %407 = vmatmul.mubr.bf16.gmra.mrb[0].mxu0 %v79
  %v408 = vpop.f32.mrb[0].mxu0
  %v409 = vadd.f32 %v180, %v408
  %v410 = vpop.f32.mrb[0].mxu0
  %v411 = vpop.f32.mrb[0].mxu0
  %v412 = vadd.f32 %v180, %v411
  %v413 = vpop.f32.mrb[0].mxu0
  %414 = vmatprep.mubr.bf16.mxu0 %v84
  %415 = vmatmul.mubr.bf16.gmra.mrb[0].mxu0 %v83
  %v416 = vpop.f32.mrb[0].mxu0
  %v417 = vadd.f32 %v180, %v416
  %v418 = vpop.f32.mrb[0].mxu0
  %v419 = vpop.f32.mrb[0].mxu0
  %v420 = vadd.f32 %v180, %v419
  %v421 = vpop.f32.mrb[0].mxu0
  %422 = vmatprep.mubr.bf16.mxu0 %v88
  %423 = vmatmul.mubr.bf16.gmra.mrb[0].mxu0 %v87
  %v424 = vpop.f32.mrb[0].mxu0
  %v425 = vadd.f32 %v180, %v424
  %v426 = vpop.f32.mrb[0].mxu0
  %v427 = vpop.f32.mrb[0].mxu0
  %v428 = vadd.f32 %v180, %v427
  %v429 = vpop.f32.mrb[0].mxu0
  %430 = vmatprep.mubr.bf16.mxu0 %v92
  %431 = vmatmul.mubr.bf16.gmra.mrb[0].mxu0 %v91
  %v432 = vpop.f32.mrb[0].mxu0
  %v433 = vadd.f32 %v180, %v432
  %v434 = vpop.f32.mrb[0].mxu0
  %v435 = vpop.f32.mrb[0].mxu0
  %v436 = vadd.f32 %v180, %v435
  %v437 = vpop.f32.mrb[0].mxu0
  %438 = vmatprep.mubr.bf16.mxu0 %v96
  %439 = vmatmul.mubr.bf16.gmra.mrb[0].mxu0 %v95
  %v440 = vpop.f32.mrb[0].mxu0
  %v441 = vadd.f32 %v180, %v440
  %v442 = vpop.f32.mrb[0].mxu0
  %v443 = vpop.f32.mrb[0].mxu0
  %v444 = vadd.f32 %v180, %v443
  %v445 = vpop.f32.mrb[0].mxu0
  %446 = vmatprep.mubr.bf16.mxu0 %v100
  %447 = vmatmul.mubr.bf16.gmra.mrb[0].mxu0 %v99
  %v448 = vpop.f32.mrb[0].mxu0
  %v449 = vadd.f32 %v180, %v448
  %v450 = vpop.f32.mrb[0].mxu0
  %v451 = vpop.f32.mrb[0].mxu0
  %v452 = vadd.f32 %v180, %v451
  %v453 = vpop.f32.mrb[0].mxu0
  %454 = vmatprep.mubr.bf16.mxu0 %v104
  %455 = vmatmul.mubr.bf16.gmra.mrb[0].mxu0 %v103
  %v456 = vpop.f32.mrb[0].mxu0
  %v457 = vadd.f32 %v180, %v456
  %v458 = vpop.f32.mrb[0].mxu0
  %v459 = vpop.f32.mrb[0].mxu0
  %v460 = vadd.f32 %v180, %v459
  %v461 = vpop.f32.mrb[0].mxu0
  %462 = vmatprep.mubr.bf16.mxu0 %v108
  %463 = vmatmul.mubr.bf16.gmra.mrb[0].mxu0 %v107
  %v464 = vpop.f32.mrb[0].mxu0
  %v465 = vadd.f32 %v180, %v464
  %v466 = vpop.f32.mrb[0].mxu0
  %v467 = vpop.f32.mrb[0].mxu0
  %v468 = vadd.f32 %v180, %v467
  %v469 = vpop.f32.mrb[0].mxu0
  %470 = vdwg.mxu0
  %471 = vmatprep.subr.bf16.mxu0 0
  %472 = vmatpush1.bf16.msra.mxu0 %v326
  %473 = vmatprep.subr.bf16.mxu0 0
  %474 = vmatpush1.bf16.msra.mxu0 %v327
  %475 = vmatprep.subr.bf16.mxu0 0
  %476 = vmatpush1.bf16.msra.mxu0 %v328
  %477 = vmatprep.subr.bf16.mxu0 0
  %478 = vmatpush1.bf16.msra.mxu0 %v329
  %479 = vmatprep.subr.bf16.mxu0 0
  %480 = vmatpush1.bf16.msra.mxu0 %v330
  %481 = vmatprep.subr.bf16.mxu0 0
  %482 = vmatpush1.bf16.msra.mxu0 %v331
  %483 = vmatprep.subr.bf16.mxu0 0
  %484 = vmatpush1.bf16.msra.mxu0 %v332
  %485 = vmatprep.subr.bf16.mxu0 0
  %486 = vmatpush1.bf16.msra.mxu0 %v333
  %487 = vmatprep.subr.bf16.mxu0 0
  %488 = vmatpush1.bf16.msra.mxu0 %v334
  %489 = vmatprep.subr.bf16.mxu0 0
  %490 = vmatpush1.bf16.msra.mxu0 %v335
  %491 = vmatprep.subr.bf16.mxu0 0
  %492 = vmatpush1.bf16.msra.mxu0 %v336
  %493 = vmatprep.subr.bf16.mxu0 0
  %494 = vmatpush1.bf16.msra.mxu0 %v337
  %495 = vmatprep.subr.bf16.mxu0 0
  %496 = vmatpush1.bf16.msra.mxu0 %v338
  %497 = vmatprep.subr.bf16.mxu0 0
  %498 = vmatpush1.bf16.msra.mxu0 %v339
  %499 = vmatprep.subr.bf16.mxu0 0
  %500 = vmatpush1.bf16.msra.mxu0 %v340
  %501 = vmatprep.subr.bf16.mxu0 0
  %502 = vmatpush1.bf16.msra.mxu0 %v341
  %503 = vmatprep.mubr.bf16.mxu0 %v82
  %504 = vmatmul.mubr.bf16.gmra.mrb[0].mxu0 %v81
  %v505 = vpop.f32.mrb[0].mxu0
  %v506 = vadd.f32 %v409, %v505
  %v507 = vpop.f32.mrb[0].mxu0
  %v508 = vpop.f32.mrb[0].mxu0
  %v509 = vadd.f32 %v412, %v508
  %v510 = vpop.f32.mrb[0].mxu0
  %511 = vmatprep.mubr.bf16.mxu0 %v86
  %512 = vmatmul.mubr.bf16.gmra.mrb[0].mxu0 %v85
  %v513 = vpop.f32.mrb[0].mxu0
  %v514 = vadd.f32 %v417, %v513
  %v515 = vpop.f32.mrb[0].mxu0
  %v516 = vpop.f32.mrb[0].mxu0
  %v517 = vadd.f32 %v420, %v516
  %v518 = vpop.f32.mrb[0].mxu0
  %519 = vmatprep.mubr.bf16.mxu0 %v90
  %520 = vmatmul.mubr.bf16.gmra.mrb[0].mxu0 %v89
  %v521 = vpop.f32.mrb[0].mxu0
  %v522 = vadd.f32 %v425, %v521
  %v523 = vpop.f32.mrb[0].mxu0
  %v524 = vpop.f32.mrb[0].mxu0
  %v525 = vadd.f32 %v428, %v524
  %v526 = vpop.f32.mrb[0].mxu0
  %527 = vmatprep.mubr.bf16.mxu0 %v94
  %528 = vmatmul.mubr.bf16.gmra.mrb[0].mxu0 %v93
  %v529 = vpop.f32.mrb[0].mxu0
  %v530 = vadd.f32 %v433, %v529
  %v531 = vpop.f32.mrb[0].mxu0
  %v532 = vpop.f32.mrb[0].mxu0
  %v533 = vadd.f32 %v436, %v532
  %v534 = vpop.f32.mrb[0].mxu0
  %535 = vmatprep.mubr.bf16.mxu0 %v98
  %536 = vmatmul.mubr.bf16.gmra.mrb[0].mxu0 %v97
  %v537 = vpop.f32.mrb[0].mxu0
  %v538 = vadd.f32 %v441, %v537
  %v539 = vpop.f32.mrb[0].mxu0
  %v540 = vpop.f32.mrb[0].mxu0
  %v541 = vadd.f32 %v444, %v540
  %v542 = vpop.f32.mrb[0].mxu0
  %543 = vmatprep.mubr.bf16.mxu0 %v102
  %544 = vmatmul.mubr.bf16.gmra.mrb[0].mxu0 %v101
  %v545 = vpop.f32.mrb[0].mxu0
  %v546 = vadd.f32 %v449, %v545
  %v547 = vpop.f32.mrb[0].mxu0
  %v548 = vpop.f32.mrb[0].mxu0
  %v549 = vadd.f32 %v452, %v548
  %v550 = vpop.f32.mrb[0].mxu0
  %551 = vmatprep.mubr.bf16.mxu0 %v106
  %552 = vmatmul.mubr.bf16.gmra.mrb[0].mxu0 %v105
  %v553 = vpop.f32.mrb[0].mxu0
  %v554 = vadd.f32 %v457, %v553
  %v555 = vpop.f32.mrb[0].mxu0
  %v556 = vpop.f32.mrb[0].mxu0
  %v557 = vadd.f32 %v460, %v556
  %v558 = vpop.f32.mrb[0].mxu0
  %559 = vmatprep.mubr.bf16.mxu0 %v110
  %560 = vmatmul.mubr.bf16.gmra.mrb[0].mxu0 %v109
  %v561 = vpop.f32.mrb[0].mxu0
  %v562 = vadd.f32 %v465, %v561
  %v563 = vpop.f32.mrb[0].mxu0
  %v564 = vpop.f32.mrb[0].mxu0
  %v565 = vadd.f32 %v468, %v564
  %v566 = vpop.f32.mrb[0].mxu0
  %567 = vdwg.mxu0
  %v568 = vmax.f32 %v506, 0.0
  %v569 = vmax.f32 %v509, 0.0
  %v570 = vmax.f32 %v514, 0.0
  %v571 = vmax.f32 %v517, 0.0
  %v572 = vmax.f32 %v522, 0.0
  %v573 = vmax.f32 %v525, 0.0
  %v574 = vmax.f32 %v530, 0.0
  %v575 = vmax.f32 %v533, 0.0
  %v576 = vmax.f32 %v538, 0.0
  %v577 = vmax.f32 %v541, 0.0
  %v578 = vmax.f32 %v546, 0.0
  %v579 = vmax.f32 %v549, 0.0
  %v580 = vmax.f32 %v554, 0.0
  %v581 = vmax.f32 %v557, 0.0
  %v582 = vmax.f32 %v562, 0.0
  %v583 = vmax.f32 %v565, 0.0
  %584 = vst [vmem:[%s3] sm:$0xff] %v568
  %585 = vst [vmem:[%s3 + $0x8] sm:$0xff] %v569
  %586 = vst [vmem:[%s3 + $0x10] sm:$0xff] %v570
  %587 = vst [vmem:[%s3 + $0x18] sm:$0xff] %v571
  %588 = vst [vmem:[%s3 + $0x20] sm:$0xff] %v572
  %589 = vst [vmem:[%s3 + $0x28] sm:$0xff] %v573
  %590 = vst [vmem:[%s3 + $0x30] sm:$0xff] %v574
  %591 = vst [vmem:[%s3 + $0x38] sm:$0xff] %v575
  %592 = vst [vmem:[%s3 + $0x40] sm:$0xff] %v576
  %593 = vst [vmem:[%s3 + $0x48] sm:$0xff] %v577
  %594 = vst [vmem:[%s3 + $0x50] sm:$0xff] %v578
  %595 = vst [vmem:[%s3 + $0x58] sm:$0xff] %v579
  %596 = vst [vmem:[%s3 + $0x60] sm:$0xff] %v580
  %597 = vst [vmem:[%s3 + $0x68] sm:$0xff] %v581
  %598 = vst [vmem:[%s3 + $0x70] sm:$0xff] %v582
  %599 = vst [vmem:[%s3 + $0x78] sm:$0xff] %v583
  // Predicated region
  $region14: #{cnn_policy_forward.5} parent=0 // pred_check
    _
  $region15: #{cnn_policy_forward.5} parent=0 // pred_check_branch
    %601 = sbr.rel (0) target = $region17
  $region16: #{cnn_policy_forward.5} parent=0 // pred_region
    _
  $region17: #{cnn_policy_forward.5} parent=0 // pred_fallthru
    _
  // Predicated region
  $region18: #{cnn_policy_forward.5} parent=0 // pred_check
    _
  $region19: #{cnn_policy_forward.5} parent=0 // pred_check_branch
    %603 = sbr.rel (0) target = $region21
  $region20: #{cnn_policy_forward.5} parent=0 // pred_region
    _
  $region21: #{cnn_policy_forward.5} parent=0 // pred_fallthru
    _

// kernel: cnn_policy_forward.6
$region0: #{cnn_policy_forward.6}
  #allocation0 [shape = 'u32[]', space=smem, size = 0x4, offset = 0x4, fixed_abs, tag = 'smem constant byte address 0x4 - core index']
  #allocation1 [shape = 'u32[144,128]{1,0:T(1,128)}', space=vmem, size = 0x12000, scoped, tag = 'internal scratch']
  %s0 = inlined_call_operand.vmem [shape: f32[72,640], index: 0, kind: input, shape index: {}]
  %s1 = inlined_call_operand.vmem [shape: bf16[640,128], index: 1, kind: input, shape index: {}]
  %s2 = inlined_call_operand.vmem [shape: f32[1,128], index: 2, kind: input, shape index: {}]
  %s3 = inlined_call_operand.vmem [shape: f32[72,128], index: 3, kind: output, shape index: {}]
  %s4 = sld [smem:[#allocation0]]
  $region22: #{cnn_policy_forward.6} parent=0
    _
  %s6 = ssub.s32 1, %s4
  %s7 = scalar_select 0, %s6, %s4
  // Predicated region
  $region2: #{cnn_policy_forward.6} parent=0 // pred_check
    _
  $region3: #{cnn_policy_forward.6} parent=0 // pred_check_branch
    %9 = sbr.rel (0) target = $region5
  $region4: #{cnn_policy_forward.6} parent=0 // pred_region
    _
  $region5: #{cnn_policy_forward.6} parent=0 // pred_fallthru
    _
  // Predicated region
  $region6: #{cnn_policy_forward.6} parent=0 // pred_check
    _
  $region7: #{cnn_policy_forward.6} parent=0 // pred_check_branch
    %11 = sbr.rel (0) target = $region9
  $region8: #{cnn_policy_forward.6} parent=0 // pred_region
    _
  $region9: #{cnn_policy_forward.6} parent=0 // pred_fallthru
    _
  // Predicated region
  $region10: #{cnn_policy_forward.6} parent=0 // pred_check
    _
  $region11: #{cnn_policy_forward.6} parent=0 // pred_check_branch
    %13 = sbr.rel (0) target = $region13
  $region12: #{cnn_policy_forward.6} parent=0 // pred_region
    _
  $region13: #{cnn_policy_forward.6} parent=0 // pred_fallthru
    _
  %v15 = vld [vmem:[%s0] sm:$0xff]
  %v16 = vld [vmem:[%s0 + $0x8] sm:$0xff]
  %v17 = vld [vmem:[%s0 + $0x10] sm:$0xff]
  %v18 = vld [vmem:[%s0 + $0x18] sm:$0xff]
  %v19 = vld [vmem:[%s0 + $0x20] sm:$0xff]
  %v20 = vld [vmem:[%s0 + $0x28] sm:$0xff]
  %v21 = vld [vmem:[%s0 + $0x30] sm:$0xff]
  %v22 = vld [vmem:[%s0 + $0x38] sm:$0xff]
  %v23 = vld [vmem:[%s0 + $0x40] sm:$0xff]
  %v24 = vld [vmem:[%s0 + $0x48] sm:$0xff]
  %v25 = vld [vmem:[%s0 + $0x50] sm:$0xff]
  %v26 = vld [vmem:[%s0 + $0x58] sm:$0xff]
  %v27 = vld [vmem:[%s0 + $0x60] sm:$0xff]
  %v28 = vld [vmem:[%s0 + $0x68] sm:$0xff]
  %v29 = vld [vmem:[%s0 + $0x70] sm:$0xff]
  %v30 = vld [vmem:[%s0 + $0x78] sm:$0xff]
  %v31 = vld [vmem:[%s0 + $0x80] sm:$0xff]
  %v32 = vld [vmem:[%s0 + $0x88] sm:$0xff]
  %v33 = vld [vmem:[%s0 + $0x90] sm:$0xff]
  %v34 = vld [vmem:[%s0 + $0x98] sm:$0xff]
  %v35 = vld [vmem:[%s0 + $0xa0] sm:$0xff]
  %v36 = vld [vmem:[%s0 + $0xa8] sm:$0xff]
  %v37 = vld [vmem:[%s0 + $0xb0] sm:$0xff]
  %v38 = vld [vmem:[%s0 + $0xb8] sm:$0xff]
  %v39 = vld [vmem:[%s0 + $0xc0] sm:$0xff]
  %v40 = vld [vmem:[%s0 + $0xc8] sm:$0xff]
  %v41 = vld [vmem:[%s0 + $0xd0] sm:$0xff]
  %v42 = vld [vmem:[%s0 + $0xd8] sm:$0xff]
  %v43 = vld [vmem:[%s0 + $0xe0] sm:$0xff]
  %v44 = vld [vmem:[%s0 + $0xe8] sm:$0xff]
  %v45 = vld [vmem:[%s0 + $0xf0] sm:$0xff]
  %v46 = vld [vmem:[%s0 + $0xf8] sm:$0xff]
  %v47 = vld [vmem:[%s0 + $0x100] sm:$0xff]
  %v48 = vld [vmem:[%s0 + $0x108] sm:$0xff]
  %v49 = vld [vmem:[%s0 + $0x110] sm:$0xff]
  %v50 = vld [vmem:[%s0 + $0x118] sm:$0xff]
  %v51 = vld [vmem:[%s0 + $0x120] sm:$0xff]
  %v52 = vld [vmem:[%s0 + $0x128] sm:$0xff]
  %v53 = vld [vmem:[%s0 + $0x130] sm:$0xff]
  %v54 = vld [vmem:[%s0 + $0x138] sm:$0xff]
  %v55 = vld [vmem:[%s0 + $0x140] sm:$0xff]
  %v56 = vld [vmem:[%s0 + $0x148] sm:$0xff]
  %v57 = vld [vmem:[%s0 + $0x150] sm:$0xff]
  %v58 = vld [vmem:[%s0 + $0x158] sm:$0xff]
  %v59 = vld [vmem:[%s0 + $0x160] sm:$0xff]
  %v60 = vpack.c.bf16 %v20, %v15
  %v61 = vpack.c.bf16 %v21, %v16
  %v62 = vpack.c.bf16 %v22, %v17
  %v63 = vpack.c.bf16 %v23, %v18
  %v64 = vpack.c.bf16 %v24, %v19
  %v65 = vpack.c.bf16 %v30, %v25
  %v66 = vpack.c.bf16 %v31, %v26
  %v67 = vpack.c.bf16 %v32, %v27
  %v68 = vpack.c.bf16 %v33, %v28
  %v69 = vpack.c.bf16 %v34, %v29
  %v70 = vpack.c.bf16 %v40, %v35
  %v71 = vpack.c.bf16 %v41, %v36
  %v72 = vpack.c.bf16 %v42, %v37
  %v73 = vpack.c.bf16 %v43, %v38
  %v74 = vpack.c.bf16 %v44, %v39
  %v75 = vpack.c.bf16 %v50, %v45
  %v76 = vpack.c.bf16 %v51, %v46
  %v77 = vpack.c.bf16 %v52, %v47
  %v78 = vpack.c.bf16 %v53, %v48
  %v79 = vpack.c.bf16 %v54, %v49
  %v80 = vpack.c.bf16 %v55, %v55
  %v81 = vpack.c.bf16 %v56, %v56
  %v82 = vpack.c.bf16 %v57, %v57
  %v83 = vpack.c.bf16 %v58, %v58
  %v84 = vpack.c.bf16 %v59, %v59
  %v85 = vld [vmem:[%s1] sm:$0xf]
  %v86 = vld [vmem:[%s1 + $0x4] sm:$0xf]
  %v87 = vld [vmem:[%s1 + $0x8] sm:$0xf]
  %v88 = vld [vmem:[%s1 + $0xc] sm:$0xf]
  %v89 = vld [vmem:[%s1 + $0x10] sm:$0xf]
  %v90 = vld [vmem:[%s1 + $0x14] sm:$0xf]
  %v91 = vld [vmem:[%s1 + $0x18] sm:$0xf]
  %v92 = vld [vmem:[%s1 + $0x1c] sm:$0xf]
  %v93 = vld [vmem:[%s1 + $0x20] sm:$0xf]
  %v94 = vld [vmem:[%s1 + $0x24] sm:$0xf]
  %v95 = vld [vmem:[%s1 + $0x28] sm:$0xf]
  %v96 = vld [vmem:[%s1 + $0x2c] sm:$0xf]
  %v97 = vld [vmem:[%s1 + $0x30] sm:$0xf]
  %v98 = vld [vmem:[%s1 + $0x34] sm:$0xf]
  %v99 = vld [vmem:[%s1 + $0x38] sm:$0xf]
  %v100 = vld [vmem:[%s1 + $0x3c] sm:$0xf]
  %v101 = vld [vmem:[%s1 + $0x40] sm:$0xf]
  %v102 = vld [vmem:[%s1 + $0x44] sm:$0xf]
  %v103 = vld [vmem:[%s1 + $0x48] sm:$0xf]
  %v104 = vld [vmem:[%s1 + $0x4c] sm:$0xf]
  %v105 = vld [vmem:[%s1 + $0x50] sm:$0xf]
  %v106 = vld [vmem:[%s1 + $0x54] sm:$0xf]
  %v107 = vld [vmem:[%s1 + $0x58] sm:$0xf]
  %v108 = vld [vmem:[%s1 + $0x5c] sm:$0xf]
  %v109 = vld [vmem:[%s1 + $0x60] sm:$0xf]
  %v110 = vld [vmem:[%s1 + $0x64] sm:$0xf]
  %v111 = vld [vmem:[%s1 + $0x68] sm:$0xf]
  %v112 = vld [vmem:[%s1 + $0x6c] sm:$0xf]
  %v113 = vld [vmem:[%s1 + $0x70] sm:$0xf]
  %v114 = vld [vmem:[%s1 + $0x74] sm:$0xf]
  %v115 = vld [vmem:[%s1 + $0x78] sm:$0xf]
  %v116 = vld [vmem:[%s1 + $0x7c] sm:$0xf]
  %v117 = vld [vmem:[%s1 + $0x80] sm:$0xf]
  %v118 = vld [vmem:[%s1 + $0x84] sm:$0xf]
  %v119 = vld [vmem:[%s1 + $0x88] sm:$0xf]
  %v120 = vld [vmem:[%s1 + $0x8c] sm:$0xf]
  %v121 = vld [vmem:[%s1 + $0x90] sm:$0xf]
  %v122 = vld [vmem:[%s1 + $0x94] sm:$0xf]
  %v123 = vld [vmem:[%s1 + $0x98] sm:$0xf]
  %v124 = vld [vmem:[%s1 + $0x9c] sm:$0xf]
  %v125 = vld [vmem:[%s1 + $0xa0] sm:$0xf]
  %v126 = vld [vmem:[%s1 + $0xa4] sm:$0xf]
  %v127 = vld [vmem:[%s1 + $0xa8] sm:$0xf]
  %v128 = vld [vmem:[%s1 + $0xac] sm:$0xf]
  %v129 = vld [vmem:[%s1 + $0xb0] sm:$0xf]
  %v130 = vld [vmem:[%s1 + $0xb4] sm:$0xf]
  %v131 = vld [vmem:[%s1 + $0xb8] sm:$0xf]
  %v132 = vld [vmem:[%s1 + $0xbc] sm:$0xf]
  %v133 = vld [vmem:[%s1 + $0xc0] sm:$0xf]
  %v134 = vld [vmem:[%s1 + $0xc4] sm:$0xf]
  %v135 = vld [vmem:[%s1 + $0xc8] sm:$0xf]
  %v136 = vld [vmem:[%s1 + $0xcc] sm:$0xf]
  %v137 = vld [vmem:[%s1 + $0xd0] sm:$0xf]
  %v138 = vld [vmem:[%s1 + $0xd4] sm:$0xf]
  %v139 = vld [vmem:[%s1 + $0xd8] sm:$0xf]
  %v140 = vld [vmem:[%s1 + $0xdc] sm:$0xf]
  %v141 = vld [vmem:[%s1 + $0xe0] sm:$0xf]
  %v142 = vld [vmem:[%s1 + $0xe4] sm:$0xf]
  %v143 = vld [vmem:[%s1 + $0xe8] sm:$0xf]
  %v144 = vld [vmem:[%s1 + $0xec] sm:$0xf]
  %v145 = vld [vmem:[%s1 + $0xf0] sm:$0xf]
  %v146 = vld [vmem:[%s1 + $0xf4] sm:$0xf]
  %v147 = vld [vmem:[%s1 + $0xf8] sm:$0xf]
  %v148 = vld [vmem:[%s1 + $0xfc] sm:$0xf]
  %v149 = vld [vmem:[%s1 + $0x100] sm:$0xf]
  %v150 = vld [vmem:[%s1 + $0x104] sm:$0xf]
  %v151 = vld [vmem:[%s1 + $0x108] sm:$0xf]
  %v152 = vld [vmem:[%s1 + $0x10c] sm:$0xf]
  %v153 = vld [vmem:[%s1 + $0x110] sm:$0xf]
  %v154 = vld [vmem:[%s1 + $0x114] sm:$0xf]
  %v155 = vld [vmem:[%s1 + $0x118] sm:$0xf]
  %v156 = vld [vmem:[%s1 + $0x11c] sm:$0xf]
  %v157 = vld [vmem:[%s1 + $0x120] sm:$0xf]
  %v158 = vld [vmem:[%s1 + $0x124] sm:$0xf]
  %v159 = vld [vmem:[%s1 + $0x128] sm:$0xf]
  %v160 = vld [vmem:[%s1 + $0x12c] sm:$0xf]
  %v161 = vld [vmem:[%s1 + $0x130] sm:$0xf]
  %v162 = vld [vmem:[%s1 + $0x134] sm:$0xf]
  %v163 = vld [vmem:[%s1 + $0x138] sm:$0xf]
  %v164 = vld [vmem:[%s1 + $0x13c] sm:$0xf]
  %v165 = vld [vmem:[%s2] sm:$0x1]
  %v167 = vlaneseq
  %v168 = vshrl.u32 %v167, 7
  %v169 = vsub.s32 0, %v168
  %v170 = vrot.slane %v165, %v169
  %v252 = vunpack.c.l.b16 %v85
  %v253 = vunpack.c.l.b16 %v86
  %v254 = vunpack.c.l.b16 %v87
  %v255 = vunpack.c.l.b16 %v88
  %v256 = vunpack.c.l.b16 %v89
  %v257 = vunpack.c.l.b16 %v90
  %v258 = vunpack.c.l.b16 %v91
  %v259 = vunpack.c.l.b16 %v92
  %v260 = vunpack.c.l.b16 %v93
  %v261 = vunpack.c.l.b16 %v94
  %v262 = vunpack.c.l.b16 %v95
  %v263 = vunpack.c.l.b16 %v96
  %v264 = vunpack.c.l.b16 %v97
  %v265 = vunpack.c.l.b16 %v98
  %v266 = vunpack.c.l.b16 %v99
  %v267 = vunpack.c.l.b16 %v100
  %v268 = vunpack.c.l.b16 %v101
  %v269 = vunpack.c.l.b16 %v102
  %v270 = vunpack.c.l.b16 %v103
  %v271 = vunpack.c.l.b16 %v104
  %v272 = vunpack.c.l.b16 %v105
  %v273 = vunpack.c.l.b16 %v106
  %v274 = vunpack.c.l.b16 %v107
  %v275 = vunpack.c.l.b16 %v108
  %v276 = vunpack.c.l.b16 %v109
  %v277 = vunpack.c.l.b16 %v110
  %v278 = vunpack.c.l.b16 %v111
  %v279 = vunpack.c.l.b16 %v112
  %v280 = vunpack.c.l.b16 %v113
  %v281 = vunpack.c.l.b16 %v114
  %v282 = vunpack.c.l.b16 %v115
  %v283 = vunpack.c.l.b16 %v116
  %v284 = vunpack.c.l.b16 %v117
  %v285 = vunpack.c.l.b16 %v118
  %v286 = vunpack.c.l.b16 %v119
  %v287 = vunpack.c.l.b16 %v120
  %v288 = vunpack.c.l.b16 %v121
  %v289 = vunpack.c.l.b16 %v122
  %v290 = vunpack.c.l.b16 %v123
  %v291 = vunpack.c.l.b16 %v124
  %v292 = vunpack.c.l.b16 %v125
  %v293 = vunpack.c.l.b16 %v126
  %v294 = vunpack.c.l.b16 %v127
  %v295 = vunpack.c.l.b16 %v128
  %v296 = vunpack.c.l.b16 %v129
  %v297 = vunpack.c.l.b16 %v130
  %v298 = vunpack.c.l.b16 %v131
  %v299 = vunpack.c.l.b16 %v132
  %v300 = vunpack.c.l.b16 %v133
  %v301 = vunpack.c.l.b16 %v134
  %v302 = vunpack.c.l.b16 %v135
  %v303 = vunpack.c.l.b16 %v136
  %v304 = vunpack.c.l.b16 %v137
  %v305 = vunpack.c.l.b16 %v138
  %v306 = vunpack.c.l.b16 %v139
  %v307 = vunpack.c.l.b16 %v140
  %v308 = vunpack.c.l.b16 %v141
  %v309 = vunpack.c.l.b16 %v142
  %v310 = vunpack.c.l.b16 %v143
  %v311 = vunpack.c.l.b16 %v144
  %v312 = vunpack.c.l.b16 %v145
  %v313 = vunpack.c.l.b16 %v146
  %v314 = vunpack.c.l.b16 %v147
  %v315 = vunpack.c.l.b16 %v148
  %v316 = vunpack.c.l.b16 %v149
  %v317 = vunpack.c.l.b16 %v150
  %v318 = vunpack.c.l.b16 %v151
  %v319 = vunpack.c.l.b16 %v152
  %v320 = vunpack.c.l.b16 %v153
  %v321 = vunpack.c.l.b16 %v154
  %v322 = vunpack.c.l.b16 %v155
  %v323 = vunpack.c.l.b16 %v156
  %v324 = vunpack.c.l.b16 %v157
  %v325 = vunpack.c.l.b16 %v158
  %v326 = vunpack.c.l.b16 %v159
  %v327 = vunpack.c.l.b16 %v160
  %v328 = vunpack.c.l.b16 %v161
  %v329 = vunpack.c.l.b16 %v162
  %v330 = vunpack.c.l.b16 %v163
  %v331 = vunpack.c.l.b16 %v164
  %v332 = vpack.c.b16 %v253, %v252
  %v333 = vpack.c.b16 %v255, %v254
  %v334 = vpack.c.b16 %v257, %v256
  %v335 = vpack.c.b16 %v259, %v258
  %v336 = vpack.c.b16 %v261, %v260
  %v337 = vpack.c.b16 %v263, %v262
  %v338 = vpack.c.b16 %v265, %v264
  %v339 = vpack.c.b16 %v267, %v266
  %v340 = vpack.c.b16 %v269, %v268
  %v341 = vpack.c.b16 %v271, %v270
  %v342 = vpack.c.b16 %v273, %v272
  %v343 = vpack.c.b16 %v275, %v274
  %v344 = vpack.c.b16 %v277, %v276
  %v345 = vpack.c.b16 %v279, %v278
  %v346 = vpack.c.b16 %v281, %v280
  %v347 = vpack.c.b16 %v283, %v282
  %v348 = vpack.c.b16 %v285, %v284
  %v349 = vpack.c.b16 %v287, %v286
  %v350 = vpack.c.b16 %v289, %v288
  %v351 = vpack.c.b16 %v291, %v290
  %v352 = vpack.c.b16 %v293, %v292
  %v353 = vpack.c.b16 %v295, %v294
  %v354 = vpack.c.b16 %v297, %v296
  %v355 = vpack.c.b16 %v299, %v298
  %v356 = vpack.c.b16 %v301, %v300
  %v357 = vpack.c.b16 %v303, %v302
  %v358 = vpack.c.b16 %v305, %v304
  %v359 = vpack.c.b16 %v307, %v306
  %v360 = vpack.c.b16 %v309, %v308
  %v361 = vpack.c.b16 %v311, %v310
  %v362 = vpack.c.b16 %v313, %v312
  %v363 = vpack.c.b16 %v315, %v314
  %v364 = vpack.c.b16 %v317, %v316
  %v365 = vpack.c.b16 %v319, %v318
  %v366 = vpack.c.b16 %v321, %v320
  %v367 = vpack.c.b16 %v323, %v322
  %v368 = vpack.c.b16 %v325, %v324
  %v369 = vpack.c.b16 %v327, %v326
  %v370 = vpack.c.b16 %v329, %v328
  %v371 = vpack.c.b16 %v331, %v330
  %412 = vmatprep.subr.bf16.mxu0 0
  %413 = vmatpush1.bf16.msra.mxu0 %v332
  %414 = vmatprep.subr.bf16.mxu0 0
  %415 = vmatpush1.bf16.msra.mxu0 %v333
  %416 = vmatprep.subr.bf16.mxu0 0
  %417 = vmatpush1.bf16.msra.mxu0 %v334
  %418 = vmatprep.subr.bf16.mxu0 0
  %419 = vmatpush1.bf16.msra.mxu0 %v335
  %420 = vmatprep.subr.bf16.mxu0 0
  %421 = vmatpush1.bf16.msra.mxu0 %v336
  %422 = vmatprep.subr.bf16.mxu0 0
  %423 = vmatpush1.bf16.msra.mxu0 %v337
  %424 = vmatprep.subr.bf16.mxu0 0
  %425 = vmatpush1.bf16.msra.mxu0 %v338
  %426 = vmatprep.subr.bf16.mxu0 0
  %427 = vmatpush1.bf16.msra.mxu0 %v339
  %428 = vmatprep.subr.bf16.mxu0 0
  %429 = vmatpush1.bf16.msra.mxu0 %v340
  %430 = vmatprep.subr.bf16.mxu0 0
  %431 = vmatpush1.bf16.msra.mxu0 %v341
  %432 = vmatprep.subr.bf16.mxu0 0
  %433 = vmatpush1.bf16.msra.mxu0 %v342
  %434 = vmatprep.subr.bf16.mxu0 0
  %435 = vmatpush1.bf16.msra.mxu0 %v343
  %436 = vmatprep.subr.bf16.mxu0 0
  %437 = vmatpush1.bf16.msra.mxu0 %v344
  %438 = vmatprep.subr.bf16.mxu0 0
  %439 = vmatpush1.bf16.msra.mxu0 %v345
  %440 = vmatprep.subr.bf16.mxu0 0
  %441 = vmatpush1.bf16.msra.mxu0 %v346
  %442 = vmatprep.subr.bf16.mxu0 0
  %443 = vmatpush1.bf16.msra.mxu0 %v347
  %444 = vmatprep.mubr.bf16.mxu0 %v61
  %445 = vmatmul.mubr.bf16.gmra.mrb[0].mxu0 %v60
  %v446 = vpop.f32.mrb[0].mxu0
  %v447 = vadd.f32 %v170, %v446
  %v448 = vpop.f32.mrb[0].mxu0
  %v449 = vpop.f32.mrb[0].mxu0
  %v450 = vadd.f32 %v170, %v449
  %v451 = vpop.f32.mrb[0].mxu0
  %452 = vmatprep.mubr.bf16.mxu0 %v66
  %453 = vmatmul.mubr.bf16.gmra.mrb[0].mxu0 %v65
  %v454 = vpop.f32.mrb[0].mxu0
  %v455 = vadd.f32 %v170, %v454
  %v456 = vpop.f32.mrb[0].mxu0
  %v457 = vpop.f32.mrb[0].mxu0
  %v458 = vadd.f32 %v170, %v457
  %v459 = vpop.f32.mrb[0].mxu0
  %460 = vmatprep.mubr.bf16.mxu0 %v71
  %461 = vmatmul.mubr.bf16.gmra.mrb[0].mxu0 %v70
  %v462 = vpop.f32.mrb[0].mxu0
  %v463 = vadd.f32 %v170, %v462
  %v464 = vpop.f32.mrb[0].mxu0
  %v465 = vpop.f32.mrb[0].mxu0
  %v466 = vadd.f32 %v170, %v465
  %v467 = vpop.f32.mrb[0].mxu0
  %468 = vmatprep.mubr.bf16.mxu0 %v76
  %469 = vmatmul.mubr.bf16.gmra.mrb[0].mxu0 %v75
  %v470 = vpop.f32.mrb[0].mxu0
  %v471 = vadd.f32 %v170, %v470
  %v472 = vpop.f32.mrb[0].mxu0
  %v473 = vpop.f32.mrb[0].mxu0
  %v474 = vadd.f32 %v170, %v473
  %v475 = vpop.f32.mrb[0].mxu0
  %476 = vmatprep.mubr.bf16.mxu0 %v81
  %477 = vmatmul.mubr.bf16.gmra.mrb[0].mxu0 %v80
  %v478 = vpop.f32.mrb[0].mxu0
  %v479 = vadd.f32 %v170, %v478
  %v480 = vpop.f32.mrb[0].mxu0
  %v481 = vpop.f32.mrb[0].mxu0
  %v482 = vpop.f32.mrb[0].mxu0
  %483 = vdwg.mxu0
  %484 = vmatprep.subr.bf16.mxu0 0
  %485 = vmatpush1.bf16.msra.mxu0 %v348
  %486 = vmatprep.subr.bf16.mxu0 0
  %487 = vmatpush1.bf16.msra.mxu0 %v349
  %488 = vmatprep.subr.bf16.mxu0 0
  %489 = vmatpush1.bf16.msra.mxu0 %v350
  %490 = vmatprep.subr.bf16.mxu0 0
  %491 = vmatpush1.bf16.msra.mxu0 %v351
  %492 = vmatprep.subr.bf16.mxu0 0
  %493 = vmatpush1.bf16.msra.mxu0 %v352
  %494 = vmatprep.subr.bf16.mxu0 0
  %495 = vmatpush1.bf16.msra.mxu0 %v353
  %496 = vmatprep.subr.bf16.mxu0 0
  %497 = vmatpush1.bf16.msra.mxu0 %v354
  %498 = vmatprep.subr.bf16.mxu0 0
  %499 = vmatpush1.bf16.msra.mxu0 %v355
  %500 = vmatprep.subr.bf16.mxu0 0
  %501 = vmatpush1.bf16.msra.mxu0 %v356
  %502 = vmatprep.subr.bf16.mxu0 0
  %503 = vmatpush1.bf16.msra.mxu0 %v357
  %504 = vmatprep.subr.bf16.mxu0 0
  %505 = vmatpush1.bf16.msra.mxu0 %v358
  %506 = vmatprep.subr.bf16.mxu0 0
  %507 = vmatpush1.bf16.msra.mxu0 %v359
  %508 = vmatprep.subr.bf16.mxu0 0
  %509 = vmatpush1.bf16.msra.mxu0 %v360
  %510 = vmatprep.subr.bf16.mxu0 0
  %511 = vmatpush1.bf16.msra.mxu0 %v361
  %512 = vmatprep.subr.bf16.mxu0 0
  %513 = vmatpush1.bf16.msra.mxu0 %v362
  %514 = vmatprep.subr.bf16.mxu0 0
  %515 = vmatpush1.bf16.msra.mxu0 %v363
  %516 = vmatprep.mubr.bf16.mxu0 %v63
  %517 = vmatmul.mubr.bf16.gmra.mrb[0].mxu0 %v62
  %v518 = vpop.f32.mrb[0].mxu0
  %v519 = vadd.f32 %v447, %v518
  %v520 = vpop.f32.mrb[0].mxu0
  %v521 = vpop.f32.mrb[0].mxu0
  %v522 = vadd.f32 %v450, %v521
  %v523 = vpop.f32.mrb[0].mxu0
  %524 = vmatprep.mubr.bf16.mxu0 %v68
  %525 = vmatmul.mubr.bf16.gmra.mrb[0].mxu0 %v67
  %v526 = vpop.f32.mrb[0].mxu0
  %v527 = vadd.f32 %v455, %v526
  %v528 = vpop.f32.mrb[0].mxu0
  %v529 = vpop.f32.mrb[0].mxu0
  %v530 = vadd.f32 %v458, %v529
  %v531 = vpop.f32.mrb[0].mxu0
  %532 = vmatprep.mubr.bf16.mxu0 %v73
  %533 = vmatmul.mubr.bf16.gmra.mrb[0].mxu0 %v72
  %v534 = vpop.f32.mrb[0].mxu0
  %v535 = vadd.f32 %v463, %v534
  %v536 = vpop.f32.mrb[0].mxu0
  %v537 = vpop.f32.mrb[0].mxu0
  %v538 = vadd.f32 %v466, %v537
  %v539 = vpop.f32.mrb[0].mxu0
  %540 = vmatprep.mubr.bf16.mxu0 %v78
  %541 = vmatmul.mubr.bf16.gmra.mrb[0].mxu0 %v77
  %v542 = vpop.f32.mrb[0].mxu0
  %v543 = vadd.f32 %v471, %v542
  %v544 = vpop.f32.mrb[0].mxu0
  %v545 = vpop.f32.mrb[0].mxu0
  %v546 = vadd.f32 %v474, %v545
  %v547 = vpop.f32.mrb[0].mxu0
  %548 = vmatprep.mubr.bf16.mxu0 %v83
  %549 = vmatmul.mubr.bf16.gmra.mrb[0].mxu0 %v82
  %v550 = vpop.f32.mrb[0].mxu0
  %v551 = vadd.f32 %v479, %v550
  %v552 = vpop.f32.mrb[0].mxu0
  %v553 = vpop.f32.mrb[0].mxu0
  %v554 = vpop.f32.mrb[0].mxu0
  %555 = vdwg.mxu0
  %556 = vmatprep.subr.bf16.mxu0 0
  %557 = vmatpush1.bf16.msra.mxu0 %v364
  %558 = vmatprep.subr.bf16.mxu0 0
  %559 = vmatpush1.bf16.msra.mxu0 %v365
  %560 = vmatprep.subr.bf16.mxu0 0
  %561 = vmatpush1.bf16.msra.mxu0 %v366
  %562 = vmatprep.subr.bf16.mxu0 0
  %563 = vmatpush1.bf16.msra.mxu0 %v367
  %564 = vmatprep.subr.bf16.mxu0 0
  %565 = vmatpush1.bf16.msra.mxu0 %v368
  %566 = vmatprep.subr.bf16.mxu0 0
  %567 = vmatpush1.bf16.msra.mxu0 %v369
  %568 = vmatprep.subr.bf16.mxu0 0
  %569 = vmatpush1.bf16.msra.mxu0 %v370
  %570 = vmatprep.subr.bf16.mxu0 0
  %571 = vmatpush1.bf16.msra.mxu0 %v371
  %572 = vmatprep.subr.bf16.mxu0 0
  %573 = vmatpush1.bf16.msra.mxu0 0
  %574 = vmatprep.subr.bf16.mxu0 0
  %575 = vmatpush1.bf16.msra.mxu0 0
  %576 = vmatprep.subr.bf16.mxu0 0
  %577 = vmatpush1.bf16.msra.mxu0 0
  %578 = vmatprep.subr.bf16.mxu0 0
  %579 = vmatpush1.bf16.msra.mxu0 0
  %580 = vmatprep.subr.bf16.mxu0 0
  %581 = vmatpush1.bf16.msra.mxu0 0
  %582 = vmatprep.subr.bf16.mxu0 0
  %583 = vmatpush1.bf16.msra.mxu0 0
  %584 = vmatprep.subr.bf16.mxu0 0
  %585 = vmatpush1.bf16.msra.mxu0 0
  %586 = vmatprep.subr.bf16.mxu0 0
  %587 = vmatpush1.bf16.msra.mxu0 0
  %588 = vmatprep.mubr.bf16.mxu0 0
  %589 = vmatmul.mubr.bf16.gmra.mrb[0].mxu0 %v64
  %v590 = vpop.f32.mrb[0].mxu0
  %v591 = vadd.f32 %v519, %v590
  %v592 = vpop.f32.mrb[0].mxu0
  %v593 = vpop.f32.mrb[0].mxu0
  %v594 = vadd.f32 %v522, %v593
  %v595 = vpop.f32.mrb[0].mxu0
  %596 = vmatprep.mubr.bf16.mxu0 0
  %597 = vmatmul.mubr.bf16.gmra.mrb[0].mxu0 %v69
  %v598 = vpop.f32.mrb[0].mxu0
  %v599 = vadd.f32 %v527, %v598
  %v600 = vpop.f32.mrb[0].mxu0
  %v601 = vpop.f32.mrb[0].mxu0
  %v602 = vadd.f32 %v530, %v601
  %v603 = vpop.f32.mrb[0].mxu0
  %604 = vmatprep.mubr.bf16.mxu0 0
  %605 = vmatmul.mubr.bf16.gmra.mrb[0].mxu0 %v74
  %v606 = vpop.f32.mrb[0].mxu0
  %v607 = vadd.f32 %v535, %v606
  %v608 = vpop.f32.mrb[0].mxu0
  %v609 = vpop.f32.mrb[0].mxu0
  %v610 = vadd.f32 %v538, %v609
  %v611 = vpop.f32.mrb[0].mxu0
  %612 = vmatprep.mubr.bf16.mxu0 0
  %613 = vmatmul.mubr.bf16.gmra.mrb[0].mxu0 %v79
  %v614 = vpop.f32.mrb[0].mxu0
  %v615 = vadd.f32 %v543, %v614
  %v616 = vpop.f32.mrb[0].mxu0
  %v617 = vpop.f32.mrb[0].mxu0
  %v618 = vadd.f32 %v546, %v617
  %v619 = vpop.f32.mrb[0].mxu0
  %620 = vmatprep.mubr.bf16.mxu0 0
  %621 = vmatmul.mubr.bf16.gmra.mrb[0].mxu0 %v84
  %v622 = vpop.f32.mrb[0].mxu0
  %v623 = vadd.f32 %v551, %v622
  %v624 = vpop.f32.mrb[0].mxu0
  %v625 = vpop.f32.mrb[0].mxu0
  %v626 = vpop.f32.mrb[0].mxu0
  %627 = vdwg.mxu0
  %v628 = vmax.f32 %v591, 0.0
  %v629 = vmax.f32 %v594, 0.0
  %v630 = vmax.f32 %v599, 0.0
  %v631 = vmax.f32 %v602, 0.0
  %v632 = vmax.f32 %v607, 0.0
  %v633 = vmax.f32 %v610, 0.0
  %v634 = vmax.f32 %v615, 0.0
  %v635 = vmax.f32 %v618, 0.0
  %v636 = vmax.f32 %v623, 0.0
  %637 = vst [vmem:[%s3] sm:$0xff] %v628
  %638 = vst [vmem:[%s3 + $0x8] sm:$0xff] %v629
  %639 = vst [vmem:[%s3 + $0x10] sm:$0xff] %v630
  %640 = vst [vmem:[%s3 + $0x18] sm:$0xff] %v631
  %641 = vst [vmem:[%s3 + $0x20] sm:$0xff] %v632
  %642 = vst [vmem:[%s3 + $0x28] sm:$0xff] %v633
  %643 = vst [vmem:[%s3 + $0x30] sm:$0xff] %v634
  %644 = vst [vmem:[%s3 + $0x38] sm:$0xff] %v635
  %645 = vst [vmem:[%s3 + $0x40] sm:$0xff] %v636
  // Predicated region
  $region14: #{cnn_policy_forward.6} parent=0 // pred_check
    _
  $region15: #{cnn_policy_forward.6} parent=0 // pred_check_branch
    %647 = sbr.rel (0) target = $region17
  $region16: #{cnn_policy_forward.6} parent=0 // pred_region
    _
  $region17: #{cnn_policy_forward.6} parent=0 // pred_fallthru
    _
  // Predicated region
  $region18: #{cnn_policy_forward.6} parent=0 // pred_check
    _
  $region19: #{cnn_policy_forward.6} parent=0 // pred_check_branch
    %649 = sbr.rel (0) target = $region21
  $region20: #{cnn_policy_forward.6} parent=0 // pred_region
    _
  $region21: #{cnn_policy_forward.6} parent=0 // pred_fallthru
    _

// kernel: cnn_policy_forward.7
$region0: #{cnn_policy_forward.7}
  #allocation0 [shape = 'u32[]', space=smem, size = 0x4, offset = 0x4, fixed_abs, tag = 'smem constant byte address 0x4 - core index']
  #allocation1 [shape = 'u32[144,128]{1,0:T(1,128)}', space=vmem, size = 0x12000, scoped, tag = 'internal scratch']
  %s0 = inlined_call_operand.vmem [shape: f32[8,2304], index: 0, kind: input, shape index: {}]
  %s1 = inlined_call_operand.vmem [shape: bf16[2304,512], index: 1, kind: input, shape index: {}]
  %s2 = inlined_call_operand.vmem [shape: f32[1,512], index: 2, kind: input, shape index: {}]
  %s3 = inlined_call_operand.vmem [shape: bf16[512,256], index: 3, kind: input, shape index: {}]
  %s4 = inlined_call_operand.vmem [shape: f32[1,256], index: 4, kind: input, shape index: {}]
  %s5 = inlined_call_operand.vmem [shape: bf16[256,128], index: 5, kind: input, shape index: {}]
  %s6 = inlined_call_operand.vmem [shape: f32[1,128], index: 6, kind: input, shape index: {}]
  %s7 = inlined_call_operand.vmem [shape: f32[8,128], index: 7, kind: output, shape index: {}]
  %s8 = sld [smem:[#allocation0]]
  $region38: #{cnn_policy_forward.7} parent=0
    _
  %s10 = ssub.s32 1, %s8
  %s11 = scalar_select 0, %s10, %s8
  // Predicated region
  $region2: #{cnn_policy_forward.7} parent=0 // pred_check
    _
  $region3: #{cnn_policy_forward.7} parent=0 // pred_check_branch
    %13 = sbr.rel (0) target = $region5
  $region4: #{cnn_policy_forward.7} parent=0 // pred_region
    _
  $region5: #{cnn_policy_forward.7} parent=0 // pred_fallthru
    _
  // Predicated region
  $region6: #{cnn_policy_forward.7} parent=0 // pred_check
    _
  $region7: #{cnn_policy_forward.7} parent=0 // pred_check_branch
    %15 = sbr.rel (0) target = $region9
  $region8: #{cnn_policy_forward.7} parent=0 // pred_region
    _
  $region9: #{cnn_policy_forward.7} parent=0 // pred_fallthru
    _
  // Predicated region
  $region10: #{cnn_policy_forward.7} parent=0 // pred_check
    _
  $region11: #{cnn_policy_forward.7} parent=0 // pred_check_branch
    %17 = sbr.rel (0) target = $region13
  $region12: #{cnn_policy_forward.7} parent=0 // pred_region
    _
  $region13: #{cnn_policy_forward.7} parent=0 // pred_fallthru
    _
  // Predicated region
  $region14: #{cnn_policy_forward.7} parent=0 // pred_check
    _
  $region15: #{cnn_policy_forward.7} parent=0 // pred_check_branch
    %19 = sbr.rel (0) target = $region17
  $region16: #{cnn_policy_forward.7} parent=0 // pred_region
    _
  $region17: #{cnn_policy_forward.7} parent=0 // pred_fallthru
    _
  // Predicated region
  $region18: #{cnn_policy_forward.7} parent=0 // pred_check
    _
  $region19: #{cnn_policy_forward.7} parent=0 // pred_check_branch
    %21 = sbr.rel (0) target = $region21
  $region20: #{cnn_policy_forward.7} parent=0 // pred_region
    _
  $region21: #{cnn_policy_forward.7} parent=0 // pred_fallthru
    _
  // Predicated region
  $region22: #{cnn_policy_forward.7} parent=0 // pred_check
    _
  $region23: #{cnn_policy_forward.7} parent=0 // pred_check_branch
    %23 = sbr.rel (0) target = $region25
  $region24: #{cnn_policy_forward.7} parent=0 // pred_region
    _
  $region25: #{cnn_policy_forward.7} parent=0 // pred_fallthru
    _
  // Predicated region
  $region26: #{cnn_policy_forward.7} parent=0 // pred_check
    _
  $region27: #{cnn_policy_forward.7} parent=0 // pred_check_branch
    %25 = sbr.rel (0) target = $region29
  $region28: #{cnn_policy_forward.7} parent=0 // pred_region
    _
  $region29: #{cnn_policy_forward.7} parent=0 // pred_fallthru
    _
  %v27 = vld [vmem:[%s0] sm:$0xff]
  %v28 = vld [vmem:[%s0 + $0x8] sm:$0xff]
  %v29 = vld [vmem:[%s0 + $0x10] sm:$0xff]
  %v30 = vld [vmem:[%s0 + $0x18] sm:$0xff]
  %v31 = vld [vmem:[%s0 + $0x20] sm:$0xff]
  %v32 = vld [vmem:[%s0 + $0x28] sm:$0xff]
  %v33 = vld [vmem:[%s0 + $0x30] sm:$0xff]
  %v34 = vld [vmem:[%s0 + $0x38] sm:$0xff]
  %v35 = vld [vmem:[%s0 + $0x40] sm:$0xff]
  %v36 = vld [vmem:[%s0 + $0x48] sm:$0xff]
  %v37 = vld [vmem:[%s0 + $0x50] sm:$0xff]
  %v38 = vld [vmem:[%s0 + $0x58] sm:$0xff]
  %v39 = vld [vmem:[%s0 + $0x60] sm:$0xff]
  %v40 = vld [vmem:[%s0 + $0x68] sm:$0xff]
  %v41 = vld [vmem:[%s0 + $0x70] sm:$0xff]
  %v42 = vld [vmem:[%s0 + $0x78] sm:$0xff]
  %v43 = vld [vmem:[%s0 + $0x80] sm:$0xff]
  %v44 = vld [vmem:[%s0 + $0x88] sm:$0xff]
  %v45 = vpack.c.bf16 %v27, %v27
  %v46 = vpack.c.bf16 %v28, %v28
  %v47 = vpack.c.bf16 %v29, %v29
  %v48 = vpack.c.bf16 %v30, %v30
  %v49 = vpack.c.bf16 %v31, %v31
  %v50 = vpack.c.bf16 %v32, %v32
  %v51 = vpack.c.bf16 %v33, %v33
  %v52 = vpack.c.bf16 %v34, %v34
  %v53 = vpack.c.bf16 %v35, %v35
  %v54 = vpack.c.bf16 %v36, %v36
  %v55 = vpack.c.bf16 %v37, %v37
  %v56 = vpack.c.bf16 %v38, %v38
  %v57 = vpack.c.bf16 %v39, %v39
  %v58 = vpack.c.bf16 %v40, %v40
  %v59 = vpack.c.bf16 %v41, %v41
  %v60 = vpack.c.bf16 %v42, %v42
  %v61 = vpack.c.bf16 %v43, %v43
  %v62 = vpack.c.bf16 %v44, %v44
  %v63 = vld [vmem:[%s1] sm:$0xff]
  %v64 = vld [vmem:[%s1 + $0x8] sm:$0xff]
  %v65 = vld [vmem:[%s1 + $0x10] sm:$0xff]
  %v66 = vld [vmem:[%s1 + $0x18] sm:$0xff]
  %v67 = vld [vmem:[%s1 + $0x20] sm:$0xff]
  %v68 = vld [vmem:[%s1 + $0x28] sm:$0xff]
  %v69 = vld [vmem:[%s1 + $0x30] sm:$0xff]
  %v70 = vld [vmem:[%s1 + $0x38] sm:$0xff]
  %v71 = vld [vmem:[%s1 + $0x40] sm:$0xff]
  %v72 = vld [vmem:[%s1 + $0x48] sm:$0xff]
  %v73 = vld [vmem:[%s1 + $0x50] sm:$0xff]
  %v74 = vld [vmem:[%s1 + $0x58] sm:$0xff]
  %v75 = vld [vmem:[%s1 + $0x60] sm:$0xff]
  %v76 = vld [vmem:[%s1 + $0x68] sm:$0xff]
  %v77 = vld [vmem:[%s1 + $0x70] sm:$0xff]
  %v78 = vld [vmem:[%s1 + $0x78] sm:$0xff]
  %v79 = vld [vmem:[%s1 + $0x80] sm:$0xff]
  %v80 = vld [vmem:[%s1 + $0x88] sm:$0xff]
  %v81 = vld [vmem:[%s1 + $0x90] sm:$0xff]
  %v82 = vld [vmem:[%s1 + $0x98] sm:$0xff]
  %v83 = vld [vmem:[%s1 + $0xa0] sm:$0xff]
  %v84 = vld [vmem:[%s1 + $0xa8] sm:$0xff]
  %v85 = vld [vmem:[%s1 + $0xb0] sm:$0xff]
  %v86 = vld [vmem:[%s1 + $0xb8] sm:$0xff]
  %v87 = vld [vmem:[%s1 + $0xc0] sm:$0xff]
  %v88 = vld [vmem:[%s1 + $0xc8] sm:$0xff]
  %v89 = vld [vmem:[%s1 + $0xd0] sm:$0xff]
  %v90 = vld [vmem:[%s1 + $0xd8] sm:$0xff]
  %v91 = vld [vmem:[%s1 + $0xe0] sm:$0xff]
  %v92 = vld [vmem:[%s1 + $0xe8] sm:$0xff]
  %v93 = vld [vmem:[%s1 + $0xf0] sm:$0xff]
  %v94 = vld [vmem:[%s1 + $0xf8] sm:$0xff]
  %v95 = vld [vmem:[%s1 + $0x100] sm:$0xff]
  %v96 = vld [vmem:[%s1 + $0x108] sm:$0xff]
  %v97 = vld [vmem:[%s1 + $0x110] sm:$0xff]
  %v98 = vld [vmem:[%s1 + $0x118] sm:$0xff]
  %v99 = vld [vmem:[%s1 + $0x120] sm:$0xff]
  %v100 = vld [vmem:[%s1 + $0x128] sm:$0xff]
  %v101 = vld [vmem:[%s1 + $0x130] sm:$0xff]
  %v102 = vld [vmem:[%s1 + $0x138] sm:$0xff]
  %v103 = vld [vmem:[%s1 + $0x140] sm:$0xff]
  %v104 = vld [vmem:[%s1 + $0x148] sm:$0xff]
  %v105 = vld [vmem:[%s1 + $0x150] sm:$0xff]
  %v106 = vld [vmem:[%s1 + $0x158] sm:$0xff]
  %v107 = vld [vmem:[%s1 + $0x160] sm:$0xff]
  %v108 = vld [vmem:[%s1 + $0x168] sm:$0xff]
  %v109 = vld [vmem:[%s1 + $0x170] sm:$0xff]
  %v110 = vld [vmem:[%s1 + $0x178] sm:$0xff]
  %v111 = vld [vmem:[%s1 + $0x180] sm:$0xff]
  %v112 = vld [vmem:[%s1 + $0x188] sm:$0xff]
  %v113 = vld [vmem:[%s1 + $0x190] sm:$0xff]
  %v114 = vld [vmem:[%s1 + $0x198] sm:$0xff]
  %v115 = vld [vmem:[%s1 + $0x1a0] sm:$0xff]
  %v116 = vld [vmem:[%s1 + $0x1a8] sm:$0xff]
  %v117 = vld [vmem:[%s1 + $0x1b0] sm:$0xff]
  %v118 = vld [vmem:[%s1 + $0x1b8] sm:$0xff]
  %v119 = vld [vmem:[%s1 + $0x1c0] sm:$0xff]
  %v120 = vld [vmem:[%s1 + $0x1c8] sm:$0xff]
  %v121 = vld [vmem:[%s1 + $0x1d0] sm:$0xff]
  %v122 = vld [vmem:[%s1 + $0x1d8] sm:$0xff]
  %v123 = vld [vmem:[%s1 + $0x1e0] sm:$0xff]
  %v124 = vld [vmem:[%s1 + $0x1e8] sm:$0xff]
  %v125 = vld [vmem:[%s1 + $0x1f0] sm:$0xff]
  %v126 = vld [vmem:[%s1 + $0x1f8] sm:$0xff]
  %v127 = vld [vmem:[%s1 + $0x200] sm:$0xff]
  %v128 = vld [vmem:[%s1 + $0x208] sm:$0xff]
  %v129 = vld [vmem:[%s1 + $0x210] sm:$0xff]
  %v130 = vld [vmem:[%s1 + $0x218] sm:$0xff]
  %v131 = vld [vmem:[%s1 + $0x220] sm:$0xff]
  %v132 = vld [vmem:[%s1 + $0x228] sm:$0xff]
  %v133 = vld [vmem:[%s1 + $0x230] sm:$0xff]
  %v134 = vld [vmem:[%s1 + $0x238] sm:$0xff]
  %v135 = vld [vmem:[%s1 + $0x240] sm:$0xff]
  %v136 = vld [vmem:[%s1 + $0x248] sm:$0xff]
  %v137 = vld [vmem:[%s1 + $0x250] sm:$0xff]
  %v138 = vld [vmem:[%s1 + $0x258] sm:$0xff]
  %v139 = vld [vmem:[%s1 + $0x260] sm:$0xff]
  %v140 = vld [vmem:[%s1 + $0x268] sm:$0xff]
  %v141 = vld [vmem:[%s1 + $0x270] sm:$0xff]
  %v142 = vld [vmem:[%s1 + $0x278] sm:$0xff]
  %v143 = vld [vmem:[%s1 + $0x280] sm:$0xff]
  %v144 = vld [vmem:[%s1 + $0x288] sm:$0xff]
  %v145 = vld [vmem:[%s1 + $0x290] sm:$0xff]
  %v146 = vld [vmem:[%s1 + $0x298] sm:$0xff]
  %v147 = vld [vmem:[%s1 + $0x2a0] sm:$0xff]
  %v148 = vld [vmem:[%s1 + $0x2a8] sm:$0xff]
  %v149 = vld [vmem:[%s1 + $0x2b0] sm:$0xff]
  %v150 = vld [vmem:[%s1 + $0x2b8] sm:$0xff]
  %v151 = vld [vmem:[%s1 + $0x2c0] sm:$0xff]
  %v152 = vld [vmem:[%s1 + $0x2c8] sm:$0xff]
  %v153 = vld [vmem:[%s1 + $0x2d0] sm:$0xff]
  %v154 = vld [vmem:[%s1 + $0x2d8] sm:$0xff]
  %v155 = vld [vmem:[%s1 + $0x2e0] sm:$0xff]
  %v156 = vld [vmem:[%s1 + $0x2e8] sm:$0xff]
  %v157 = vld [vmem:[%s1 + $0x2f0] sm:$0xff]
  %v158 = vld [vmem:[%s1 + $0x2f8] sm:$0xff]
  %v159 = vld [vmem:[%s1 + $0x300] sm:$0xff]
  %v160 = vld [vmem:[%s1 + $0x308] sm:$0xff]
  %v161 = vld [vmem:[%s1 + $0x310] sm:$0xff]
  %v162 = vld [vmem:[%s1 + $0x318] sm:$0xff]
  %v163 = vld [vmem:[%s1 + $0x320] sm:$0xff]
  %v164 = vld [vmem:[%s1 + $0x328] sm:$0xff]
  %v165 = vld [vmem:[%s1 + $0x330] sm:$0xff]
  %v166 = vld [vmem:[%s1 + $0x338] sm:$0xff]
  %v167 = vld [vmem:[%s1 + $0x340] sm:$0xff]
  %v168 = vld [vmem:[%s1 + $0x348] sm:$0xff]
  %v169 = vld [vmem:[%s1 + $0x350] sm:$0xff]
  %v170 = vld [vmem:[%s1 + $0x358] sm:$0xff]
  %v171 = vld [vmem:[%s1 + $0x360] sm:$0xff]
  %v172 = vld [vmem:[%s1 + $0x368] sm:$0xff]
  %v173 = vld [vmem:[%s1 + $0x370] sm:$0xff]
  %v174 = vld [vmem:[%s1 + $0x378] sm:$0xff]
  %v175 = vld [vmem:[%s1 + $0x380] sm:$0xff]
  %v176 = vld [vmem:[%s1 + $0x388] sm:$0xff]
  %v177 = vld [vmem:[%s1 + $0x390] sm:$0xff]
  %v178 = vld [vmem:[%s1 + $0x398] sm:$0xff]
  %v179 = vld [vmem:[%s1 + $0x3a0] sm:$0xff]
  %v180 = vld [vmem:[%s1 + $0x3a8] sm:$0xff]
  %v181 = vld [vmem:[%s1 + $0x3b0] sm:$0xff]
  %v182 = vld [vmem:[%s1 + $0x3b8] sm:$0xff]
  %v183 = vld [vmem:[%s1 + $0x3c0] sm:$0xff]
  %v184 = vld [vmem:[%s1 + $0x3c8] sm:$0xff]
  %v185 = vld [vmem:[%s1 + $0x3d0] sm:$0xff]
  %v186 = vld [vmem:[%s1 + $0x3d8] sm:$0xff]
  %v187 = vld [vmem:[%s1 + $0x3e0] sm:$0xff]
  %v188 = vld [vmem:[%s1 + $0x3e8] sm:$0xff]
  %v189 = vld [vmem:[%s1 + $0x3f0] sm:$0xff]
  %v190 = vld [vmem:[%s1 + $0x3f8] sm:$0xff]
  %v191 = vld [vmem:[%s1 + $0x400] sm:$0xff]
  %v192 = vld [vmem:[%s1 + $0x408] sm:$0xff]
  %v193 = vld [vmem:[%s1 + $0x410] sm:$0xff]
  %v194 = vld [vmem:[%s1 + $0x418] sm:$0xff]
  %v195 = vld [vmem:[%s1 + $0x420] sm:$0xff]
  %v196 = vld [vmem:[%s1 + $0x428] sm:$0xff]
  %v197 = vld [vmem:[%s1 + $0x430] sm:$0xff]
  %v198 = vld [vmem:[%s1 + $0x438] sm:$0xff]
  %v199 = vld [vmem:[%s1 + $0x440] sm:$0xff]
  %v200 = vld [vmem:[%s1 + $0x448] sm:$0xff]
  %v201 = vld [vmem:[%s1 + $0x450] sm:$0xff]
  %v202 = vld [vmem:[%s1 + $0x458] sm:$0xff]
  %v203 = vld [vmem:[%s1 + $0x460] sm:$0xff]
  %v204 = vld [vmem:[%s1 + $0x468] sm:$0xff]
  %v205 = vld [vmem:[%s1 + $0x470] sm:$0xff]
  %v206 = vld [vmem:[%s1 + $0x478] sm:$0xff]
  %v207 = vld [vmem:[%s1 + $0x480] sm:$0xff]
  %v208 = vld [vmem:[%s1 + $0x488] sm:$0xff]
  %v209 = vld [vmem:[%s1 + $0x490] sm:$0xff]
  %v210 = vld [vmem:[%s1 + $0x498] sm:$0xff]
  %v211 = vld [vmem:[%s1 + $0x4a0] sm:$0xff]
  %v212 = vld [vmem:[%s1 + $0x4a8] sm:$0xff]
  %v213 = vld [vmem:[%s1 + $0x4b0] sm:$0xff]
  %v214 = vld [vmem:[%s1 + $0x4b8] sm:$0xff]
  %v215 = vld [vmem:[%s1 + $0x4c0] sm:$0xff]
  %v216 = vld [vmem:[%s1 + $0x4c8] sm:$0xff]
  %v217 = vld [vmem:[%s1 + $0x4d0] sm:$0xff]
  %v218 = vld [vmem:[%s1 + $0x4d8] sm:$0xff]
  %v219 = vld [vmem:[%s1 + $0x4e0] sm:$0xff]
  %v220 = vld [vmem:[%s1 + $0x4e8] sm:$0xff]
  %v221 = vld [vmem:[%s1 + $0x4f0] sm:$0xff]
  %v222 = vld [vmem:[%s1 + $0x4f8] sm:$0xff]
  %v223 = vld [vmem:[%s1 + $0x500] sm:$0xff]
  %v224 = vld [vmem:[%s1 + $0x508] sm:$0xff]
  %v225 = vld [vmem:[%s1 + $0x510] sm:$0xff]
  %v226 = vld [vmem:[%s1 + $0x518] sm:$0xff]
  %v227 = vld [vmem:[%s1 + $0x520] sm:$0xff]
  %v228 = vld [vmem:[%s1 + $0x528] sm:$0xff]
  %v229 = vld [vmem:[%s1 + $0x530] sm:$0xff]
  %v230 = vld [vmem:[%s1 + $0x538] sm:$0xff]
  %v231 = vld [vmem:[%s1 + $0x540] sm:$0xff]
  %v232 = vld [vmem:[%s1 + $0x548] sm:$0xff]
  %v233 = vld [vmem:[%s1 + $0x550] sm:$0xff]
  %v234 = vld [vmem:[%s1 + $0x558] sm:$0xff]
  %v235 = vld [vmem:[%s1 + $0x560] sm:$0xff]
  %v236 = vld [vmem:[%s1 + $0x568] sm:$0xff]
  %v237 = vld [vmem:[%s1 + $0x570] sm:$0xff]
  %v238 = vld [vmem:[%s1 + $0x578] sm:$0xff]
  %v239 = vld [vmem:[%s1 + $0x580] sm:$0xff]
  %v240 = vld [vmem:[%s1 + $0x588] sm:$0xff]
  %v241 = vld [vmem:[%s1 + $0x590] sm:$0xff]
  %v242 = vld [vmem:[%s1 + $0x598] sm:$0xff]
  %v243 = vld [vmem:[%s1 + $0x5a0] sm:$0xff]
  %v244 = vld [vmem:[%s1 + $0x5a8] sm:$0xff]
  %v245 = vld [vmem:[%s1 + $0x5b0] sm:$0xff]
  %v246 = vld [vmem:[%s1 + $0x5b8] sm:$0xff]
  %v247 = vld [vmem:[%s1 + $0x5c0] sm:$0xff]
  %v248 = vld [vmem:[%s1 + $0x5c8] sm:$0xff]
  %v249 = vld [vmem:[%s1 + $0x5d0] sm:$0xff]
  %v250 = vld [vmem:[%s1 + $0x5d8] sm:$0xff]
  %v251 = vld [vmem:[%s1 + $0x5e0] sm:$0xff]
  %v252 = vld [vmem:[%s1 + $0x5e8] sm:$0xff]
  %v253 = vld [vmem:[%s1 + $0x5f0] sm:$0xff]
  %v254 = vld [vmem:[%s1 + $0x5f8] sm:$0xff]
  %v255 = vld [vmem:[%s1 + $0x600] sm:$0xff]
  %v256 = vld [vmem:[%s1 + $0x608] sm:$0xff]
  %v257 = vld [vmem:[%s1 + $0x610] sm:$0xff]
  %v258 = vld [vmem:[%s1 + $0x618] sm:$0xff]
  %v259 = vld [vmem:[%s1 + $0x620] sm:$0xff]
  %v260 = vld [vmem:[%s1 + $0x628] sm:$0xff]
  %v261 = vld [vmem:[%s1 + $0x630] sm:$0xff]
  %v262 = vld [vmem:[%s1 + $0x638] sm:$0xff]
  %v263 = vld [vmem:[%s1 + $0x640] sm:$0xff]
  %v264 = vld [vmem:[%s1 + $0x648] sm:$0xff]
  %v265 = vld [vmem:[%s1 + $0x650] sm:$0xff]
  %v266 = vld [vmem:[%s1 + $0x658] sm:$0xff]
  %v267 = vld [vmem:[%s1 + $0x660] sm:$0xff]
  %v268 = vld [vmem:[%s1 + $0x668] sm:$0xff]
  %v269 = vld [vmem:[%s1 + $0x670] sm:$0xff]
  %v270 = vld [vmem:[%s1 + $0x678] sm:$0xff]
  %v271 = vld [vmem:[%s1 + $0x680] sm:$0xff]
  %v272 = vld [vmem:[%s1 + $0x688] sm:$0xff]
  %v273 = vld [vmem:[%s1 + $0x690] sm:$0xff]
  %v274 = vld [vmem:[%s1 + $0x698] sm:$0xff]
  %v275 = vld [vmem:[%s1 + $0x6a0] sm:$0xff]
  %v276 = vld [vmem:[%s1 + $0x6a8] sm:$0xff]
  %v277 = vld [vmem:[%s1 + $0x6b0] sm:$0xff]
  %v278 = vld [vmem:[%s1 + $0x6b8] sm:$0xff]
  %v279 = vld [vmem:[%s1 + $0x6c0] sm:$0xff]
  %v280 = vld [vmem:[%s1 + $0x6c8] sm:$0xff]
  %v281 = vld [vmem:[%s1 + $0x6d0] sm:$0xff]
  %v282 = vld [vmem:[%s1 + $0x6d8] sm:$0xff]
  %v283 = vld [vmem:[%s1 + $0x6e0] sm:$0xff]
  %v284 = vld [vmem:[%s1 + $0x6e8] sm:$0xff]
  %v285 = vld [vmem:[%s1 + $0x6f0] sm:$0xff]
  %v286 = vld [vmem:[%s1 + $0x6f8] sm:$0xff]
  %v287 = vld [vmem:[%s1 + $0x700] sm:$0xff]
  %v288 = vld [vmem:[%s1 + $0x708] sm:$0xff]
  %v289 = vld [vmem:[%s1 + $0x710] sm:$0xff]
  %v290 = vld [vmem:[%s1 + $0x718] sm:$0xff]
  %v291 = vld [vmem:[%s1 + $0x720] sm:$0xff]
  %v292 = vld [vmem:[%s1 + $0x728] sm:$0xff]
  %v293 = vld [vmem:[%s1 + $0x730] sm:$0xff]
  %v294 = vld [vmem:[%s1 + $0x738] sm:$0xff]
  %v295 = vld [vmem:[%s1 + $0x740] sm:$0xff]
  %v296 = vld [vmem:[%s1 + $0x748] sm:$0xff]
  %v297 = vld [vmem:[%s1 + $0x750] sm:$0xff]
  %v298 = vld [vmem:[%s1 + $0x758] sm:$0xff]
  %v299 = vld [vmem:[%s1 + $0x760] sm:$0xff]
  %v300 = vld [vmem:[%s1 + $0x768] sm:$0xff]
  %v301 = vld [vmem:[%s1 + $0x770] sm:$0xff]
  %v302 = vld [vmem:[%s1 + $0x778] sm:$0xff]
  %v303 = vld [vmem:[%s1 + $0x780] sm:$0xff]
  %v304 = vld [vmem:[%s1 + $0x788] sm:$0xff]
  %v305 = vld [vmem:[%s1 + $0x790] sm:$0xff]
  %v306 = vld [vmem:[%s1 + $0x798] sm:$0xff]
  %v307 = vld [vmem:[%s1 + $0x7a0] sm:$0xff]
  %v308 = vld [vmem:[%s1 + $0x7a8] sm:$0xff]
  %v309 = vld [vmem:[%s1 + $0x7b0] sm:$0xff]
  %v310 = vld [vmem:[%s1 + $0x7b8] sm:$0xff]
  %v311 = vld [vmem:[%s1 + $0x7c0] sm:$0xff]
  %v312 = vld [vmem:[%s1 + $0x7c8] sm:$0xff]
  %v313 = vld [vmem:[%s1 + $0x7d0] sm:$0xff]
  %v314 = vld [vmem:[%s1 + $0x7d8] sm:$0xff]
  %v315 = vld [vmem:[%s1 + $0x7e0] sm:$0xff]
  %v316 = vld [vmem:[%s1 + $0x7e8] sm:$0xff]
  %v317 = vld [vmem:[%s1 + $0x7f0] sm:$0xff]
  %v318 = vld [vmem:[%s1 + $0x7f8] sm:$0xff]
  %v319 = vld [vmem:[%s1 + $0x800] sm:$0xff]
  %v320 = vld [vmem:[%s1 + $0x808] sm:$0xff]
  %v321 = vld [vmem:[%s1 + $0x810] sm:$0xff]
  %v322 = vld [vmem:[%s1 + $0x818] sm:$0xff]
  %v323 = vld [vmem:[%s1 + $0x820] sm:$0xff]
  %v324 = vld [vmem:[%s1 + $0x828] sm:$0xff]
  %v325 = vld [vmem:[%s1 + $0x830] sm:$0xff]
  %v326 = vld [vmem:[%s1 + $0x838] sm:$0xff]
  %v327 = vld [vmem:[%s1 + $0x840] sm:$0xff]
  %v328 = vld [vmem:[%s1 + $0x848] sm:$0xff]
  %v329 = vld [vmem:[%s1 + $0x850] sm:$0xff]
  %v330 = vld [vmem:[%s1 + $0x858] sm:$0xff]
  %v331 = vld [vmem:[%s1 + $0x860] sm:$0xff]
  %v332 = vld [vmem:[%s1 + $0x868] sm:$0xff]
  %v333 = vld [vmem:[%s1 + $0x870] sm:$0xff]
  %v334 = vld [vmem:[%s1 + $0x878] sm:$0xff]
  %v335 = vld [vmem:[%s1 + $0x880] sm:$0xff]
  %v336 = vld [vmem:[%s1 + $0x888] sm:$0xff]
  %v337 = vld [vmem:[%s1 + $0x890] sm:$0xff]
  %v338 = vld [vmem:[%s1 + $0x898] sm:$0xff]
  %v339 = vld [vmem:[%s1 + $0x8a0] sm:$0xff]
  %v340 = vld [vmem:[%s1 + $0x8a8] sm:$0xff]
  %v341 = vld [vmem:[%s1 + $0x8b0] sm:$0xff]
  %v342 = vld [vmem:[%s1 + $0x8b8] sm:$0xff]
  %v343 = vld [vmem:[%s1 + $0x8c0] sm:$0xff]
  %v344 = vld [vmem:[%s1 + $0x8c8] sm:$0xff]
  %v345 = vld [vmem:[%s1 + $0x8d0] sm:$0xff]
  %v346 = vld [vmem:[%s1 + $0x8d8] sm:$0xff]
  %v347 = vld [vmem:[%s1 + $0x8e0] sm:$0xff]
  %v348 = vld [vmem:[%s1 + $0x8e8] sm:$0xff]
  %v349 = vld [vmem:[%s1 + $0x8f0] sm:$0xff]
  %v350 = vld [vmem:[%s1 + $0x8f8] sm:$0xff]
  %v351 = vld [vmem:[%s1 + $0x900] sm:$0xff]
  %v352 = vld [vmem:[%s1 + $0x908] sm:$0xff]
  %v353 = vld [vmem:[%s1 + $0x910] sm:$0xff]
  %v354 = vld [vmem:[%s1 + $0x918] sm:$0xff]
  %v355 = vld [vmem:[%s1 + $0x920] sm:$0xff]
  %v356 = vld [vmem:[%s1 + $0x928] sm:$0xff]
  %v357 = vld [vmem:[%s1 + $0x930] sm:$0xff]
  %v358 = vld [vmem:[%s1 + $0x938] sm:$0xff]
  %v359 = vld [vmem:[%s1 + $0x940] sm:$0xff]
  %v360 = vld [vmem:[%s1 + $0x948] sm:$0xff]
  %v361 = vld [vmem:[%s1 + $0x950] sm:$0xff]
  %v362 = vld [vmem:[%s1 + $0x958] sm:$0xff]
  %v363 = vld [vmem:[%s1 + $0x960] sm:$0xff]
  %v364 = vld [vmem:[%s1 + $0x968] sm:$0xff]
  %v365 = vld [vmem:[%s1 + $0x970] sm:$0xff]
  %v366 = vld [vmem:[%s1 + $0x978] sm:$0xff]
  %v367 = vld [vmem:[%s1 + $0x980] sm:$0xff]
  %v368 = vld [vmem:[%s1 + $0x988] sm:$0xff]
  %v369 = vld [vmem:[%s1 + $0x990] sm:$0xff]
  %v370 = vld [vmem:[%s1 + $0x998] sm:$0xff]
  %v371 = vld [vmem:[%s1 + $0x9a0] sm:$0xff]
  %v372 = vld [vmem:[%s1 + $0x9a8] sm:$0xff]
  %v373 = vld [vmem:[%s1 + $0x9b0] sm:$0xff]
  %v374 = vld [vmem:[%s1 + $0x9b8] sm:$0xff]
  %v375 = vld [vmem:[%s1 + $0x9c0] sm:$0xff]
  %v376 = vld [vmem:[%s1 + $0x9c8] sm:$0xff]
  %v377 = vld [vmem:[%s1 + $0x9d0] sm:$0xff]
  %v378 = vld [vmem:[%s1 + $0x9d8] sm:$0xff]
  %v379 = vld [vmem:[%s1 + $0x9e0] sm:$0xff]
  %v380 = vld [vmem:[%s1 + $0x9e8] sm:$0xff]
  %v381 = vld [vmem:[%s1 + $0x9f0] sm:$0xff]
  %v382 = vld [vmem:[%s1 + $0x9f8] sm:$0xff]
  %v383 = vld [vmem:[%s1 + $0xa00] sm:$0xff]
  %v384 = vld [vmem:[%s1 + $0xa08] sm:$0xff]
  %v385 = vld [vmem:[%s1 + $0xa10] sm:$0xff]
  %v386 = vld [vmem:[%s1 + $0xa18] sm:$0xff]
  %v387 = vld [vmem:[%s1 + $0xa20] sm:$0xff]
  %v388 = vld [vmem:[%s1 + $0xa28] sm:$0xff]
  %v389 = vld [vmem:[%s1 + $0xa30] sm:$0xff]
  %v390 = vld [vmem:[%s1 + $0xa38] sm:$0xff]
  %v391 = vld [vmem:[%s1 + $0xa40] sm:$0xff]
  %v392 = vld [vmem:[%s1 + $0xa48] sm:$0xff]
  %v393 = vld [vmem:[%s1 + $0xa50] sm:$0xff]
  %v394 = vld [vmem:[%s1 + $0xa58] sm:$0xff]
  %v395 = vld [vmem:[%s1 + $0xa60] sm:$0xff]
  %v396 = vld [vmem:[%s1 + $0xa68] sm:$0xff]
  %v397 = vld [vmem:[%s1 + $0xa70] sm:$0xff]
  %v398 = vld [vmem:[%s1 + $0xa78] sm:$0xff]
  %v399 = vld [vmem:[%s1 + $0xa80] sm:$0xff]
  %v400 = vld [vmem:[%s1 + $0xa88] sm:$0xff]
  %v401 = vld [vmem:[%s1 + $0xa90] sm:$0xff]
  %v402 = vld [vmem:[%s1 + $0xa98] sm:$0xff]
  %v403 = vld [vmem:[%s1 + $0xaa0] sm:$0xff]
  %v404 = vld [vmem:[%s1 + $0xaa8] sm:$0xff]
  %v405 = vld [vmem:[%s1 + $0xab0] sm:$0xff]
  %v406 = vld [vmem:[%s1 + $0xab8] sm:$0xff]
  %v407 = vld [vmem:[%s1 + $0xac0] sm:$0xff]
  %v408 = vld [vmem:[%s1 + $0xac8] sm:$0xff]
  %v409 = vld [vmem:[%s1 + $0xad0] sm:$0xff]
  %v410 = vld [vmem:[%s1 + $0xad8] sm:$0xff]
  %v411 = vld [vmem:[%s1 + $0xae0] sm:$0xff]
  %v412 = vld [vmem:[%s1 + $0xae8] sm:$0xff]
  %v413 = vld [vmem:[%s1 + $0xaf0] sm:$0xff]
  %v414 = vld [vmem:[%s1 + $0xaf8] sm:$0xff]
  %v415 = vld [vmem:[%s1 + $0xb00] sm:$0xff]
  %v416 = vld [vmem:[%s1 + $0xb08] sm:$0xff]
  %v417 = vld [vmem:[%s1 + $0xb10] sm:$0xff]
  %v418 = vld [vmem:[%s1 + $0xb18] sm:$0xff]
  %v419 = vld [vmem:[%s1 + $0xb20] sm:$0xff]
  %v420 = vld [vmem:[%s1 + $0xb28] sm:$0xff]
  %v421 = vld [vmem:[%s1 + $0xb30] sm:$0xff]
  %v422 = vld [vmem:[%s1 + $0xb38] sm:$0xff]
  %v423 = vld [vmem:[%s1 + $0xb40] sm:$0xff]
  %v424 = vld [vmem:[%s1 + $0xb48] sm:$0xff]
  %v425 = vld [vmem:[%s1 + $0xb50] sm:$0xff]
  %v426 = vld [vmem:[%s1 + $0xb58] sm:$0xff]
  %v427 = vld [vmem:[%s1 + $0xb60] sm:$0xff]
  %v428 = vld [vmem:[%s1 + $0xb68] sm:$0xff]
  %v429 = vld [vmem:[%s1 + $0xb70] sm:$0xff]
  %v430 = vld [vmem:[%s1 + $0xb78] sm:$0xff]
  %v431 = vld [vmem:[%s1 + $0xb80] sm:$0xff]
  %v432 = vld [vmem:[%s1 + $0xb88] sm:$0xff]
  %v433 = vld [vmem:[%s1 + $0xb90] sm:$0xff]
  %v434 = vld [vmem:[%s1 + $0xb98] sm:$0xff]
  %v435 = vld [vmem:[%s1 + $0xba0] sm:$0xff]
  %v436 = vld [vmem:[%s1 + $0xba8] sm:$0xff]
  %v437 = vld [vmem:[%s1 + $0xbb0] sm:$0xff]
  %v438 = vld [vmem:[%s1 + $0xbb8] sm:$0xff]
  %v439 = vld [vmem:[%s1 + $0xbc0] sm:$0xff]
  %v440 = vld [vmem:[%s1 + $0xbc8] sm:$0xff]
  %v441 = vld [vmem:[%s1 + $0xbd0] sm:$0xff]
  %v442 = vld [vmem:[%s1 + $0xbd8] sm:$0xff]
  %v443 = vld [vmem:[%s1 + $0xbe0] sm:$0xff]
  %v444 = vld [vmem:[%s1 + $0xbe8] sm:$0xff]
  %v445 = vld [vmem:[%s1 + $0xbf0] sm:$0xff]
  %v446 = vld [vmem:[%s1 + $0xbf8] sm:$0xff]
  %v447 = vld [vmem:[%s1 + $0xc00] sm:$0xff]
  %v448 = vld [vmem:[%s1 + $0xc08] sm:$0xff]
  %v449 = vld [vmem:[%s1 + $0xc10] sm:$0xff]
  %v450 = vld [vmem:[%s1 + $0xc18] sm:$0xff]
  %v451 = vld [vmem:[%s1 + $0xc20] sm:$0xff]
  %v452 = vld [vmem:[%s1 + $0xc28] sm:$0xff]
  %v453 = vld [vmem:[%s1 + $0xc30] sm:$0xff]
  %v454 = vld [vmem:[%s1 + $0xc38] sm:$0xff]
  %v455 = vld [vmem:[%s1 + $0xc40] sm:$0xff]
  %v456 = vld [vmem:[%s1 + $0xc48] sm:$0xff]
  %v457 = vld [vmem:[%s1 + $0xc50] sm:$0xff]
  %v458 = vld [vmem:[%s1 + $0xc58] sm:$0xff]
  %v459 = vld [vmem:[%s1 + $0xc60] sm:$0xff]
  %v460 = vld [vmem:[%s1 + $0xc68] sm:$0xff]
  %v461 = vld [vmem:[%s1 + $0xc70] sm:$0xff]
  %v462 = vld [vmem:[%s1 + $0xc78] sm:$0xff]
  %v463 = vld [vmem:[%s1 + $0xc80] sm:$0xff]
  %v464 = vld [vmem:[%s1 + $0xc88] sm:$0xff]
  %v465 = vld [vmem:[%s1 + $0xc90] sm:$0xff]
  %v466 = vld [vmem:[%s1 + $0xc98] sm:$0xff]
  %v467 = vld [vmem:[%s1 + $0xca0] sm:$0xff]
  %v468 = vld [vmem:[%s1 + $0xca8] sm:$0xff]
  %v469 = vld [vmem:[%s1 + $0xcb0] sm:$0xff]
  %v470 = vld [vmem:[%s1 + $0xcb8] sm:$0xff]
  %v471 = vld [vmem:[%s1 + $0xcc0] sm:$0xff]
  %v472 = vld [vmem:[%s1 + $0xcc8] sm:$0xff]
  %v473 = vld [vmem:[%s1 + $0xcd0] sm:$0xff]
  %v474 = vld [vmem:[%s1 + $0xcd8] sm:$0xff]
  %v475 = vld [vmem:[%s1 + $0xce0] sm:$0xff]
  %v476 = vld [vmem:[%s1 + $0xce8] sm:$0xff]
  %v477 = vld [vmem:[%s1 + $0xcf0] sm:$0xff]
  %v478 = vld [vmem:[%s1 + $0xcf8] sm:$0xff]
  %v479 = vld [vmem:[%s1 + $0xd00] sm:$0xff]
  %v480 = vld [vmem:[%s1 + $0xd08] sm:$0xff]
  %v481 = vld [vmem:[%s1 + $0xd10] sm:$0xff]
  %v482 = vld [vmem:[%s1 + $0xd18] sm:$0xff]
  %v483 = vld [vmem:[%s1 + $0xd20] sm:$0xff]
  %v484 = vld [vmem:[%s1 + $0xd28] sm:$0xff]
  %v485 = vld [vmem:[%s1 + $0xd30] sm:$0xff]
  %v486 = vld [vmem:[%s1 + $0xd38] sm:$0xff]
  %v487 = vld [vmem:[%s1 + $0xd40] sm:$0xff]
  %v488 = vld [vmem:[%s1 + $0xd48] sm:$0xff]
  %v489 = vld [vmem:[%s1 + $0xd50] sm:$0xff]
  %v490 = vld [vmem:[%s1 + $0xd58] sm:$0xff]
  %v491 = vld [vmem:[%s1 + $0xd60] sm:$0xff]
  %v492 = vld [vmem:[%s1 + $0xd68] sm:$0xff]
  %v493 = vld [vmem:[%s1 + $0xd70] sm:$0xff]
  %v494 = vld [vmem:[%s1 + $0xd78] sm:$0xff]
  %v495 = vld [vmem:[%s1 + $0xd80] sm:$0xff]
  %v496 = vld [vmem:[%s1 + $0xd88] sm:$0xff]
  %v497 = vld [vmem:[%s1 + $0xd90] sm:$0xff]
  %v498 = vld [vmem:[%s1 + $0xd98] sm:$0xff]
  %v499 = vld [vmem:[%s1 + $0xda0] sm:$0xff]
  %v500 = vld [vmem:[%s1 + $0xda8] sm:$0xff]
  %v501 = vld [vmem:[%s1 + $0xdb0] sm:$0xff]
  %v502 = vld [vmem:[%s1 + $0xdb8] sm:$0xff]
  %v503 = vld [vmem:[%s1 + $0xdc0] sm:$0xff]
  %v504 = vld [vmem:[%s1 + $0xdc8] sm:$0xff]
  %v505 = vld [vmem:[%s1 + $0xdd0] sm:$0xff]
  %v506 = vld [vmem:[%s1 + $0xdd8] sm:$0xff]
  %v507 = vld [vmem:[%s1 + $0xde0] sm:$0xff]
  %v508 = vld [vmem:[%s1 + $0xde8] sm:$0xff]
  %v509 = vld [vmem:[%s1 + $0xdf0] sm:$0xff]
  %v510 = vld [vmem:[%s1 + $0xdf8] sm:$0xff]
  %v511 = vld [vmem:[%s1 + $0xe00] sm:$0xff]
  %v512 = vld [vmem:[%s1 + $0xe08] sm:$0xff]
  %v513 = vld [vmem:[%s1 + $0xe10] sm:$0xff]
  %v514 = vld [vmem:[%s1 + $0xe18] sm:$0xff]
  %v515 = vld [vmem:[%s1 + $0xe20] sm:$0xff]
  %v516 = vld [vmem:[%s1 + $0xe28] sm:$0xff]
  %v517 = vld [vmem:[%s1 + $0xe30] sm:$0xff]
  %v518 = vld [vmem:[%s1 + $0xe38] sm:$0xff]
  %v519 = vld [vmem:[%s1 + $0xe40] sm:$0xff]
  %v520 = vld [vmem:[%s1 + $0xe48] sm:$0xff]
  %v521 = vld [vmem:[%s1 + $0xe50] sm:$0xff]
  %v522 = vld [vmem:[%s1 + $0xe58] sm:$0xff]
  %v523 = vld [vmem:[%s1 + $0xe60] sm:$0xff]
  %v524 = vld [vmem:[%s1 + $0xe68] sm:$0xff]
  %v525 = vld [vmem:[%s1 + $0xe70] sm:$0xff]
  %v526 = vld [vmem:[%s1 + $0xe78] sm:$0xff]
  %v527 = vld [vmem:[%s1 + $0xe80] sm:$0xff]
  %v528 = vld [vmem:[%s1 + $0xe88] sm:$0xff]
  %v529 = vld [vmem:[%s1 + $0xe90] sm:$0xff]
  %v530 = vld [vmem:[%s1 + $0xe98] sm:$0xff]
  %v531 = vld [vmem:[%s1 + $0xea0] sm:$0xff]
  %v532 = vld [vmem:[%s1 + $0xea8] sm:$0xff]
  %v533 = vld [vmem:[%s1 + $0xeb0] sm:$0xff]
  %v534 = vld [vmem:[%s1 + $0xeb8] sm:$0xff]
  %v535 = vld [vmem:[%s1 + $0xec0] sm:$0xff]
  %v536 = vld [vmem:[%s1 + $0xec8] sm:$0xff]
  %v537 = vld [vmem:[%s1 + $0xed0] sm:$0xff]
  %v538 = vld [vmem:[%s1 + $0xed8] sm:$0xff]
  %v539 = vld [vmem:[%s1 + $0xee0] sm:$0xff]
  %v540 = vld [vmem:[%s1 + $0xee8] sm:$0xff]
  %v541 = vld [vmem:[%s1 + $0xef0] sm:$0xff]
  %v542 = vld [vmem:[%s1 + $0xef8] sm:$0xff]
  %v543 = vld [vmem:[%s1 + $0xf00] sm:$0xff]
  %v544 = vld [vmem:[%s1 + $0xf08] sm:$0xff]
  %v545 = vld [vmem:[%s1 + $0xf10] sm:$0xff]
  %v546 = vld [vmem:[%s1 + $0xf18] sm:$0xff]
  %v547 = vld [vmem:[%s1 + $0xf20] sm:$0xff]
  %v548 = vld [vmem:[%s1 + $0xf28] sm:$0xff]
  %v549 = vld [vmem:[%s1 + $0xf30] sm:$0xff]
  %v550 = vld [vmem:[%s1 + $0xf38] sm:$0xff]
  %v551 = vld [vmem:[%s1 + $0xf40] sm:$0xff]
  %v552 = vld [vmem:[%s1 + $0xf48] sm:$0xff]
  %v553 = vld [vmem:[%s1 + $0xf50] sm:$0xff]
  %v554 = vld [vmem:[%s1 + $0xf58] sm:$0xff]
  %v555 = vld [vmem:[%s1 + $0xf60] sm:$0xff]
  %v556 = vld [vmem:[%s1 + $0xf68] sm:$0xff]
  %v557 = vld [vmem:[%s1 + $0xf70] sm:$0xff]
  %v558 = vld [vmem:[%s1 + $0xf78] sm:$0xff]
  %v559 = vld [vmem:[%s1 + $0xf80] sm:$0xff]
  %v560 = vld [vmem:[%s1 + $0xf88] sm:$0xff]
  %v561 = vld [vmem:[%s1 + $0xf90] sm:$0xff]
  %v562 = vld [vmem:[%s1 + $0xf98] sm:$0xff]
  %v563 = vld [vmem:[%s1 + $0xfa0] sm:$0xff]
  %v564 = vld [vmem:[%s1 + $0xfa8] sm:$0xff]
  %v565 = vld [vmem:[%s1 + $0xfb0] sm:$0xff]
  %v566 = vld [vmem:[%s1 + $0xfb8] sm:$0xff]
  %v567 = vld [vmem:[%s1 + $0xfc0] sm:$0xff]
  %v568 = vld [vmem:[%s1 + $0xfc8] sm:$0xff]
  %v569 = vld [vmem:[%s1 + $0xfd0] sm:$0xff]
  %v570 = vld [vmem:[%s1 + $0xfd8] sm:$0xff]
  %v571 = vld [vmem:[%s1 + $0xfe0] sm:$0xff]
  %v572 = vld [vmem:[%s1 + $0xfe8] sm:$0xff]
  %v573 = vld [vmem:[%s1 + $0xff0] sm:$0xff]
  %v574 = vld [vmem:[%s1 + $0xff8] sm:$0xff]
  %v575 = vld [vmem:[%s1 + $0x1000] sm:$0xff]
  %v576 = vld [vmem:[%s1 + $0x1008] sm:$0xff]
  %v577 = vld [vmem:[%s1 + $0x1010] sm:$0xff]
  %v578 = vld [vmem:[%s1 + $0x1018] sm:$0xff]
  %v579 = vld [vmem:[%s1 + $0x1020] sm:$0xff]
  %v580 = vld [vmem:[%s1 + $0x1028] sm:$0xff]
  %v581 = vld [vmem:[%s1 + $0x1030] sm:$0xff]
  %v582 = vld [vmem:[%s1 + $0x1038] sm:$0xff]
  %v583 = vld [vmem:[%s1 + $0x1040] sm:$0xff]
  %v584 = vld [vmem:[%s1 + $0x1048] sm:$0xff]
  %v585 = vld [vmem:[%s1 + $0x1050] sm:$0xff]
  %v586 = vld [vmem:[%s1 + $0x1058] sm:$0xff]
  %v587 = vld [vmem:[%s1 + $0x1060] sm:$0xff]
  %v588 = vld [vmem:[%s1 + $0x1068] sm:$0xff]
  %v589 = vld [vmem:[%s1 + $0x1070] sm:$0xff]
  %v590 = vld [vmem:[%s1 + $0x1078] sm:$0xff]
  %v591 = vld [vmem:[%s1 + $0x1080] sm:$0xff]
  %v592 = vld [vmem:[%s1 + $0x1088] sm:$0xff]
  %v593 = vld [vmem:[%s1 + $0x1090] sm:$0xff]
  %v594 = vld [vmem:[%s1 + $0x1098] sm:$0xff]
  %v595 = vld [vmem:[%s1 + $0x10a0] sm:$0xff]
  %v596 = vld [vmem:[%s1 + $0x10a8] sm:$0xff]
  %v597 = vld [vmem:[%s1 + $0x10b0] sm:$0xff]
  %v598 = vld [vmem:[%s1 + $0x10b8] sm:$0xff]
  %v599 = vld [vmem:[%s1 + $0x10c0] sm:$0xff]
  %v600 = vld [vmem:[%s1 + $0x10c8] sm:$0xff]
  %v601 = vld [vmem:[%s1 + $0x10d0] sm:$0xff]
  %v602 = vld [vmem:[%s1 + $0x10d8] sm:$0xff]
  %v603 = vld [vmem:[%s1 + $0x10e0] sm:$0xff]
  %v604 = vld [vmem:[%s1 + $0x10e8] sm:$0xff]
  %v605 = vld [vmem:[%s1 + $0x10f0] sm:$0xff]
  %v606 = vld [vmem:[%s1 + $0x10f8] sm:$0xff]
  %v607 = vld [vmem:[%s1 + $0x1100] sm:$0xff]
  %v608 = vld [vmem:[%s1 + $0x1108] sm:$0xff]
  %v609 = vld [vmem:[%s1 + $0x1110] sm:$0xff]
  %v610 = vld [vmem:[%s1 + $0x1118] sm:$0xff]
  %v611 = vld [vmem:[%s1 + $0x1120] sm:$0xff]
  %v612 = vld [vmem:[%s1 + $0x1128] sm:$0xff]
  %v613 = vld [vmem:[%s1 + $0x1130] sm:$0xff]
  %v614 = vld [vmem:[%s1 + $0x1138] sm:$0xff]
  %v615 = vld [vmem:[%s1 + $0x1140] sm:$0xff]
  %v616 = vld [vmem:[%s1 + $0x1148] sm:$0xff]
  %v617 = vld [vmem:[%s1 + $0x1150] sm:$0xff]
  %v618 = vld [vmem:[%s1 + $0x1158] sm:$0xff]
  %v619 = vld [vmem:[%s1 + $0x1160] sm:$0xff]
  %v620 = vld [vmem:[%s1 + $0x1168] sm:$0xff]
  %v621 = vld [vmem:[%s1 + $0x1170] sm:$0xff]
  %v622 = vld [vmem:[%s1 + $0x1178] sm:$0xff]
  %v623 = vld [vmem:[%s1 + $0x1180] sm:$0xff]
  %v624 = vld [vmem:[%s1 + $0x1188] sm:$0xff]
  %v625 = vld [vmem:[%s1 + $0x1190] sm:$0xff]
  %v626 = vld [vmem:[%s1 + $0x1198] sm:$0xff]
  %v627 = vld [vmem:[%s1 + $0x11a0] sm:$0xff]
  %v628 = vld [vmem:[%s1 + $0x11a8] sm:$0xff]
  %v629 = vld [vmem:[%s1 + $0x11b0] sm:$0xff]
  %v630 = vld [vmem:[%s1 + $0x11b8] sm:$0xff]
  %v631 = vld [vmem:[%s1 + $0x11c0] sm:$0xff]
  %v632 = vld [vmem:[%s1 + $0x11c8] sm:$0xff]
  %v633 = vld [vmem:[%s1 + $0x11d0] sm:$0xff]
  %v634 = vld [vmem:[%s1 + $0x11d8] sm:$0xff]
  %v635 = vld [vmem:[%s1 + $0x11e0] sm:$0xff]
  %v636 = vld [vmem:[%s1 + $0x11e8] sm:$0xff]
  %v637 = vld [vmem:[%s1 + $0x11f0] sm:$0xff]
  %v638 = vld [vmem:[%s1 + $0x11f8] sm:$0xff]
  %v639 = vld [vmem:[%s2] sm:$0xf]
  %v641 = vlaneseq
  %v642 = vshrl.u32 %v641, 7
  %v643 = vsub.s32 0, %v642
  %v644 = vrot.slane %v639, %v643
  %v645 = vlaneseq
  %v646 = vshrl.u32 %v645, 7
  %v647 = vsub.s32 1, %v646
  %v648 = vrot.slane %v639, %v647
  %v649 = vlaneseq
  %v650 = vshrl.u32 %v649, 7
  %v651 = vsub.s32 2, %v650
  %v652 = vrot.slane %v639, %v651
  %v653 = vlaneseq
  %v654 = vshrl.u32 %v653, 7
  %v655 = vsub.s32 3, %v654
  %v656 = vrot.slane %v639, %v655
  %v1237 = vunpack.c.l.b16 %v63
  %v1238 = vunpack.c.h.b16 %v63
  %v1239 = vunpack.c.l.b16 %v64
  %v1240 = vunpack.c.h.b16 %v64
  %v1241 = vunpack.c.l.b16 %v65
  %v1242 = vunpack.c.h.b16 %v65
  %v1243 = vunpack.c.l.b16 %v66
  %v1244 = vunpack.c.h.b16 %v66
  %v1245 = vunpack.c.l.b16 %v67
  %v1246 = vunpack.c.h.b16 %v67
  %v1247 = vunpack.c.l.b16 %v68
  %v1248 = vunpack.c.h.b16 %v68
  %v1249 = vunpack.c.l.b16 %v69
  %v1250 = vunpack.c.h.b16 %v69
  %v1251 = vunpack.c.l.b16 %v70
  %v1252 = vunpack.c.h.b16 %v70
  %v1253 = vunpack.c.l.b16 %v71
  %v1254 = vunpack.c.h.b16 %v71
  %v1255 = vunpack.c.l.b16 %v72
  %v1256 = vunpack.c.h.b16 %v72
  %v1257 = vunpack.c.l.b16 %v73
  %v1258 = vunpack.c.h.b16 %v73
  %v1259 = vunpack.c.l.b16 %v74
  %v1260 = vunpack.c.h.b16 %v74
  %v1261 = vunpack.c.l.b16 %v75
  %v1262 = vunpack.c.h.b16 %v75
  %v1263 = vunpack.c.l.b16 %v76
  %v1264 = vunpack.c.h.b16 %v76
  %v1265 = vunpack.c.l.b16 %v77
  %v1266 = vunpack.c.h.b16 %v77
  %v1267 = vunpack.c.l.b16 %v78
  %v1268 = vunpack.c.h.b16 %v78
  %v1269 = vunpack.c.l.b16 %v79
  %v1270 = vunpack.c.h.b16 %v79
  %v1271 = vunpack.c.l.b16 %v80
  %v1272 = vunpack.c.h.b16 %v80
  %v1273 = vunpack.c.l.b16 %v81
  %v1274 = vunpack.c.h.b16 %v81
  %v1275 = vunpack.c.l.b16 %v82
  %v1276 = vunpack.c.h.b16 %v82
  %v1277 = vunpack.c.l.b16 %v83
  %v1278 = vunpack.c.h.b16 %v83
  %v1279 = vunpack.c.l.b16 %v84
  %v1280 = vunpack.c.h.b16 %v84
  %v1281 = vunpack.c.l.b16 %v85
  %v1282 = vunpack.c.h.b16 %v85
  %v1283 = vunpack.c.l.b16 %v86
  %v1284 = vunpack.c.h.b16 %v86
  %v1285 = vunpack.c.l.b16 %v87
  %v1286 = vunpack.c.h.b16 %v87
  %v1287 = vunpack.c.l.b16 %v88
  %v1288 = vunpack.c.h.b16 %v88
  %v1289 = vunpack.c.l.b16 %v89
  %v1290 = vunpack.c.h.b16 %v89
  %v1291 = vunpack.c.l.b16 %v90
  %v1292 = vunpack.c.h.b16 %v90
  %v1293 = vunpack.c.l.b16 %v91
  %v1294 = vunpack.c.h.b16 %v91
  %v1295 = vunpack.c.l.b16 %v92
  %v1296 = vunpack.c.h.b16 %v92
  %v1297 = vunpack.c.l.b16 %v93
  %v1298 = vunpack.c.h.b16 %v93
  %v1299 = vunpack.c.l.b16 %v94
  %v1300 = vunpack.c.h.b16 %v94
  %v1301 = vunpack.c.l.b16 %v95
  %v1302 = vunpack.c.h.b16 %v95
  %v1303 = vunpack.c.l.b16 %v96
  %v1304 = vunpack.c.h.b16 %v96
  %v1305 = vunpack.c.l.b16 %v97
  %v1306 = vunpack.c.h.b16 %v97
  %v1307 = vunpack.c.l.b16 %v98
  %v1308 = vunpack.c.h.b16 %v98
  %v1309 = vunpack.c.l.b16 %v99
  %v1310 = vunpack.c.h.b16 %v99
  %v1311 = vunpack.c.l.b16 %v100
  %v1312 = vunpack.c.h.b16 %v100
  %v1313 = vunpack.c.l.b16 %v101
  %v1314 = vunpack.c.h.b16 %v101
  %v1315 = vunpack.c.l.b16 %v102
  %v1316 = vunpack.c.h.b16 %v102
  %v1317 = vunpack.c.l.b16 %v103
  %v1318 = vunpack.c.h.b16 %v103
  %v1319 = vunpack.c.l.b16 %v104
  %v1320 = vunpack.c.h.b16 %v104
  %v1321 = vunpack.c.l.b16 %v105
  %v1322 = vunpack.c.h.b16 %v105
  %v1323 = vunpack.c.l.b16 %v106
  %v1324 = vunpack.c.h.b16 %v106
  %v1325 = vunpack.c.l.b16 %v107
  %v1326 = vunpack.c.h.b16 %v107
  %v1327 = vunpack.c.l.b16 %v108
  %v1328 = vunpack.c.h.b16 %v108
  %v1329 = vunpack.c.l.b16 %v109
  %v1330 = vunpack.c.h.b16 %v109
  %v1331 = vunpack.c.l.b16 %v110
  %v1332 = vunpack.c.h.b16 %v110
  %v1333 = vunpack.c.l.b16 %v111
  %v1334 = vunpack.c.h.b16 %v111
  %v1335 = vunpack.c.l.b16 %v112
  %v1336 = vunpack.c.h.b16 %v112
  %v1337 = vunpack.c.l.b16 %v113
  %v1338 = vunpack.c.h.b16 %v113
  %v1339 = vunpack.c.l.b16 %v114
  %v1340 = vunpack.c.h.b16 %v114
  %v1341 = vunpack.c.l.b16 %v115
  %v1342 = vunpack.c.h.b16 %v115
  %v1343 = vunpack.c.l.b16 %v116
  %v1344 = vunpack.c.h.b16 %v116
  %v1345 = vunpack.c.l.b16 %v117
  %v1346 = vunpack.c.h.b16 %v117
  %v1347 = vunpack.c.l.b16 %v118
  %v1348 = vunpack.c.h.b16 %v118
  %v1349 = vunpack.c.l.b16 %v119
  %v1350 = vunpack.c.h.b16 %v119
  %v1351 = vunpack.c.l.b16 %v120
  %v1352 = vunpack.c.h.b16 %v120
  %v1353 = vunpack.c.l.b16 %v121
  %v1354 = vunpack.c.h.b16 %v121
  %v1355 = vunpack.c.l.b16 %v122
  %v1356 = vunpack.c.h.b16 %v122
  %v1357 = vunpack.c.l.b16 %v123
  %v1358 = vunpack.c.h.b16 %v123
  %v1359 = vunpack.c.l.b16 %v124
  %v1360 = vunpack.c.h.b16 %v124
  %v1361 = vunpack.c.l.b16 %v125
  %v1362 = vunpack.c.h.b16 %v125
  %v1363 = vunpack.c.l.b16 %v126
  %v1364 = vunpack.c.h.b16 %v126
  %v1365 = vunpack.c.l.b16 %v127
  %v1366 = vunpack.c.h.b16 %v127
  %v1367 = vunpack.c.l.b16 %v128
  %v1368 = vunpack.c.h.b16 %v128
  %v1369 = vunpack.c.l.b16 %v129
  %v1370 = vunpack.c.h.b16 %v129
  %v1371 = vunpack.c.l.b16 %v130
  %v1372 = vunpack.c.h.b16 %v130
  %v1373 = vunpack.c.l.b16 %v131
  %v1374 = vunpack.c.h.b16 %v131
  %v1375 = vunpack.c.l.b16 %v132
  %v1376 = vunpack.c.h.b16 %v132
  %v1377 = vunpack.c.l.b16 %v133
  %v1378 = vunpack.c.h.b16 %v133
  %v1379 = vunpack.c.l.b16 %v134
  %v1380 = vunpack.c.h.b16 %v134
  %v1381 = vunpack.c.l.b16 %v135
  %v1382 = vunpack.c.h.b16 %v135
  %v1383 = vunpack.c.l.b16 %v136
  %v1384 = vunpack.c.h.b16 %v136
  %v1385 = vunpack.c.l.b16 %v137
  %v1386 = vunpack.c.h.b16 %v137
  %v1387 = vunpack.c.l.b16 %v138
  %v1388 = vunpack.c.h.b16 %v138
  %v1389 = vunpack.c.l.b16 %v139
  %v1390 = vunpack.c.h.b16 %v139
  %v1391 = vunpack.c.l.b16 %v140
  %v1392 = vunpack.c.h.b16 %v140
  %v1393 = vunpack.c.l.b16 %v141
  %v1394 = vunpack.c.h.b16 %v141
  %v1395 = vunpack.c.l.b16 %v142
  %v1396 = vunpack.c.h.b16 %v142
  %v1397 = vunpack.c.l.b16 %v143
  %v1398 = vunpack.c.h.b16 %v143
  %v1399 = vunpack.c.l.b16 %v144
  %v1400 = vunpack.c.h.b16 %v144
  %v1401 = vunpack.c.l.b16 %v145
  %v1402 = vunpack.c.h.b16 %v145
  %v1403 = vunpack.c.l.b16 %v146
  %v1404 = vunpack.c.h.b16 %v146
  %v1405 = vunpack.c.l.b16 %v147
  %v1406 = vunpack.c.h.b16 %v147
  %v1407 = vunpack.c.l.b16 %v148
  %v1408 = vunpack.c.h.b16 %v148
  %v1409 = vunpack.c.l.b16 %v149
  %v1410 = vunpack.c.h.b16 %v149
  %v1411 = vunpack.c.l.b16 %v150
  %v1412 = vunpack.c.h.b16 %v150
  %v1413 = vunpack.c.l.b16 %v151
  %v1414 = vunpack.c.h.b16 %v151
  %v1415 = vunpack.c.l.b16 %v152
  %v1416 = vunpack.c.h.b16 %v152
  %v1417 = vunpack.c.l.b16 %v153
  %v1418 = vunpack.c.h.b16 %v153
  %v1419 = vunpack.c.l.b16 %v154
  %v1420 = vunpack.c.h.b16 %v154
  %v1421 = vunpack.c.l.b16 %v155
  %v1422 = vunpack.c.h.b16 %v155
  %v1423 = vunpack.c.l.b16 %v156
  %v1424 = vunpack.c.h.b16 %v156
  %v1425 = vunpack.c.l.b16 %v157
  %v1426 = vunpack.c.h.b16 %v157
  %v1427 = vunpack.c.l.b16 %v158
  %v1428 = vunpack.c.h.b16 %v158
  %v1429 = vunpack.c.l.b16 %v159
  %v1430 = vunpack.c.h.b16 %v159
  %v1431 = vunpack.c.l.b16 %v160
  %v1432 = vunpack.c.h.b16 %v160
  %v1433 = vunpack.c.l.b16 %v161
  %v1434 = vunpack.c.h.b16 %v161
  %v1435 = vunpack.c.l.b16 %v162
  %v1436 = vunpack.c.h.b16 %v162
  %v1437 = vunpack.c.l.b16 %v163
  %v1438 = vunpack.c.h.b16 %v163
  %v1439 = vunpack.c.l.b16 %v164
  %v1440 = vunpack.c.h.b16 %v164
  %v1441 = vunpack.c.l.b16 %v165
  %v1442 = vunpack.c.h.b16 %v165
  %v1443 = vunpack.c.l.b16 %v166
  %v1444 = vunpack.c.h.b16 %v166
  %v1445 = vunpack.c.l.b16 %v167
  %v1446 = vunpack.c.h.b16 %v167
  %v1447 = vunpack.c.l.b16 %v168
  %v1448 = vunpack.c.h.b16 %v168
  %v1449 = vunpack.c.l.b16 %v169
  %v1450 = vunpack.c.h.b16 %v169
  %v1451 = vunpack.c.l.b16 %v170
  %v1452 = vunpack.c.h.b16 %v170
  %v1453 = vunpack.c.l.b16 %v171
  %v1454 = vunpack.c.h.b16 %v171
  %v1455 = vunpack.c.l.b16 %v172
  %v1456 = vunpack.c.h.b16 %v172
  %v1457 = vunpack.c.l.b16 %v173
  %v1458 = vunpack.c.h.b16 %v173
  %v1459 = vunpack.c.l.b16 %v174
  %v1460 = vunpack.c.h.b16 %v174
  %v1461 = vunpack.c.l.b16 %v175
  %v1462 = vunpack.c.h.b16 %v175
  %v1463 = vunpack.c.l.b16 %v176
  %v1464 = vunpack.c.h.b16 %v176
  %v1465 = vunpack.c.l.b16 %v177
  %v1466 = vunpack.c.h.b16 %v177
  %v1467 = vunpack.c.l.b16 %v178
  %v1468 = vunpack.c.h.b16 %v178
  %v1469 = vunpack.c.l.b16 %v179
  %v1470 = vunpack.c.h.b16 %v179
  %v1471 = vunpack.c.l.b16 %v180
  %v1472 = vunpack.c.h.b16 %v180
  %v1473 = vunpack.c.l.b16 %v181
  %v1474 = vunpack.c.h.b16 %v181
  %v1475 = vunpack.c.l.b16 %v182
  %v1476 = vunpack.c.h.b16 %v182
  %v1477 = vunpack.c.l.b16 %v183
  %v1478 = vunpack.c.h.b16 %v183
  %v1479 = vunpack.c.l.b16 %v184
  %v1480 = vunpack.c.h.b16 %v184
  %v1481 = vunpack.c.l.b16 %v185
  %v1482 = vunpack.c.h.b16 %v185
  %v1483 = vunpack.c.l.b16 %v186
  %v1484 = vunpack.c.h.b16 %v186
  %v1485 = vunpack.c.l.b16 %v187
  %v1486 = vunpack.c.h.b16 %v187
  %v1487 = vunpack.c.l.b16 %v188
  %v1488 = vunpack.c.h.b16 %v188
  %v1489 = vunpack.c.l.b16 %v189
  %v1490 = vunpack.c.h.b16 %v189
  %v1491 = vunpack.c.l.b16 %v190
  %v1492 = vunpack.c.h.b16 %v190
  %v1493 = vunpack.c.l.b16 %v191
  %v1494 = vunpack.c.h.b16 %v191
  %v1495 = vunpack.c.l.b16 %v192
  %v1496 = vunpack.c.h.b16 %v192
  %v1497 = vunpack.c.l.b16 %v193
  %v1498 = vunpack.c.h.b16 %v193
  %v1499 = vunpack.c.l.b16 %v194
  %v1500 = vunpack.c.h.b16 %v194
  %v1501 = vunpack.c.l.b16 %v195
  %v1502 = vunpack.c.h.b16 %v195
  %v1503 = vunpack.c.l.b16 %v196
  %v1504 = vunpack.c.h.b16 %v196
  %v1505 = vunpack.c.l.b16 %v197
  %v1506 = vunpack.c.h.b16 %v197
  %v1507 = vunpack.c.l.b16 %v198
  %v1508 = vunpack.c.h.b16 %v198
  %v1509 = vunpack.c.l.b16 %v199
  %v1510 = vunpack.c.h.b16 %v199
  %v1511 = vunpack.c.l.b16 %v200
  %v1512 = vunpack.c.h.b16 %v200
  %v1513 = vunpack.c.l.b16 %v201
  %v1514 = vunpack.c.h.b16 %v201
  %v1515 = vunpack.c.l.b16 %v202
  %v1516 = vunpack.c.h.b16 %v202
  %v1517 = vunpack.c.l.b16 %v203
  %v1518 = vunpack.c.h.b16 %v203
  %v1519 = vunpack.c.l.b16 %v204
  %v1520 = vunpack.c.h.b16 %v204
  %v1521 = vunpack.c.l.b16 %v205
  %v1522 = vunpack.c.h.b16 %v205
  %v1523 = vunpack.c.l.b16 %v206
  %v1524 = vunpack.c.h.b16 %v206
  %v1525 = vunpack.c.l.b16 %v207
  %v1526 = vunpack.c.h.b16 %v207
  %v1527 = vunpack.c.l.b16 %v208
  %v1528 = vunpack.c.h.b16 %v208
  %v1529 = vunpack.c.l.b16 %v209
  %v1530 = vunpack.c.h.b16 %v209
  %v1531 = vunpack.c.l.b16 %v210
  %v1532 = vunpack.c.h.b16 %v210
  %v1533 = vunpack.c.l.b16 %v211
  %v1534 = vunpack.c.h.b16 %v211
  %v1535 = vunpack.c.l.b16 %v212
  %v1536 = vunpack.c.h.b16 %v212
  %v1537 = vunpack.c.l.b16 %v213
  %v1538 = vunpack.c.h.b16 %v213
  %v1539 = vunpack.c.l.b16 %v214
  %v1540 = vunpack.c.h.b16 %v214
  %v1541 = vunpack.c.l.b16 %v215
  %v1542 = vunpack.c.h.b16 %v215
  %v1543 = vunpack.c.l.b16 %v216
  %v1544 = vunpack.c.h.b16 %v216
  %v1545 = vunpack.c.l.b16 %v217
  %v1546 = vunpack.c.h.b16 %v217
  %v1547 = vunpack.c.l.b16 %v218
  %v1548 = vunpack.c.h.b16 %v218
  %v1549 = vunpack.c.l.b16 %v219
  %v1550 = vunpack.c.h.b16 %v219
  %v1551 = vunpack.c.l.b16 %v220
  %v1552 = vunpack.c.h.b16 %v220
  %v1553 = vunpack.c.l.b16 %v221
  %v1554 = vunpack.c.h.b16 %v221
  %v1555 = vunpack.c.l.b16 %v222
  %v1556 = vunpack.c.h.b16 %v222
  %v1557 = vunpack.c.l.b16 %v223
  %v1558 = vunpack.c.h.b16 %v223
  %v1559 = vunpack.c.l.b16 %v224
  %v1560 = vunpack.c.h.b16 %v224
  %v1561 = vunpack.c.l.b16 %v225
  %v1562 = vunpack.c.h.b16 %v225
  %v1563 = vunpack.c.l.b16 %v226
  %v1564 = vunpack.c.h.b16 %v226
  %v1565 = vunpack.c.l.b16 %v227
  %v1566 = vunpack.c.h.b16 %v227
  %v1567 = vunpack.c.l.b16 %v228
  %v1568 = vunpack.c.h.b16 %v228
  %v1569 = vunpack.c.l.b16 %v229
  %v1570 = vunpack.c.h.b16 %v229
  %v1571 = vunpack.c.l.b16 %v230
  %v1572 = vunpack.c.h.b16 %v230
  %v1573 = vunpack.c.l.b16 %v231
  %v1574 = vunpack.c.h.b16 %v231
  %v1575 = vunpack.c.l.b16 %v232
  %v1576 = vunpack.c.h.b16 %v232
  %v1577 = vunpack.c.l.b16 %v233
  %v1578 = vunpack.c.h.b16 %v233
  %v1579 = vunpack.c.l.b16 %v234
  %v1580 = vunpack.c.h.b16 %v234
  %v1581 = vunpack.c.l.b16 %v235
  %v1582 = vunpack.c.h.b16 %v235
  %v1583 = vunpack.c.l.b16 %v236
  %v1584 = vunpack.c.h.b16 %v236
  %v1585 = vunpack.c.l.b16 %v237
  %v1586 = vunpack.c.h.b16 %v237
  %v1587 = vunpack.c.l.b16 %v238
  %v1588 = vunpack.c.h.b16 %v238
  %v1589 = vunpack.c.l.b16 %v239
  %v1590 = vunpack.c.h.b16 %v239
  %v1591 = vunpack.c.l.b16 %v240
  %v1592 = vunpack.c.h.b16 %v240
  %v1593 = vunpack.c.l.b16 %v241
  %v1594 = vunpack.c.h.b16 %v241
  %v1595 = vunpack.c.l.b16 %v242
  %v1596 = vunpack.c.h.b16 %v242
  %v1597 = vunpack.c.l.b16 %v243
  %v1598 = vunpack.c.h.b16 %v243
  %v1599 = vunpack.c.l.b16 %v244
  %v1600 = vunpack.c.h.b16 %v244
  %v1601 = vunpack.c.l.b16 %v245
  %v1602 = vunpack.c.h.b16 %v245
  %v1603 = vunpack.c.l.b16 %v246
  %v1604 = vunpack.c.h.b16 %v246
  %v1605 = vunpack.c.l.b16 %v247
  %v1606 = vunpack.c.h.b16 %v247
  %v1607 = vunpack.c.l.b16 %v248
  %v1608 = vunpack.c.h.b16 %v248
  %v1609 = vunpack.c.l.b16 %v249
  %v1610 = vunpack.c.h.b16 %v249
  %v1611 = vunpack.c.l.b16 %v250
  %v1612 = vunpack.c.h.b16 %v250
  %v1613 = vunpack.c.l.b16 %v251
  %v1614 = vunpack.c.h.b16 %v251
  %v1615 = vunpack.c.l.b16 %v252
  %v1616 = vunpack.c.h.b16 %v252
  %v1617 = vunpack.c.l.b16 %v253
  %v1618 = vunpack.c.h.b16 %v253
  %v1619 = vunpack.c.l.b16 %v254
  %v1620 = vunpack.c.h.b16 %v254
  %v1621 = vunpack.c.l.b16 %v255
  %v1622 = vunpack.c.h.b16 %v255
  %v1623 = vunpack.c.l.b16 %v256
  %v1624 = vunpack.c.h.b16 %v256
  %v1625 = vunpack.c.l.b16 %v257
  %v1626 = vunpack.c.h.b16 %v257
  %v1627 = vunpack.c.l.b16 %v258
  %v1628 = vunpack.c.h.b16 %v258
  %v1629 = vunpack.c.l.b16 %v259
  %v1630 = vunpack.c.h.b16 %v259
  %v1631 = vunpack.c.l.b16 %v260
  %v1632 = vunpack.c.h.b16 %v260
  %v1633 = vunpack.c.l.b16 %v261
  %v1634 = vunpack.c.h.b16 %v261
  %v1635 = vunpack.c.l.b16 %v262
  %v1636 = vunpack.c.h.b16 %v262
  %v1637 = vunpack.c.l.b16 %v263
  %v1638 = vunpack.c.h.b16 %v263
  %v1639 = vunpack.c.l.b16 %v264
  %v1640 = vunpack.c.h.b16 %v264
  %v1641 = vunpack.c.l.b16 %v265
  %v1642 = vunpack.c.h.b16 %v265
  %v1643 = vunpack.c.l.b16 %v266
  %v1644 = vunpack.c.h.b16 %v266
  %v1645 = vunpack.c.l.b16 %v267
  %v1646 = vunpack.c.h.b16 %v267
  %v1647 = vunpack.c.l.b16 %v268
  %v1648 = vunpack.c.h.b16 %v268
  %v1649 = vunpack.c.l.b16 %v269
  %v1650 = vunpack.c.h.b16 %v269
  %v1651 = vunpack.c.l.b16 %v270
  %v1652 = vunpack.c.h.b16 %v270
  %v1653 = vunpack.c.l.b16 %v271
  %v1654 = vunpack.c.h.b16 %v271
  %v1655 = vunpack.c.l.b16 %v272
  %v1656 = vunpack.c.h.b16 %v272
  %v1657 = vunpack.c.l.b16 %v273
  %v1658 = vunpack.c.h.b16 %v273
  %v1659 = vunpack.c.l.b16 %v274
  %v1660 = vunpack.c.h.b16 %v274
  %v1661 = vunpack.c.l.b16 %v275
  %v1662 = vunpack.c.h.b16 %v275
  %v1663 = vunpack.c.l.b16 %v276
  %v1664 = vunpack.c.h.b16 %v276
  %v1665 = vunpack.c.l.b16 %v277
  %v1666 = vunpack.c.h.b16 %v277
  %v1667 = vunpack.c.l.b16 %v278
  %v1668 = vunpack.c.h.b16 %v278
  %v1669 = vunpack.c.l.b16 %v279
  %v1670 = vunpack.c.h.b16 %v279
  %v1671 = vunpack.c.l.b16 %v280
  %v1672 = vunpack.c.h.b16 %v280
  %v1673 = vunpack.c.l.b16 %v281
  %v1674 = vunpack.c.h.b16 %v281
  %v1675 = vunpack.c.l.b16 %v282
  %v1676 = vunpack.c.h.b16 %v282
  %v1677 = vunpack.c.l.b16 %v283
  %v1678 = vunpack.c.h.b16 %v283
  %v1679 = vunpack.c.l.b16 %v284
  %v1680 = vunpack.c.h.b16 %v284
  %v1681 = vunpack.c.l.b16 %v285
  %v1682 = vunpack.c.h.b16 %v285
  %v1683 = vunpack.c.l.b16 %v286
  %v1684 = vunpack.c.h.b16 %v286
  %v1685 = vunpack.c.l.b16 %v287
  %v1686 = vunpack.c.h.b16 %v287
  %v1687 = vunpack.c.l.b16 %v288
  %v1688 = vunpack.c.h.b16 %v288
  %v1689 = vunpack.c.l.b16 %v289
  %v1690 = vunpack.c.h.b16 %v289
  %v1691 = vunpack.c.l.b16 %v290
  %v1692 = vunpack.c.h.b16 %v290
  %v1693 = vunpack.c.l.b16 %v291
  %v1694 = vunpack.c.h.b16 %v291
  %v1695 = vunpack.c.l.b16 %v292
  %v1696 = vunpack.c.h.b16 %v292
  %v1697 = vunpack.c.l.b16 %v293
  %v1698 = vunpack.c.h.b16 %v293
  %v1699 = vunpack.c.l.b16 %v294
  %v1700 = vunpack.c.h.b16 %v294
  %v1701 = vunpack.c.l.b16 %v295
  %v1702 = vunpack.c.h.b16 %v295
  %v1703 = vunpack.c.l.b16 %v296
  %v1704 = vunpack.c.h.b16 %v296
  %v1705 = vunpack.c.l.b16 %v297
  %v1706 = vunpack.c.h.b16 %v297
  %v1707 = vunpack.c.l.b16 %v298
  %v1708 = vunpack.c.h.b16 %v298
  %v1709 = vunpack.c.l.b16 %v299
  %v1710 = vunpack.c.h.b16 %v299
  %v1711 = vunpack.c.l.b16 %v300
  %v1712 = vunpack.c.h.b16 %v300
  %v1713 = vunpack.c.l.b16 %v301
  %v1714 = vunpack.c.h.b16 %v301
  %v1715 = vunpack.c.l.b16 %v302
  %v1716 = vunpack.c.h.b16 %v302
  %v1717 = vunpack.c.l.b16 %v303
  %v1718 = vunpack.c.h.b16 %v303
  %v1719 = vunpack.c.l.b16 %v304
  %v1720 = vunpack.c.h.b16 %v304
  %v1721 = vunpack.c.l.b16 %v305
  %v1722 = vunpack.c.h.b16 %v305
  %v1723 = vunpack.c.l.b16 %v306
  %v1724 = vunpack.c.h.b16 %v306
  %v1725 = vunpack.c.l.b16 %v307
  %v1726 = vunpack.c.h.b16 %v307
  %v1727 = vunpack.c.l.b16 %v308
  %v1728 = vunpack.c.h.b16 %v308
  %v1729 = vunpack.c.l.b16 %v309
  %v1730 = vunpack.c.h.b16 %v309
  %v1731 = vunpack.c.l.b16 %v310
  %v1732 = vunpack.c.h.b16 %v310
  %v1733 = vunpack.c.l.b16 %v311
  %v1734 = vunpack.c.h.b16 %v311
  %v1735 = vunpack.c.l.b16 %v312
  %v1736 = vunpack.c.h.b16 %v312
  %v1737 = vunpack.c.l.b16 %v313
  %v1738 = vunpack.c.h.b16 %v313
  %v1739 = vunpack.c.l.b16 %v314
  %v1740 = vunpack.c.h.b16 %v314
  %v1741 = vunpack.c.l.b16 %v315
  %v1742 = vunpack.c.h.b16 %v315
  %v1743 = vunpack.c.l.b16 %v316
  %v1744 = vunpack.c.h.b16 %v316
  %v1745 = vunpack.c.l.b16 %v317
  %v1746 = vunpack.c.h.b16 %v317
  %v1747 = vunpack.c.l.b16 %v318
  %v1748 = vunpack.c.h.b16 %v318
  %v1749 = vunpack.c.l.b16 %v319
  %v1750 = vunpack.c.h.b16 %v319
  %v1751 = vunpack.c.l.b16 %v320
  %v1752 = vunpack.c.h.b16 %v320
  %v1753 = vunpack.c.l.b16 %v321
  %v1754 = vunpack.c.h.b16 %v321
  %v1755 = vunpack.c.l.b16 %v322
  %v1756 = vunpack.c.h.b16 %v322
  %v1757 = vunpack.c.l.b16 %v323
  %v1758 = vunpack.c.h.b16 %v323
  %v1759 = vunpack.c.l.b16 %v324
  %v1760 = vunpack.c.h.b16 %v324
  %v1761 = vunpack.c.l.b16 %v325
  %v1762 = vunpack.c.h.b16 %v325
  %v1763 = vunpack.c.l.b16 %v326
  %v1764 = vunpack.c.h.b16 %v326
  %v1765 = vunpack.c.l.b16 %v327
  %v1766 = vunpack.c.h.b16 %v327
  %v1767 = vunpack.c.l.b16 %v328
  %v1768 = vunpack.c.h.b16 %v328
  %v1769 = vunpack.c.l.b16 %v329
  %v1770 = vunpack.c.h.b16 %v329
  %v1771 = vunpack.c.l.b16 %v330
  %v1772 = vunpack.c.h.b16 %v330
  %v1773 = vunpack.c.l.b16 %v331
  %v1774 = vunpack.c.h.b16 %v331
  %v1775 = vunpack.c.l.b16 %v332
  %v1776 = vunpack.c.h.b16 %v332
  %v1777 = vunpack.c.l.b16 %v333
  %v1778 = vunpack.c.h.b16 %v333
  %v1779 = vunpack.c.l.b16 %v334
  %v1780 = vunpack.c.h.b16 %v334
  %v1781 = vunpack.c.l.b16 %v335
  %v1782 = vunpack.c.h.b16 %v335
  %v1783 = vunpack.c.l.b16 %v336
  %v1784 = vunpack.c.h.b16 %v336
  %v1785 = vunpack.c.l.b16 %v337
  %v1786 = vunpack.c.h.b16 %v337
  %v1787 = vunpack.c.l.b16 %v338
  %v1788 = vunpack.c.h.b16 %v338
  %v1789 = vunpack.c.l.b16 %v339
  %v1790 = vunpack.c.h.b16 %v339
  %v1791 = vunpack.c.l.b16 %v340
  %v1792 = vunpack.c.h.b16 %v340
  %v1793 = vunpack.c.l.b16 %v341
  %v1794 = vunpack.c.h.b16 %v341
  %v1795 = vunpack.c.l.b16 %v342
  %v1796 = vunpack.c.h.b16 %v342
  %v1797 = vunpack.c.l.b16 %v343
  %v1798 = vunpack.c.h.b16 %v343
  %v1799 = vunpack.c.l.b16 %v344
  %v1800 = vunpack.c.h.b16 %v344
  %v1801 = vunpack.c.l.b16 %v345
  %v1802 = vunpack.c.h.b16 %v345
  %v1803 = vunpack.c.l.b16 %v346
  %v1804 = vunpack.c.h.b16 %v346
  %v1805 = vunpack.c.l.b16 %v347
  %v1806 = vunpack.c.h.b16 %v347
  %v1807 = vunpack.c.l.b16 %v348
  %v1808 = vunpack.c.h.b16 %v348
  %v1809 = vunpack.c.l.b16 %v349
  %v1810 = vunpack.c.h.b16 %v349
  %v1811 = vunpack.c.l.b16 %v350
  %v1812 = vunpack.c.h.b16 %v350
  %v1813 = vunpack.c.l.b16 %v351
  %v1814 = vunpack.c.h.b16 %v351
  %v1815 = vunpack.c.l.b16 %v352
  %v1816 = vunpack.c.h.b16 %v352
  %v1817 = vunpack.c.l.b16 %v353
  %v1818 = vunpack.c.h.b16 %v353
  %v1819 = vunpack.c.l.b16 %v354
  %v1820 = vunpack.c.h.b16 %v354
  %v1821 = vunpack.c.l.b16 %v355
  %v1822 = vunpack.c.h.b16 %v355
  %v1823 = vunpack.c.l.b16 %v356
  %v1824 = vunpack.c.h.b16 %v356
  %v1825 = vunpack.c.l.b16 %v357
  %v1826 = vunpack.c.h.b16 %v357
  %v1827 = vunpack.c.l.b16 %v358
  %v1828 = vunpack.c.h.b16 %v358
  %v1829 = vunpack.c.l.b16 %v359
  %v1830 = vunpack.c.h.b16 %v359
  %v1831 = vunpack.c.l.b16 %v360
  %v1832 = vunpack.c.h.b16 %v360
  %v1833 = vunpack.c.l.b16 %v361
  %v1834 = vunpack.c.h.b16 %v361
  %v1835 = vunpack.c.l.b16 %v362
  %v1836 = vunpack.c.h.b16 %v362
  %v1837 = vunpack.c.l.b16 %v363
  %v1838 = vunpack.c.h.b16 %v363
  %v1839 = vunpack.c.l.b16 %v364
  %v1840 = vunpack.c.h.b16 %v364
  %v1841 = vunpack.c.l.b16 %v365
  %v1842 = vunpack.c.h.b16 %v365
  %v1843 = vunpack.c.l.b16 %v366
  %v1844 = vunpack.c.h.b16 %v366
  %v1845 = vunpack.c.l.b16 %v367
  %v1846 = vunpack.c.h.b16 %v367
  %v1847 = vunpack.c.l.b16 %v368
  %v1848 = vunpack.c.h.b16 %v368
  %v1849 = vunpack.c.l.b16 %v369
  %v1850 = vunpack.c.h.b16 %v369
  %v1851 = vunpack.c.l.b16 %v370
  %v1852 = vunpack.c.h.b16 %v370
  %v1853 = vunpack.c.l.b16 %v371
  %v1854 = vunpack.c.h.b16 %v371
  %v1855 = vunpack.c.l.b16 %v372
  %v1856 = vunpack.c.h.b16 %v372
  %v1857 = vunpack.c.l.b16 %v373
  %v1858 = vunpack.c.h.b16 %v373
  %v1859 = vunpack.c.l.b16 %v374
  %v1860 = vunpack.c.h.b16 %v374
  %v1861 = vunpack.c.l.b16 %v375
  %v1862 = vunpack.c.h.b16 %v375
  %v1863 = vunpack.c.l.b16 %v376
  %v1864 = vunpack.c.h.b16 %v376
  %v1865 = vunpack.c.l.b16 %v377
  %v1866 = vunpack.c.h.b16 %v377
  %v1867 = vunpack.c.l.b16 %v378
  %v1868 = vunpack.c.h.b16 %v378
  %v1869 = vunpack.c.l.b16 %v379
  %v1870 = vunpack.c.h.b16 %v379
  %v1871 = vunpack.c.l.b16 %v380
  %v1872 = vunpack.c.h.b16 %v380
  %v1873 = vunpack.c.l.b16 %v381
  %v1874 = vunpack.c.h.b16 %v381
  %v1875 = vunpack.c.l.b16 %v382
  %v1876 = vunpack.c.h.b16 %v382
  %v1877 = vunpack.c.l.b16 %v383
  %v1878 = vunpack.c.h.b16 %v383
  %v1879 = vunpack.c.l.b16 %v384
  %v1880 = vunpack.c.h.b16 %v384
  %v1881 = vunpack.c.l.b16 %v385
  %v1882 = vunpack.c.h.b16 %v385
  %v1883 = vunpack.c.l.b16 %v386
  %v1884 = vunpack.c.h.b16 %v386
  %v1885 = vunpack.c.l.b16 %v387
  %v1886 = vunpack.c.h.b16 %v387
  %v1887 = vunpack.c.l.b16 %v388
  %v1888 = vunpack.c.h.b16 %v388
  %v1889 = vunpack.c.l.b16 %v389
  %v1890 = vunpack.c.h.b16 %v389
  %v1891 = vunpack.c.l.b16 %v390
  %v1892 = vunpack.c.h.b16 %v390
  %v1893 = vunpack.c.l.b16 %v391
  %v1894 = vunpack.c.h.b16 %v391
  %v1895 = vunpack.c.l.b16 %v392
  %v1896 = vunpack.c.h.b16 %v392
  %v1897 = vunpack.c.l.b16 %v393
  %v1898 = vunpack.c.h.b16 %v393
  %v1899 = vunpack.c.l.b16 %v394
  %v1900 = vunpack.c.h.b16 %v394
  %v1901 = vunpack.c.l.b16 %v395
  %v1902 = vunpack.c.h.b16 %v395
  %v1903 = vunpack.c.l.b16 %v396
  %v1904 = vunpack.c.h.b16 %v396
  %v1905 = vunpack.c.l.b16 %v397
  %v1906 = vunpack.c.h.b16 %v397
  %v1907 = vunpack.c.l.b16 %v398
  %v1908 = vunpack.c.h.b16 %v398
  %v1909 = vunpack.c.l.b16 %v399
  %v1910 = vunpack.c.h.b16 %v399
  %v1911 = vunpack.c.l.b16 %v400
  %v1912 = vunpack.c.h.b16 %v400
  %v1913 = vunpack.c.l.b16 %v401
  %v1914 = vunpack.c.h.b16 %v401
  %v1915 = vunpack.c.l.b16 %v402
  %v1916 = vunpack.c.h.b16 %v402
  %v1917 = vunpack.c.l.b16 %v403
  %v1918 = vunpack.c.h.b16 %v403
  %v1919 = vunpack.c.l.b16 %v404
  %v1920 = vunpack.c.h.b16 %v404
  %v1921 = vunpack.c.l.b16 %v405
  %v1922 = vunpack.c.h.b16 %v405
  %v1923 = vunpack.c.l.b16 %v406
  %v1924 = vunpack.c.h.b16 %v406
  %v1925 = vunpack.c.l.b16 %v407
  %v1926 = vunpack.c.h.b16 %v407
  %v1927 = vunpack.c.l.b16 %v408
  %v1928 = vunpack.c.h.b16 %v408
  %v1929 = vunpack.c.l.b16 %v409
  %v1930 = vunpack.c.h.b16 %v409
  %v1931 = vunpack.c.l.b16 %v410
  %v1932 = vunpack.c.h.b16 %v410
  %v1933 = vunpack.c.l.b16 %v411
  %v1934 = vunpack.c.h.b16 %v411
  %v1935 = vunpack.c.l.b16 %v412
  %v1936 = vunpack.c.h.b16 %v412
  %v1937 = vunpack.c.l.b16 %v413
  %v1938 = vunpack.c.h.b16 %v413
  %v1939 = vunpack.c.l.b16 %v414
  %v1940 = vunpack.c.h.b16 %v414
  %v1941 = vunpack.c.l.b16 %v415
  %v1942 = vunpack.c.h.b16 %v415
  %v1943 = vunpack.c.l.b16 %v416
  %v1944 = vunpack.c.h.b16 %v416
  %v1945 = vunpack.c.l.b16 %v417
  %v1946 = vunpack.c.h.b16 %v417
  %v1947 = vunpack.c.l.b16 %v418
  %v1948 = vunpack.c.h.b16 %v418
  %v1949 = vunpack.c.l.b16 %v419
  %v1950 = vunpack.c.h.b16 %v419
  %v1951 = vunpack.c.l.b16 %v420
  %v1952 = vunpack.c.h.b16 %v420
  %v1953 = vunpack.c.l.b16 %v421
  %v1954 = vunpack.c.h.b16 %v421
  %v1955 = vunpack.c.l.b16 %v422
  %v1956 = vunpack.c.h.b16 %v422
  %v1957 = vunpack.c.l.b16 %v423
  %v1958 = vunpack.c.h.b16 %v423
  %v1959 = vunpack.c.l.b16 %v424
  %v1960 = vunpack.c.h.b16 %v424
  %v1961 = vunpack.c.l.b16 %v425
  %v1962 = vunpack.c.h.b16 %v425
  %v1963 = vunpack.c.l.b16 %v426
  %v1964 = vunpack.c.h.b16 %v426
  %v1965 = vunpack.c.l.b16 %v427
  %v1966 = vunpack.c.h.b16 %v427
  %v1967 = vunpack.c.l.b16 %v428
  %v1968 = vunpack.c.h.b16 %v428
  %v1969 = vunpack.c.l.b16 %v429
  %v1970 = vunpack.c.h.b16 %v429
  %v1971 = vunpack.c.l.b16 %v430
  %v1972 = vunpack.c.h.b16 %v430
  %v1973 = vunpack.c.l.b16 %v431
  %v1974 = vunpack.c.h.b16 %v431
  %v1975 = vunpack.c.l.b16 %v432
  %v1976 = vunpack.c.h.b16 %v432
  %v1977 = vunpack.c.l.b16 %v433
  %v1978 = vunpack.c.h.b16 %v433
  %v1979 = vunpack.c.l.b16 %v434
  %v1980 = vunpack.c.h.b16 %v434
  %v1981 = vunpack.c.l.b16 %v435
  %v1982 = vunpack.c.h.b16 %v435
  %v1983 = vunpack.c.l.b16 %v436
  %v1984 = vunpack.c.h.b16 %v436
  %v1985 = vunpack.c.l.b16 %v437
  %v1986 = vunpack.c.h.b16 %v437
  %v1987 = vunpack.c.l.b16 %v438
  %v1988 = vunpack.c.h.b16 %v438
  %v1989 = vunpack.c.l.b16 %v439
  %v1990 = vunpack.c.h.b16 %v439
  %v1991 = vunpack.c.l.b16 %v440
  %v1992 = vunpack.c.h.b16 %v440
  %v1993 = vunpack.c.l.b16 %v441
  %v1994 = vunpack.c.h.b16 %v441
  %v1995 = vunpack.c.l.b16 %v442
  %v1996 = vunpack.c.h.b16 %v442
  %v1997 = vunpack.c.l.b16 %v443
  %v1998 = vunpack.c.h.b16 %v443
  %v1999 = vunpack.c.l.b16 %v444
  %v2000 = vunpack.c.h.b16 %v444
  %v2001 = vunpack.c.l.b16 %v445
  %v2002 = vunpack.c.h.b16 %v445
  %v2003 = vunpack.c.l.b16 %v446
  %v2004 = vunpack.c.h.b16 %v446
  %v2005 = vunpack.c.l.b16 %v447
  %v2006 = vunpack.c.h.b16 %v447
  %v2007 = vunpack.c.l.b16 %v448
  %v2008 = vunpack.c.h.b16 %v448
  %v2009 = vunpack.c.l.b16 %v449
  %v2010 = vunpack.c.h.b16 %v449
  %v2011 = vunpack.c.l.b16 %v450
  %v2012 = vunpack.c.h.b16 %v450
  %v2013 = vunpack.c.l.b16 %v451
  %v2014 = vunpack.c.h.b16 %v451
  %v2015 = vunpack.c.l.b16 %v452
  %v2016 = vunpack.c.h.b16 %v452
  %v2017 = vunpack.c.l.b16 %v453
  %v2018 = vunpack.c.h.b16 %v453
  %v2019 = vunpack.c.l.b16 %v454
  %v2020 = vunpack.c.h.b16 %v454
  %v2021 = vunpack.c.l.b16 %v455
  %v2022 = vunpack.c.h.b16 %v455
  %v2023 = vunpack.c.l.b16 %v456
  %v2024 = vunpack.c.h.b16 %v456
  %v2025 = vunpack.c.l.b16 %v457
  %v2026 = vunpack.c.h.b16 %v457
  %v2027 = vunpack.c.l.b16 %v458
  %v2028 = vunpack.c.h.b16 %v458
  %v2029 = vunpack.c.l.b16 %v459
  %v2030 = vunpack.c.h.b16 %v459
  %v2031 = vunpack.c.l.b16 %v460
  %v2032 = vunpack.c.h.b16 %v460
  %v2033 = vunpack.c.l.b16 %v461
  %v2034 = vunpack.c.h.b16 %v461
  %v2035 = vunpack.c.l.b16 %v462
  %v2036 = vunpack.c.h.b16 %v462
  %v2037 = vunpack.c.l.b16 %v463
  %v2038 = vunpack.c.h.b16 %v463
  %v2039 = vunpack.c.l.b16 %v464
  %v2040 = vunpack.c.h.b16 %v464
  %v2041 = vunpack.c.l.b16 %v465
  %v2042 = vunpack.c.h.b16 %v465
  %v2043 = vunpack.c.l.b16 %v466
  %v2044 = vunpack.c.h.b16 %v466
  %v2045 = vunpack.c.l.b16 %v467
  %v2046 = vunpack.c.h.b16 %v467
  %v2047 = vunpack.c.l.b16 %v468
  %v2048 = vunpack.c.h.b16 %v468
  %v2049 = vunpack.c.l.b16 %v469
  %v2050 = vunpack.c.h.b16 %v469
  %v2051 = vunpack.c.l.b16 %v470
  %v2052 = vunpack.c.h.b16 %v470
  %v2053 = vunpack.c.l.b16 %v471
  %v2054 = vunpack.c.h.b16 %v471
  %v2055 = vunpack.c.l.b16 %v472
  %v2056 = vunpack.c.h.b16 %v472
  %v2057 = vunpack.c.l.b16 %v473
  %v2058 = vunpack.c.h.b16 %v473
  %v2059 = vunpack.c.l.b16 %v474
  %v2060 = vunpack.c.h.b16 %v474
  %v2061 = vunpack.c.l.b16 %v475
  %v2062 = vunpack.c.h.b16 %v475
  %v2063 = vunpack.c.l.b16 %v476
  %v2064 = vunpack.c.h.b16 %v476
  %v2065 = vunpack.c.l.b16 %v477
  %v2066 = vunpack.c.h.b16 %v477
  %v2067 = vunpack.c.l.b16 %v478
  %v2068 = vunpack.c.h.b16 %v478
  %v2069 = vunpack.c.l.b16 %v479
  %v2070 = vunpack.c.h.b16 %v479
  %v2071 = vunpack.c.l.b16 %v480
  %v2072 = vunpack.c.h.b16 %v480
  %v2073 = vunpack.c.l.b16 %v481
  %v2074 = vunpack.c.h.b16 %v481
  %v2075 = vunpack.c.l.b16 %v482
  %v2076 = vunpack.c.h.b16 %v482
  %v2077 = vunpack.c.l.b16 %v483
  %v2078 = vunpack.c.h.b16 %v483
  %v2079 = vunpack.c.l.b16 %v484
  %v2080 = vunpack.c.h.b16 %v484
  %v2081 = vunpack.c.l.b16 %v485
  %v2082 = vunpack.c.h.b16 %v485
  %v2083 = vunpack.c.l.b16 %v486
  %v2084 = vunpack.c.h.b16 %v486
  %v2085 = vunpack.c.l.b16 %v487
  %v2086 = vunpack.c.h.b16 %v487
  %v2087 = vunpack.c.l.b16 %v488
  %v2088 = vunpack.c.h.b16 %v488
  %v2089 = vunpack.c.l.b16 %v489
  %v2090 = vunpack.c.h.b16 %v489
  %v2091 = vunpack.c.l.b16 %v490
  %v2092 = vunpack.c.h.b16 %v490
  %v2093 = vunpack.c.l.b16 %v491
  %v2094 = vunpack.c.h.b16 %v491
  %v2095 = vunpack.c.l.b16 %v492
  %v2096 = vunpack.c.h.b16 %v492
  %v2097 = vunpack.c.l.b16 %v493
  %v2098 = vunpack.c.h.b16 %v493
  %v2099 = vunpack.c.l.b16 %v494
  %v2100 = vunpack.c.h.b16 %v494
  %v2101 = vunpack.c.l.b16 %v495
  %v2102 = vunpack.c.h.b16 %v495
  %v2103 = vunpack.c.l.b16 %v496
  %v2104 = vunpack.c.h.b16 %v496
  %v2105 = vunpack.c.l.b16 %v497
  %v2106 = vunpack.c.h.b16 %v497
  %v2107 = vunpack.c.l.b16 %v498
  %v2108 = vunpack.c.h.b16 %v498
  %v2109 = vunpack.c.l.b16 %v499
  %v2110 = vunpack.c.h.b16 %v499
  %v2111 = vunpack.c.l.b16 %v500
  %v2112 = vunpack.c.h.b16 %v500
  %v2113 = vunpack.c.l.b16 %v501
  %v2114 = vunpack.c.h.b16 %v501
  %v2115 = vunpack.c.l.b16 %v502
  %v2116 = vunpack.c.h.b16 %v502
  %v2117 = vunpack.c.l.b16 %v503
  %v2118 = vunpack.c.h.b16 %v503
  %v2119 = vunpack.c.l.b16 %v504
  %v2120 = vunpack.c.h.b16 %v504
  %v2121 = vunpack.c.l.b16 %v505
  %v2122 = vunpack.c.h.b16 %v505
  %v2123 = vunpack.c.l.b16 %v506
  %v2124 = vunpack.c.h.b16 %v506
  %v2125 = vunpack.c.l.b16 %v507
  %v2126 = vunpack.c.h.b16 %v507
  %v2127 = vunpack.c.l.b16 %v508
  %v2128 = vunpack.c.h.b16 %v508
  %v2129 = vunpack.c.l.b16 %v509
  %v2130 = vunpack.c.h.b16 %v509
  %v2131 = vunpack.c.l.b16 %v510
  %v2132 = vunpack.c.h.b16 %v510
  %v2133 = vunpack.c.l.b16 %v511
  %v2134 = vunpack.c.h.b16 %v511
  %v2135 = vunpack.c.l.b16 %v512
  %v2136 = vunpack.c.h.b16 %v512
  %v2137 = vunpack.c.l.b16 %v513
  %v2138 = vunpack.c.h.b16 %v513
  %v2139 = vunpack.c.l.b16 %v514
  %v2140 = vunpack.c.h.b16 %v514
  %v2141 = vunpack.c.l.b16 %v515
  %v2142 = vunpack.c.h.b16 %v515
  %v2143 = vunpack.c.l.b16 %v516
  %v2144 = vunpack.c.h.b16 %v516
  %v2145 = vunpack.c.l.b16 %v517
  %v2146 = vunpack.c.h.b16 %v517
  %v2147 = vunpack.c.l.b16 %v518
  %v2148 = vunpack.c.h.b16 %v518
  %v2149 = vunpack.c.l.b16 %v519
  %v2150 = vunpack.c.h.b16 %v519
  %v2151 = vunpack.c.l.b16 %v520
  %v2152 = vunpack.c.h.b16 %v520
  %v2153 = vunpack.c.l.b16 %v521
  %v2154 = vunpack.c.h.b16 %v521
  %v2155 = vunpack.c.l.b16 %v522
  %v2156 = vunpack.c.h.b16 %v522
  %v2157 = vunpack.c.l.b16 %v523
  %v2158 = vunpack.c.h.b16 %v523
  %v2159 = vunpack.c.l.b16 %v524
  %v2160 = vunpack.c.h.b16 %v524
  %v2161 = vunpack.c.l.b16 %v525
  %v2162 = vunpack.c.h.b16 %v525
  %v2163 = vunpack.c.l.b16 %v526
  %v2164 = vunpack.c.h.b16 %v526
  %v2165 = vunpack.c.l.b16 %v527
  %v2166 = vunpack.c.h.b16 %v527
  %v2167 = vunpack.c.l.b16 %v528
  %v2168 = vunpack.c.h.b16 %v528
  %v2169 = vunpack.c.l.b16 %v529
  %v2170 = vunpack.c.h.b16 %v529
  %v2171 = vunpack.c.l.b16 %v530
  %v2172 = vunpack.c.h.b16 %v530
  %v2173 = vunpack.c.l.b16 %v531
  %v2174 = vunpack.c.h.b16 %v531
  %v2175 = vunpack.c.l.b16 %v532
  %v2176 = vunpack.c.h.b16 %v532
  %v2177 = vunpack.c.l.b16 %v533
  %v2178 = vunpack.c.h.b16 %v533
  %v2179 = vunpack.c.l.b16 %v534
  %v2180 = vunpack.c.h.b16 %v534
  %v2181 = vunpack.c.l.b16 %v535
  %v2182 = vunpack.c.h.b16 %v535
  %v2183 = vunpack.c.l.b16 %v536
  %v2184 = vunpack.c.h.b16 %v536
  %v2185 = vunpack.c.l.b16 %v537
  %v2186 = vunpack.c.h.b16 %v537
  %v2187 = vunpack.c.l.b16 %v538
  %v2188 = vunpack.c.h.b16 %v538
  %v2189 = vunpack.c.l.b16 %v539
  %v2190 = vunpack.c.h.b16 %v539
  %v2191 = vunpack.c.l.b16 %v540
  %v2192 = vunpack.c.h.b16 %v540
  %v2193 = vunpack.c.l.b16 %v541
  %v2194 = vunpack.c.h.b16 %v541
  %v2195 = vunpack.c.l.b16 %v542
  %v2196 = vunpack.c.h.b16 %v542
  %v2197 = vunpack.c.l.b16 %v543
  %v2198 = vunpack.c.h.b16 %v543
  %v2199 = vunpack.c.l.b16 %v544
  %v2200 = vunpack.c.h.b16 %v544
  %v2201 = vunpack.c.l.b16 %v545
  %v2202 = vunpack.c.h.b16 %v545
  %v2203 = vunpack.c.l.b16 %v546
  %v2204 = vunpack.c.h.b16 %v546
  %v2205 = vunpack.c.l.b16 %v547
  %v2206 = vunpack.c.h.b16 %v547
  %v2207 = vunpack.c.l.b16 %v548
  %v2208 = vunpack.c.h.b16 %v548
  %v2209 = vunpack.c.l.b16 %v549
  %v2210 = vunpack.c.h.b16 %v549
  %v2211 = vunpack.c.l.b16 %v550
  %v2212 = vunpack.c.h.b16 %v550
  %v2213 = vunpack.c.l.b16 %v551
  %v2214 = vunpack.c.h.b16 %v551
  %v2215 = vunpack.c.l.b16 %v552
  %v2216 = vunpack.c.h.b16 %v552
  %v2217 = vunpack.c.l.b16 %v553
  %v2218 = vunpack.c.h.b16 %v553
  %v2219 = vunpack.c.l.b16 %v554
  %v2220 = vunpack.c.h.b16 %v554
  %v2221 = vunpack.c.l.b16 %v555
  %v2222 = vunpack.c.h.b16 %v555
  %v2223 = vunpack.c.l.b16 %v556
  %v2224 = vunpack.c.h.b16 %v556
  %v2225 = vunpack.c.l.b16 %v557
  %v2226 = vunpack.c.h.b16 %v557
  %v2227 = vunpack.c.l.b16 %v558
  %v2228 = vunpack.c.h.b16 %v558
  %v2229 = vunpack.c.l.b16 %v559
  %v2230 = vunpack.c.h.b16 %v559
  %v2231 = vunpack.c.l.b16 %v560
  %v2232 = vunpack.c.h.b16 %v560
  %v2233 = vunpack.c.l.b16 %v561
  %v2234 = vunpack.c.h.b16 %v561
  %v2235 = vunpack.c.l.b16 %v562
  %v2236 = vunpack.c.h.b16 %v562
  %v2237 = vunpack.c.l.b16 %v563
  %v2238 = vunpack.c.h.b16 %v563
  %v2239 = vunpack.c.l.b16 %v564
  %v2240 = vunpack.c.h.b16 %v564
  %v2241 = vunpack.c.l.b16 %v565
  %v2242 = vunpack.c.h.b16 %v565
  %v2243 = vunpack.c.l.b16 %v566
  %v2244 = vunpack.c.h.b16 %v566
  %v2245 = vunpack.c.l.b16 %v567
  %v2246 = vunpack.c.h.b16 %v567
  %v2247 = vunpack.c.l.b16 %v568
  %v2248 = vunpack.c.h.b16 %v568
  %v2249 = vunpack.c.l.b16 %v569
  %v2250 = vunpack.c.h.b16 %v569
  %v2251 = vunpack.c.l.b16 %v570
  %v2252 = vunpack.c.h.b16 %v570
  %v2253 = vunpack.c.l.b16 %v571
  %v2254 = vunpack.c.h.b16 %v571
  %v2255 = vunpack.c.l.b16 %v572
  %v2256 = vunpack.c.h.b16 %v572
  %v2257 = vunpack.c.l.b16 %v573
  %v2258 = vunpack.c.h.b16 %v573
  %v2259 = vunpack.c.l.b16 %v574
  %v2260 = vunpack.c.h.b16 %v574
  %v2261 = vunpack.c.l.b16 %v575
  %v2262 = vunpack.c.h.b16 %v575
  %v2263 = vunpack.c.l.b16 %v576
  %v2264 = vunpack.c.h.b16 %v576
  %v2265 = vunpack.c.l.b16 %v577
  %v2266 = vunpack.c.h.b16 %v577
  %v2267 = vunpack.c.l.b16 %v578
  %v2268 = vunpack.c.h.b16 %v578
  %v2269 = vunpack.c.l.b16 %v579
  %v2270 = vunpack.c.h.b16 %v579
  %v2271 = vunpack.c.l.b16 %v580
  %v2272 = vunpack.c.h.b16 %v580
  %v2273 = vunpack.c.l.b16 %v581
  %v2274 = vunpack.c.h.b16 %v581
  %v2275 = vunpack.c.l.b16 %v582
  %v2276 = vunpack.c.h.b16 %v582
  %v2277 = vunpack.c.l.b16 %v583
  %v2278 = vunpack.c.h.b16 %v583
  %v2279 = vunpack.c.l.b16 %v584
  %v2280 = vunpack.c.h.b16 %v584
  %v2281 = vunpack.c.l.b16 %v585
  %v2282 = vunpack.c.h.b16 %v585
  %v2283 = vunpack.c.l.b16 %v586
  %v2284 = vunpack.c.h.b16 %v586
  %v2285 = vunpack.c.l.b16 %v587
  %v2286 = vunpack.c.h.b16 %v587
  %v2287 = vunpack.c.l.b16 %v588
  %v2288 = vunpack.c.h.b16 %v588
  %v2289 = vunpack.c.l.b16 %v589
  %v2290 = vunpack.c.h.b16 %v589
  %v2291 = vunpack.c.l.b16 %v590
  %v2292 = vunpack.c.h.b16 %v590
  %v2293 = vunpack.c.l.b16 %v591
  %v2294 = vunpack.c.h.b16 %v591
  %v2295 = vunpack.c.l.b16 %v592
  %v2296 = vunpack.c.h.b16 %v592
  %v2297 = vunpack.c.l.b16 %v593
  %v2298 = vunpack.c.h.b16 %v593
  %v2299 = vunpack.c.l.b16 %v594
  %v2300 = vunpack.c.h.b16 %v594
  %v2301 = vunpack.c.l.b16 %v595
  %v2302 = vunpack.c.h.b16 %v595
  %v2303 = vunpack.c.l.b16 %v596
  %v2304 = vunpack.c.h.b16 %v596
  %v2305 = vunpack.c.l.b16 %v597
  %v2306 = vunpack.c.h.b16 %v597
  %v2307 = vunpack.c.l.b16 %v598
  %v2308 = vunpack.c.h.b16 %v598
  %v2309 = vunpack.c.l.b16 %v599
  %v2310 = vunpack.c.h.b16 %v599
  %v2311 = vunpack.c.l.b16 %v600
  %v2312 = vunpack.c.h.b16 %v600
  %v2313 = vunpack.c.l.b16 %v601
  %v2314 = vunpack.c.h.b16 %v601
  %v2315 = vunpack.c.l.b16 %v602
  %v2316 = vunpack.c.h.b16 %v602
  %v2317 = vunpack.c.l.b16 %v603
  %v2318 = vunpack.c.h.b16 %v603
  %v2319 = vunpack.c.l.b16 %v604
  %v2320 = vunpack.c.h.b16 %v604
  %v2321 = vunpack.c.l.b16 %v605
  %v2322 = vunpack.c.h.b16 %v605
  %v2323 = vunpack.c.l.b16 %v606
  %v2324 = vunpack.c.h.b16 %v606
  %v2325 = vunpack.c.l.b16 %v607
  %v2326 = vunpack.c.h.b16 %v607
  %v2327 = vunpack.c.l.b16 %v608
  %v2328 = vunpack.c.h.b16 %v608
  %v2329 = vunpack.c.l.b16 %v609
  %v2330 = vunpack.c.h.b16 %v609
  %v2331 = vunpack.c.l.b16 %v610
  %v2332 = vunpack.c.h.b16 %v610
  %v2333 = vunpack.c.l.b16 %v611
  %v2334 = vunpack.c.h.b16 %v611
  %v2335 = vunpack.c.l.b16 %v612
  %v2336 = vunpack.c.h.b16 %v612
  %v2337 = vunpack.c.l.b16 %v613
  %v2338 = vunpack.c.h.b16 %v613
  %v2339 = vunpack.c.l.b16 %v614
  %v2340 = vunpack.c.h.b16 %v614
  %v2341 = vunpack.c.l.b16 %v615
  %v2342 = vunpack.c.h.b16 %v615
  %v2343 = vunpack.c.l.b16 %v616
  %v2344 = vunpack.c.h.b16 %v616
  %v2345 = vunpack.c.l.b16 %v617
  %v2346 = vunpack.c.h.b16 %v617
  %v2347 = vunpack.c.l.b16 %v618
  %v2348 = vunpack.c.h.b16 %v618
  %v2349 = vunpack.c.l.b16 %v619
  %v2350 = vunpack.c.h.b16 %v619
  %v2351 = vunpack.c.l.b16 %v620
  %v2352 = vunpack.c.h.b16 %v620
  %v2353 = vunpack.c.l.b16 %v621
  %v2354 = vunpack.c.h.b16 %v621
  %v2355 = vunpack.c.l.b16 %v622
  %v2356 = vunpack.c.h.b16 %v622
  %v2357 = vunpack.c.l.b16 %v623
  %v2358 = vunpack.c.h.b16 %v623
  %v2359 = vunpack.c.l.b16 %v624
  %v2360 = vunpack.c.h.b16 %v624
  %v2361 = vunpack.c.l.b16 %v625
  %v2362 = vunpack.c.h.b16 %v625
  %v2363 = vunpack.c.l.b16 %v626
  %v2364 = vunpack.c.h.b16 %v626
  %v2365 = vunpack.c.l.b16 %v627
  %v2366 = vunpack.c.h.b16 %v627
  %v2367 = vunpack.c.l.b16 %v628
  %v2368 = vunpack.c.h.b16 %v628
  %v2369 = vunpack.c.l.b16 %v629
  %v2370 = vunpack.c.h.b16 %v629
  %v2371 = vunpack.c.l.b16 %v630
  %v2372 = vunpack.c.h.b16 %v630
  %v2373 = vunpack.c.l.b16 %v631
  %v2374 = vunpack.c.h.b16 %v631
  %v2375 = vunpack.c.l.b16 %v632
  %v2376 = vunpack.c.h.b16 %v632
  %v2377 = vunpack.c.l.b16 %v633
  %v2378 = vunpack.c.h.b16 %v633
  %v2379 = vunpack.c.l.b16 %v634
  %v2380 = vunpack.c.h.b16 %v634
  %v2381 = vunpack.c.l.b16 %v635
  %v2382 = vunpack.c.h.b16 %v635
  %v2383 = vunpack.c.l.b16 %v636
  %v2384 = vunpack.c.h.b16 %v636
  %v2385 = vunpack.c.l.b16 %v637
  %v2386 = vunpack.c.h.b16 %v637
  %v2387 = vunpack.c.l.b16 %v638
  %v2388 = vunpack.c.h.b16 %v638
  %v2389 = vpack.c.b16 %v1241, %v1237
  %v2390 = vpack.c.b16 %v1242, %v1238
  %v2391 = vpack.c.b16 %v1243, %v1239
  %v2392 = vpack.c.b16 %v1244, %v1240
  %v2393 = vpack.c.b16 %v1249, %v1245
  %v2394 = vpack.c.b16 %v1250, %v1246
  %v2395 = vpack.c.b16 %v1251, %v1247
  %v2396 = vpack.c.b16 %v1252, %v1248
  %v2397 = vpack.c.b16 %v1257, %v1253
  %v2398 = vpack.c.b16 %v1258, %v1254
  %v2399 = vpack.c.b16 %v1259, %v1255
  %v2400 = vpack.c.b16 %v1260, %v1256
  %v2401 = vpack.c.b16 %v1265, %v1261
  %v2402 = vpack.c.b16 %v1266, %v1262
  %v2403 = vpack.c.b16 %v1267, %v1263
  %v2404 = vpack.c.b16 %v1268, %v1264
  %v2405 = vpack.c.b16 %v1273, %v1269
  %v2406 = vpack.c.b16 %v1274, %v1270
  %v2407 = vpack.c.b16 %v1275, %v1271
  %v2408 = vpack.c.b16 %v1276, %v1272
  %v2409 = vpack.c.b16 %v1281, %v1277
  %v2410 = vpack.c.b16 %v1282, %v1278
  %v2411 = vpack.c.b16 %v1283, %v1279
  %v2412 = vpack.c.b16 %v1284, %v1280
  %v2413 = vpack.c.b16 %v1289, %v1285
  %v2414 = vpack.c.b16 %v1290, %v1286
  %v2415 = vpack.c.b16 %v1291, %v1287
  %v2416 = vpack.c.b16 %v1292, %v1288
  %v2417 = vpack.c.b16 %v1297, %v1293
  %v2418 = vpack.c.b16 %v1298, %v1294
  %v2419 = vpack.c.b16 %v1299, %v1295
  %v2420 = vpack.c.b16 %v1300, %v1296
  %v2421 = vpack.c.b16 %v1305, %v1301
  %v2422 = vpack.c.b16 %v1306, %v1302
  %v2423 = vpack.c.b16 %v1307, %v1303
  %v2424 = vpack.c.b16 %v1308, %v1304
  %v2425 = vpack.c.b16 %v1313, %v1309
  %v2426 = vpack.c.b16 %v1314, %v1310
  %v2427 = vpack.c.b16 %v1315, %v1311
  %v2428 = vpack.c.b16 %v1316, %v1312
  %v2429 = vpack.c.b16 %v1321, %v1317
  %v2430 = vpack.c.b16 %v1322, %v1318
  %v2431 = vpack.c.b16 %v1323, %v1319
  %v2432 = vpack.c.b16 %v1324, %v1320
  %v2433 = vpack.c.b16 %v1329, %v1325
  %v2434 = vpack.c.b16 %v1330, %v1326
  %v2435 = vpack.c.b16 %v1331, %v1327
  %v2436 = vpack.c.b16 %v1332, %v1328
  %v2437 = vpack.c.b16 %v1337, %v1333
  %v2438 = vpack.c.b16 %v1338, %v1334
  %v2439 = vpack.c.b16 %v1339, %v1335
  %v2440 = vpack.c.b16 %v1340, %v1336
  %v2441 = vpack.c.b16 %v1345, %v1341
  %v2442 = vpack.c.b16 %v1346, %v1342
  %v2443 = vpack.c.b16 %v1347, %v1343
  %v2444 = vpack.c.b16 %v1348, %v1344
  %v2445 = vpack.c.b16 %v1353, %v1349
  %v2446 = vpack.c.b16 %v1354, %v1350
  %v2447 = vpack.c.b16 %v1355, %v1351
  %v2448 = vpack.c.b16 %v1356, %v1352
  %v2449 = vpack.c.b16 %v1361, %v1357
  %v2450 = vpack.c.b16 %v1362, %v1358
  %v2451 = vpack.c.b16 %v1363, %v1359
  %v2452 = vpack.c.b16 %v1364, %v1360
  %v2453 = vpack.c.b16 %v1369, %v1365
  %v2454 = vpack.c.b16 %v1370, %v1366
  %v2455 = vpack.c.b16 %v1371, %v1367
  %v2456 = vpack.c.b16 %v1372, %v1368
  %v2457 = vpack.c.b16 %v1377, %v1373
  %v2458 = vpack.c.b16 %v1378, %v1374
  %v2459 = vpack.c.b16 %v1379, %v1375
  %v2460 = vpack.c.b16 %v1380, %v1376
  %v2461 = vpack.c.b16 %v1385, %v1381
  %v2462 = vpack.c.b16 %v1386, %v1382
  %v2463 = vpack.c.b16 %v1387, %v1383
  %v2464 = vpack.c.b16 %v1388, %v1384
  %v2465 = vpack.c.b16 %v1393, %v1389
  %v2466 = vpack.c.b16 %v1394, %v1390
  %v2467 = vpack.c.b16 %v1395, %v1391
  %v2468 = vpack.c.b16 %v1396, %v1392
  %v2469 = vpack.c.b16 %v1401, %v1397
  %v2470 = vpack.c.b16 %v1402, %v1398
  %v2471 = vpack.c.b16 %v1403, %v1399
  %v2472 = vpack.c.b16 %v1404, %v1400
  %v2473 = vpack.c.b16 %v1409, %v1405
  %v2474 = vpack.c.b16 %v1410, %v1406
  %v2475 = vpack.c.b16 %v1411, %v1407
  %v2476 = vpack.c.b16 %v1412, %v1408
  %v2477 = vpack.c.b16 %v1417, %v1413
  %v2478 = vpack.c.b16 %v1418, %v1414
  %v2479 = vpack.c.b16 %v1419, %v1415
  %v2480 = vpack.c.b16 %v1420, %v1416
  %v2481 = vpack.c.b16 %v1425, %v1421
  %v2482 = vpack.c.b16 %v1426, %v1422
  %v2483 = vpack.c.b16 %v1427, %v1423
  %v2484 = vpack.c.b16 %v1428, %v1424
  %v2485 = vpack.c.b16 %v1433, %v1429
  %v2486 = vpack.c.b16 %v1434, %v1430
  %v2487 = vpack.c.b16 %v1435, %v1431
  %v2488 = vpack.c.b16 %v1436, %v1432
  %v2489 = vpack.c.b16 %v1441, %v1437
  %v2490 = vpack.c.b16 %v1442, %v1438
  %v2491 = vpack.c.b16 %v1443, %v1439
  %v2492 = vpack.c.b16 %v1444, %v1440
  %v2493 = vpack.c.b16 %v1449, %v1445
  %v2494 = vpack.c.b16 %v1450, %v1446
  %v2495 = vpack.c.b16 %v1451, %v1447
  %v2496 = vpack.c.b16 %v1452, %v1448
  %v2497 = vpack.c.b16 %v1457, %v1453
  %v2498 = vpack.c.b16 %v1458, %v1454
  %v2499 = vpack.c.b16 %v1459, %v1455
  %v2500 = vpack.c.b16 %v1460, %v1456
  %v2501 = vpack.c.b16 %v1465, %v1461
  %v2502 = vpack.c.b16 %v1466, %v1462
  %v2503 = vpack.c.b16 %v1467, %v1463
  %v2504 = vpack.c.b16 %v1468, %v1464
  %v2505 = vpack.c.b16 %v1473, %v1469
  %v2506 = vpack.c.b16 %v1474, %v1470
  %v2507 = vpack.c.b16 %v1475, %v1471
  %v2508 = vpack.c.b16 %v1476, %v1472
  %v2509 = vpack.c.b16 %v1481, %v1477
  %v2510 = vpack.c.b16 %v1482, %v1478
  %v2511 = vpack.c.b16 %v1483, %v1479
  %v2512 = vpack.c.b16 %v1484, %v1480
  %v2513 = vpack.c.b16 %v1489, %v1485
  %v2514 = vpack.c.b16 %v1490, %v1486
  %v2515 = vpack.c.b16 %v1491, %v1487
  %v2516 = vpack.c.b16 %v1492, %v1488
  %v2517 = vpack.c.b16 %v1497, %v1493
  %v2518 = vpack.c.b16 %v1498, %v1494
  %v2519 = vpack.c.b16 %v1499, %v1495
  %v2520 = vpack.c.b16 %v1500, %v1496
  %v2521 = vpack.c.b16 %v1505, %v1501
  %v2522 = vpack.c.b16 %v1506, %v1502
  %v2523 = vpack.c.b16 %v1507, %v1503
  %v2524 = vpack.c.b16 %v1508, %v1504
  %v2525 = vpack.c.b16 %v1513, %v1509
  %v2526 = vpack.c.b16 %v1514, %v1510
  %v2527 = vpack.c.b16 %v1515, %v1511
  %v2528 = vpack.c.b16 %v1516, %v1512
  %v2529 = vpack.c.b16 %v1521, %v1517
  %v2530 = vpack.c.b16 %v1522, %v1518
  %v2531 = vpack.c.b16 %v1523, %v1519
  %v2532 = vpack.c.b16 %v1524, %v1520
  %v2533 = vpack.c.b16 %v1529, %v1525
  %v2534 = vpack.c.b16 %v1530, %v1526
  %v2535 = vpack.c.b16 %v1531, %v1527
  %v2536 = vpack.c.b16 %v1532, %v1528
  %v2537 = vpack.c.b16 %v1537, %v1533
  %v2538 = vpack.c.b16 %v1538, %v1534
  %v2539 = vpack.c.b16 %v1539, %v1535
  %v2540 = vpack.c.b16 %v1540, %v1536
  %v2541 = vpack.c.b16 %v1545, %v1541
  %v2542 = vpack.c.b16 %v1546, %v1542
  %v2543 = vpack.c.b16 %v1547, %v1543
  %v2544 = vpack.c.b16 %v1548, %v1544
  %v2545 = vpack.c.b16 %v1553, %v1549
  %v2546 = vpack.c.b16 %v1554, %v1550
  %v2547 = vpack.c.b16 %v1555, %v1551
  %v2548 = vpack.c.b16 %v1556, %v1552
  %v2549 = vpack.c.b16 %v1561, %v1557
  %v2550 = vpack.c.b16 %v1562, %v1558
  %v2551 = vpack.c.b16 %v1563, %v1559
  %v2552 = vpack.c.b16 %v1564, %v1560
  %v2553 = vpack.c.b16 %v1569, %v1565
  %v2554 = vpack.c.b16 %v1570, %v1566
  %v2555 = vpack.c.b16 %v1571, %v1567
  %v2556 = vpack.c.b16 %v1572, %v1568
  %v2557 = vpack.c.b16 %v1577, %v1573
  %v2558 = vpack.c.b16 %v1578, %v1574
  %v2559 = vpack.c.b16 %v1579, %v1575
  %v2560 = vpack.c.b16 %v1580, %v1576
  %v2561 = vpack.c.b16 %v1585, %v1581
  %v2562 = vpack.c.b16 %v1586, %v1582
  %v2563 = vpack.c.b16 %v1587, %v1583
  %v2564 = vpack.c.b16 %v1588, %v1584
  %v2565 = vpack.c.b16 %v1593, %v1589
  %v2566 = vpack.c.b16 %v1594, %v1590
  %v2567 = vpack.c.b16 %v1595, %v1591
  %v2568 = vpack.c.b16 %v1596, %v1592
  %v2569 = vpack.c.b16 %v1601, %v1597
  %v2570 = vpack.c.b16 %v1602, %v1598
  %v2571 = vpack.c.b16 %v1603, %v1599
  %v2572 = vpack.c.b16 %v1604, %v1600
  %v2573 = vpack.c.b16 %v1609, %v1605
  %v2574 = vpack.c.b16 %v1610, %v1606
  %v2575 = vpack.c.b16 %v1611, %v1607
  %v2576 = vpack.c.b16 %v1612, %v1608
  %v2577 = vpack.c.b16 %v1617, %v1613
  %v2578 = vpack.c.b16 %v1618, %v1614
  %v2579 = vpack.c.b16 %v1619, %v1615
  %v2580 = vpack.c.b16 %v1620, %v1616
  %v2581 = vpack.c.b16 %v1625, %v1621
  %v2582 = vpack.c.b16 %v1626, %v1622
  %v2583 = vpack.c.b16 %v1627, %v1623
  %v2584 = vpack.c.b16 %v1628, %v1624
  %v2585 = vpack.c.b16 %v1633, %v1629
  %v2586 = vpack.c.b16 %v1634, %v1630
  %v2587 = vpack.c.b16 %v1635, %v1631
  %v2588 = vpack.c.b16 %v1636, %v1632
  %v2589 = vpack.c.b16 %v1641, %v1637
  %v2590 = vpack.c.b16 %v1642, %v1638
  %v2591 = vpack.c.b16 %v1643, %v1639
  %v2592 = vpack.c.b16 %v1644, %v1640
  %v2593 = vpack.c.b16 %v1649, %v1645
  %v2594 = vpack.c.b16 %v1650, %v1646
  %v2595 = vpack.c.b16 %v1651, %v1647
  %v2596 = vpack.c.b16 %v1652, %v1648
  %v2597 = vpack.c.b16 %v1657, %v1653
  %v2598 = vpack.c.b16 %v1658, %v1654
  %v2599 = vpack.c.b16 %v1659, %v1655
  %v2600 = vpack.c.b16 %v1660, %v1656
  %v2601 = vpack.c.b16 %v1665, %v1661
  %v2602 = vpack.c.b16 %v1666, %v1662
  %v2603 = vpack.c.b16 %v1667, %v1663
  %v2604 = vpack.c.b16 %v1668, %v1664
  %v2605 = vpack.c.b16 %v1673, %v1669
  %v2606 = vpack.c.b16 %v1674, %v1670
  %v2607 = vpack.c.b16 %v1675, %v1671
  %v2608 = vpack.c.b16 %v1676, %v1672
  %v2609 = vpack.c.b16 %v1681, %v1677
  %v2610 = vpack.c.b16 %v1682, %v1678
  %v2611 = vpack.c.b16 %v1683, %v1679
  %v2612 = vpack.c.b16 %v1684, %v1680
  %v2613 = vpack.c.b16 %v1689, %v1685
  %v2614 = vpack.c.b16 %v1690, %v1686
  %v2615 = vpack.c.b16 %v1691, %v1687
  %v2616 = vpack.c.b16 %v1692, %v1688
  %v2617 = vpack.c.b16 %v1697, %v1693
  %v2618 = vpack.c.b16 %v1698, %v1694
  %v2619 = vpack.c.b16 %v1699, %v1695
  %v2620 = vpack.c.b16 %v1700, %v1696
  %v2621 = vpack.c.b16 %v1705, %v1701
  %v2622 = vpack.c.b16 %v1706, %v1702
  %v2623 = vpack.c.b16 %v1707, %v1703
  %v2624 = vpack.c.b16 %v1708, %v1704
  %v2625 = vpack.c.b16 %v1713, %v1709
  %v2626 = vpack.c.b16 %v1714, %v1710
  %v2627 = vpack.c.b16 %v1715, %v1711
  %v2628 = vpack.c.b16 %v1716, %v1712
  %v2629 = vpack.c.b16 %v1721, %v1717
  %v2630 = vpack.c.b16 %v1722, %v1718
  %v2631 = vpack.c.b16 %v1723, %v1719
  %v2632 = vpack.c.b16 %v1724, %v1720
  %v2633 = vpack.c.b16 %v1729, %v1725
  %v2634 = vpack.c.b16 %v1730, %v1726
  %v2635 = vpack.c.b16 %v1731, %v1727
  %v2636 = vpack.c.b16 %v1732, %v1728
  %v2637 = vpack.c.b16 %v1737, %v1733
  %v2638 = vpack.c.b16 %v1738, %v1734
  %v2639 = vpack.c.b16 %v1739, %v1735
  %v2640 = vpack.c.b16 %v1740, %v1736
  %v2641 = vpack.c.b16 %v1745, %v1741
  %v2642 = vpack.c.b16 %v1746, %v1742
  %v2643 = vpack.c.b16 %v1747, %v1743
  %v2644 = vpack.c.b16 %v1748, %v1744
  %v2645 = vpack.c.b16 %v1753, %v1749
  %v2646 = vpack.c.b16 %v1754, %v1750
  %v2647 = vpack.c.b16 %v1755, %v1751
  %v2648 = vpack.c.b16 %v1756, %v1752
  %v2649 = vpack.c.b16 %v1761, %v1757
  %v2650 = vpack.c.b16 %v1762, %v1758
  %v2651 = vpack.c.b16 %v1763, %v1759
  %v2652 = vpack.c.b16 %v1764, %v1760
  %v2653 = vpack.c.b16 %v1769, %v1765
  %v2654 = vpack.c.b16 %v1770, %v1766
  %v2655 = vpack.c.b16 %v1771, %v1767
  %v2656 = vpack.c.b16 %v1772, %v1768
  %v2657 = vpack.c.b16 %v1777, %v1773
  %v2658 = vpack.c.b16 %v1778, %v1774
  %v2659 = vpack.c.b16 %v1779, %v1775
  %v2660 = vpack.c.b16 %v1780, %v1776
  %v2661 = vpack.c.b16 %v1785, %v1781
  %v2662 = vpack.c.b16 %v1786, %v1782
  %v2663 = vpack.c.b16 %v1787, %v1783
  %v2664 = vpack.c.b16 %v1788, %v1784
  %v2665 = vpack.c.b16 %v1793, %v1789
  %v2666 = vpack.c.b16 %v1794, %v1790
  %v2667 = vpack.c.b16 %v1795, %v1791
  %v2668 = vpack.c.b16 %v1796, %v1792
  %v2669 = vpack.c.b16 %v1801, %v1797
  %v2670 = vpack.c.b16 %v1802, %v1798
  %v2671 = vpack.c.b16 %v1803, %v1799
  %v2672 = vpack.c.b16 %v1804, %v1800
  %v2673 = vpack.c.b16 %v1809, %v1805
  %v2674 = vpack.c.b16 %v1810, %v1806
  %v2675 = vpack.c.b16 %v1811, %v1807
  %v2676 = vpack.c.b16 %v1812, %v1808
  %v2677 = vpack.c.b16 %v1817, %v1813
  %v2678 = vpack.c.b16 %v1818, %v1814
  %v2679 = vpack.c.b16 %v1819, %v1815
  %v2680 = vpack.c.b16 %v1820, %v1816
  %v2681 = vpack.c.b16 %v1825, %v1821
  %v2682 = vpack.c.b16 %v1826, %v1822
  %v2683 = vpack.c.b16 %v1827, %v1823
  %v2684 = vpack.c.b16 %v1828, %v1824
  %v2685 = vpack.c.b16 %v1833, %v1829
  %v2686 = vpack.c.b16 %v1834, %v1830
  %v2687 = vpack.c.b16 %v1835, %v1831
  %v2688 = vpack.c.b16 %v1836, %v1832
  %v2689 = vpack.c.b16 %v1841, %v1837
  %v2690 = vpack.c.b16 %v1842, %v1838
  %v2691 = vpack.c.b16 %v1843, %v1839
  %v2692 = vpack.c.b16 %v1844, %v1840
  %v2693 = vpack.c.b16 %v1849, %v1845
  %v2694 = vpack.c.b16 %v1850, %v1846
  %v2695 = vpack.c.b16 %v1851, %v1847
  %v2696 = vpack.c.b16 %v1852, %v1848
  %v2697 = vpack.c.b16 %v1857, %v1853
  %v2698 = vpack.c.b16 %v1858, %v1854
  %v2699 = vpack.c.b16 %v1859, %v1855
  %v2700 = vpack.c.b16 %v1860, %v1856
  %v2701 = vpack.c.b16 %v1865, %v1861
  %v2702 = vpack.c.b16 %v1866, %v1862
  %v2703 = vpack.c.b16 %v1867, %v1863
  %v2704 = vpack.c.b16 %v1868, %v1864
  %v2705 = vpack.c.b16 %v1873, %v1869
  %v2706 = vpack.c.b16 %v1874, %v1870
  %v2707 = vpack.c.b16 %v1875, %v1871
  %v2708 = vpack.c.b16 %v1876, %v1872
  %v2709 = vpack.c.b16 %v1881, %v1877
  %v2710 = vpack.c.b16 %v1882, %v1878
  %v2711 = vpack.c.b16 %v1883, %v1879
  %v2712 = vpack.c.b16 %v1884, %v1880
  %v2713 = vpack.c.b16 %v1889, %v1885
  %v2714 = vpack.c.b16 %v1890, %v1886
  %v2715 = vpack.c.b16 %v1891, %v1887
  %v2716 = vpack.c.b16 %v1892, %v1888
  %v2717 = vpack.c.b16 %v1897, %v1893
  %v2718 = vpack.c.b16 %v1898, %v1894
  %v2719 = vpack.c.b16 %v1899, %v1895
  %v2720 = vpack.c.b16 %v1900, %v1896
  %v2721 = vpack.c.b16 %v1905, %v1901
  %v2722 = vpack.c.b16 %v1906, %v1902
  %v2723 = vpack.c.b16 %v1907, %v1903
  %v2724 = vpack.c.b16 %v1908, %v1904
  %v2725 = vpack.c.b16 %v1913, %v1909
  %v2726 = vpack.c.b16 %v1914, %v1910
  %v2727 = vpack.c.b16 %v1915, %v1911
  %v2728 = vpack.c.b16 %v1916, %v1912
  %v2729 = vpack.c.b16 %v1921, %v1917
  %v2730 = vpack.c.b16 %v1922, %v1918
  %v2731 = vpack.c.b16 %v1923, %v1919
  %v2732 = vpack.c.b16 %v1924, %v1920
  %v2733 = vpack.c.b16 %v1929, %v1925
  %v2734 = vpack.c.b16 %v1930, %v1926
  %v2735 = vpack.c.b16 %v1931, %v1927
  %v2736 = vpack.c.b16 %v1932, %v1928
  %v2737 = vpack.c.b16 %v1937, %v1933
  %v2738 = vpack.c.b16 %v1938, %v1934
  %v2739 = vpack.c.b16 %v1939, %v1935
  %v2740 = vpack.c.b16 %v1940, %v1936
  %v2741 = vpack.c.b16 %v1945, %v1941
  %v2742 = vpack.c.b16 %v1946, %v1942
  %v2743 = vpack.c.b16 %v1947, %v1943
  %v2744 = vpack.c.b16 %v1948, %v1944
  %v2745 = vpack.c.b16 %v1953, %v1949
  %v2746 = vpack.c.b16 %v1954, %v1950
  %v2747 = vpack.c.b16 %v1955, %v1951
  %v2748 = vpack.c.b16 %v1956, %v1952
  %v2749 = vpack.c.b16 %v1961, %v1957
  %v2750 = vpack.c.b16 %v1962, %v1958
  %v2751 = vpack.c.b16 %v1963, %v1959
  %v2752 = vpack.c.b16 %v1964, %v1960
  %v2753 = vpack.c.b16 %v1969, %v1965
  %v2754 = vpack.c.b16 %v1970, %v1966
  %v2755 = vpack.c.b16 %v1971, %v1967
  %v2756 = vpack.c.b16 %v1972, %v1968
  %v2757 = vpack.c.b16 %v1977, %v1973
  %v2758 = vpack.c.b16 %v1978, %v1974
  %v2759 = vpack.c.b16 %v1979, %v1975
  %v2760 = vpack.c.b16 %v1980, %v1976
  %v2761 = vpack.c.b16 %v1985, %v1981
  %v2762 = vpack.c.b16 %v1986, %v1982
  %v2763 = vpack.c.b16 %v1987, %v1983
  %v2764 = vpack.c.b16 %v1988, %v1984
  %v2765 = vpack.c.b16 %v1993, %v1989
  %v2766 = vpack.c.b16 %v1994, %v1990
  %v2767 = vpack.c.b16 %v1995, %v1991
  %v2768 = vpack.c.b16 %v1996, %v1992
  %v2769 = vpack.c.b16 %v2001, %v1997
  %v2770 = vpack.c.b16 %v2002, %v1998
  %v2771 = vpack.c.b16 %v2003, %v1999
  %v2772 = vpack.c.b16 %v2004, %v2000
  %v2773 = vpack.c.b16 %v2009, %v2005
  %v2774 = vpack.c.b16 %v2010, %v2006
  %v2775 = vpack.c.b16 %v2011, %v2007
  %v2776 = vpack.c.b16 %v2012, %v2008
  %v2777 = vpack.c.b16 %v2017, %v2013
  %v2778 = vpack.c.b16 %v2018, %v2014
  %v2779 = vpack.c.b16 %v2019, %v2015
  %v2780 = vpack.c.b16 %v2020, %v2016
  %v2781 = vpack.c.b16 %v2025, %v2021
  %v2782 = vpack.c.b16 %v2026, %v2022
  %v2783 = vpack.c.b16 %v2027, %v2023
  %v2784 = vpack.c.b16 %v2028, %v2024
  %v2785 = vpack.c.b16 %v2033, %v2029
  %v2786 = vpack.c.b16 %v2034, %v2030
  %v2787 = vpack.c.b16 %v2035, %v2031
  %v2788 = vpack.c.b16 %v2036, %v2032
  %v2789 = vpack.c.b16 %v2041, %v2037
  %v2790 = vpack.c.b16 %v2042, %v2038
  %v2791 = vpack.c.b16 %v2043, %v2039
  %v2792 = vpack.c.b16 %v2044, %v2040
  %v2793 = vpack.c.b16 %v2049, %v2045
  %v2794 = vpack.c.b16 %v2050, %v2046
  %v2795 = vpack.c.b16 %v2051, %v2047
  %v2796 = vpack.c.b16 %v2052, %v2048
  %v2797 = vpack.c.b16 %v2057, %v2053
  %v2798 = vpack.c.b16 %v2058, %v2054
  %v2799 = vpack.c.b16 %v2059, %v2055
  %v2800 = vpack.c.b16 %v2060, %v2056
  %v2801 = vpack.c.b16 %v2065, %v2061
  %v2802 = vpack.c.b16 %v2066, %v2062
  %v2803 = vpack.c.b16 %v2067, %v2063
  %v2804 = vpack.c.b16 %v2068, %v2064
  %v2805 = vpack.c.b16 %v2073, %v2069
  %v2806 = vpack.c.b16 %v2074, %v2070
  %v2807 = vpack.c.b16 %v2075, %v2071
  %v2808 = vpack.c.b16 %v2076, %v2072
  %v2809 = vpack.c.b16 %v2081, %v2077
  %v2810 = vpack.c.b16 %v2082, %v2078
  %v2811 = vpack.c.b16 %v2083, %v2079
  %v2812 = vpack.c.b16 %v2084, %v2080
  %v2813 = vpack.c.b16 %v2089, %v2085
  %v2814 = vpack.c.b16 %v2090, %v2086
  %v2815 = vpack.c.b16 %v2091, %v2087
  %v2816 = vpack.c.b16 %v2092, %v2088
  %v2817 = vpack.c.b16 %v2097, %v2093
  %v2818 = vpack.c.b16 %v2098, %v2094
  %v2819 = vpack.c.b16 %v2099, %v2095
  %v2820 = vpack.c.b16 %v2100, %v2096
  %v2821 = vpack.c.b16 %v2105, %v2101
  %v2822 = vpack.c.b16 %v2106, %v2102
  %v2823 = vpack.c.b16 %v2107, %v2103
  %v2824 = vpack.c.b16 %v2108, %v2104
  %v2825 = vpack.c.b16 %v2113, %v2109
  %v2826 = vpack.c.b16 %v2114, %v2110
  %v2827 = vpack.c.b16 %v2115, %v2111
  %v2828 = vpack.c.b16 %v2116, %v2112
  %v2829 = vpack.c.b16 %v2121, %v2117
  %v2830 = vpack.c.b16 %v2122, %v2118
  %v2831 = vpack.c.b16 %v2123, %v2119
  %v2832 = vpack.c.b16 %v2124, %v2120
  %v2833 = vpack.c.b16 %v2129, %v2125
  %v2834 = vpack.c.b16 %v2130, %v2126
  %v2835 = vpack.c.b16 %v2131, %v2127
  %v2836 = vpack.c.b16 %v2132, %v2128
  %v2837 = vpack.c.b16 %v2137, %v2133
  %v2838 = vpack.c.b16 %v2138, %v2134
  %v2839 = vpack.c.b16 %v2139, %v2135
  %v2840 = vpack.c.b16 %v2140, %v2136
  %v2841 = vpack.c.b16 %v2145, %v2141
  %v2842 = vpack.c.b16 %v2146, %v2142
  %v2843 = vpack.c.b16 %v2147, %v2143
  %v2844 = vpack.c.b16 %v2148, %v2144
  %v2845 = vpack.c.b16 %v2153, %v2149
  %v2846 = vpack.c.b16 %v2154, %v2150
  %v2847 = vpack.c.b16 %v2155, %v2151
  %v2848 = vpack.c.b16 %v2156, %v2152
  %v2849 = vpack.c.b16 %v2161, %v2157
  %v2850 = vpack.c.b16 %v2162, %v2158
  %v2851 = vpack.c.b16 %v2163, %v2159
  %v2852 = vpack.c.b16 %v2164, %v2160
  %v2853 = vpack.c.b16 %v2169, %v2165
  %v2854 = vpack.c.b16 %v2170, %v2166
  %v2855 = vpack.c.b16 %v2171, %v2167
  %v2856 = vpack.c.b16 %v2172, %v2168
  %v2857 = vpack.c.b16 %v2177, %v2173
  %v2858 = vpack.c.b16 %v2178, %v2174
  %v2859 = vpack.c.b16 %v2179, %v2175
  %v2860 = vpack.c.b16 %v2180, %v2176
  %v2861 = vpack.c.b16 %v2185, %v2181
  %v2862 = vpack.c.b16 %v2186, %v2182
  %v2863 = vpack.c.b16 %v2187, %v2183
  %v2864 = vpack.c.b16 %v2188, %v2184
  %v2865 = vpack.c.b16 %v2193, %v2189
  %v2866 = vpack.c.b16 %v2194, %v2190
  %v2867 = vpack.c.b16 %v2195, %v2191
  %v2868 = vpack.c.b16 %v2196, %v2192
  %v2869 = vpack.c.b16 %v2201, %v2197
  %v2870 = vpack.c.b16 %v2202, %v2198
  %v2871 = vpack.c.b16 %v2203, %v2199
  %v2872 = vpack.c.b16 %v2204, %v2200
  %v2873 = vpack.c.b16 %v2209, %v2205
  %v2874 = vpack.c.b16 %v2210, %v2206
  %v2875 = vpack.c.b16 %v2211, %v2207
  %v2876 = vpack.c.b16 %v2212, %v2208
  %v2877 = vpack.c.b16 %v2217, %v2213
  %v2878 = vpack.c.b16 %v2218, %v2214
  %v2879 = vpack.c.b16 %v2219, %v2215
  %v2880 = vpack.c.b16 %v2220, %v2216
  %v2881 = vpack.c.b16 %v2225, %v2221
  %v2882 = vpack.c.b16 %v2226, %v2222
  %v2883 = vpack.c.b16 %v2227, %v2223
  %v2884 = vpack.c.b16 %v2228, %v2224
  %v2885 = vpack.c.b16 %v2233, %v2229
  %v2886 = vpack.c.b16 %v2234, %v2230
  %v2887 = vpack.c.b16 %v2235, %v2231
  %v2888 = vpack.c.b16 %v2236, %v2232
  %v2889 = vpack.c.b16 %v2241, %v2237
  %v2890 = vpack.c.b16 %v2242, %v2238
  %v2891 = vpack.c.b16 %v2243, %v2239
  %v2892 = vpack.c.b16 %v2244, %v2240
  %v2893 = vpack.c.b16 %v2249, %v2245
  %v2894 = vpack.c.b16 %v2250, %v2246
  %v2895 = vpack.c.b16 %v2251, %v2247
  %v2896 = vpack.c.b16 %v2252, %v2248
  %v2897 = vpack.c.b16 %v2257, %v2253
  %v2898 = vpack.c.b16 %v2258, %v2254
  %v2899 = vpack.c.b16 %v2259, %v2255
  %v2900 = vpack.c.b16 %v2260, %v2256
  %v2901 = vpack.c.b16 %v2265, %v2261
  %v2902 = vpack.c.b16 %v2266, %v2262
  %v2903 = vpack.c.b16 %v2267, %v2263
  %v2904 = vpack.c.b16 %v2268, %v2264
  %v2905 = vpack.c.b16 %v2273, %v2269
  %v2906 = vpack.c.b16 %v2274, %v2270
  %v2907 = vpack.c.b16 %v2275, %v2271
  %v2908 = vpack.c.b16 %v2276, %v2272
  %v2909 = vpack.c.b16 %v2281, %v2277
  %v2910 = vpack.c.b16 %v2282, %v2278
  %v2911 = vpack.c.b16 %v2283, %v2279
  %v2912 = vpack.c.b16 %v2284, %v2280
  %v2913 = vpack.c.b16 %v2289, %v2285
  %v2914 = vpack.c.b16 %v2290, %v2286
  %v2915 = vpack.c.b16 %v2291, %v2287
  %v2916 = vpack.c.b16 %v2292, %v2288
  %v2917 = vpack.c.b16 %v2297, %v2293
  %v2918 = vpack.c.b16 %v2298, %v2294
  %v2919 = vpack.c.b16 %v2299, %v2295
  %v2920 = vpack.c.b16 %v2300, %v2296
  %v2921 = vpack.c.b16 %v2305, %v2301
  %v2922 = vpack.c.b16 %v2306, %v2302
  %v2923 = vpack.c.b16 %v2307, %v2303
  %v2924 = vpack.c.b16 %v2308, %v2304
  %v2925 = vpack.c.b16 %v2313, %v2309
  %v2926 = vpack.c.b16 %v2314, %v2310
  %v2927 = vpack.c.b16 %v2315, %v2311
  %v2928 = vpack.c.b16 %v2316, %v2312
  %v2929 = vpack.c.b16 %v2321, %v2317
  %v2930 = vpack.c.b16 %v2322, %v2318
  %v2931 = vpack.c.b16 %v2323, %v2319
  %v2932 = vpack.c.b16 %v2324, %v2320
  %v2933 = vpack.c.b16 %v2329, %v2325
  %v2934 = vpack.c.b16 %v2330, %v2326
  %v2935 = vpack.c.b16 %v2331, %v2327
  %v2936 = vpack.c.b16 %v2332, %v2328
  %v2937 = vpack.c.b16 %v2337, %v2333
  %v2938 = vpack.c.b16 %v2338, %v2334
  %v2939 = vpack.c.b16 %v2339, %v2335
  %v2940 = vpack.c.b16 %v2340, %v2336
  %v2941 = vpack.c.b16 %v2345, %v2341
  %v2942 = vpack.c.b16 %v2346, %v2342
  %v2943 = vpack.c.b16 %v2347, %v2343
  %v2944 = vpack.c.b16 %v2348, %v2344
  %v2945 = vpack.c.b16 %v2353, %v2349
  %v2946 = vpack.c.b16 %v2354, %v2350
  %v2947 = vpack.c.b16 %v2355, %v2351
  %v2948 = vpack.c.b16 %v2356, %v2352
  %v2949 = vpack.c.b16 %v2361, %v2357
  %v2950 = vpack.c.b16 %v2362, %v2358
  %v2951 = vpack.c.b16 %v2363, %v2359
  %v2952 = vpack.c.b16 %v2364, %v2360
  %v2953 = vpack.c.b16 %v2369, %v2365
  %v2954 = vpack.c.b16 %v2370, %v2366
  %v2955 = vpack.c.b16 %v2371, %v2367
  %v2956 = vpack.c.b16 %v2372, %v2368
  %v2957 = vpack.c.b16 %v2377, %v2373
  %v2958 = vpack.c.b16 %v2378, %v2374
  %v2959 = vpack.c.b16 %v2379, %v2375
  %v2960 = vpack.c.b16 %v2380, %v2376
  %v2961 = vpack.c.b16 %v2385, %v2381
  %v2962 = vpack.c.b16 %v2386, %v2382
  %v2963 = vpack.c.b16 %v2387, %v2383
  %v2964 = vpack.c.b16 %v2388, %v2384
  %3541 = vmatprep.subr.bf16.mxu0 %v2390
  %3542 = vmatpush1.bf16.msra.mxu0 %v2389
  %3543 = vmatprep.subr.bf16.mxu0 %v2394
  %3544 = vmatpush1.bf16.msra.mxu0 %v2393
  %3545 = vmatprep.subr.bf16.mxu0 %v2398
  %3546 = vmatpush1.bf16.msra.mxu0 %v2397
  %3547 = vmatprep.subr.bf16.mxu0 %v2402
  %3548 = vmatpush1.bf16.msra.mxu0 %v2401
  %3549 = vmatprep.subr.bf16.mxu0 %v2406
  %3550 = vmatpush1.bf16.msra.mxu0 %v2405
  %3551 = vmatprep.subr.bf16.mxu0 %v2410
  %3552 = vmatpush1.bf16.msra.mxu0 %v2409
  %3553 = vmatprep.subr.bf16.mxu0 %v2414
  %3554 = vmatpush1.bf16.msra.mxu0 %v2413
  %3555 = vmatprep.subr.bf16.mxu0 %v2418
  %3556 = vmatpush1.bf16.msra.mxu0 %v2417
  %3557 = vmatprep.subr.bf16.mxu0 %v2422
  %3558 = vmatpush1.bf16.msra.mxu0 %v2421
  %3559 = vmatprep.subr.bf16.mxu0 %v2426
  %3560 = vmatpush1.bf16.msra.mxu0 %v2425
  %3561 = vmatprep.subr.bf16.mxu0 %v2430
  %3562 = vmatpush1.bf16.msra.mxu0 %v2429
  %3563 = vmatprep.subr.bf16.mxu0 %v2434
  %3564 = vmatpush1.bf16.msra.mxu0 %v2433
  %3565 = vmatprep.subr.bf16.mxu0 %v2438
  %3566 = vmatpush1.bf16.msra.mxu0 %v2437
  %3567 = vmatprep.subr.bf16.mxu0 %v2442
  %3568 = vmatpush1.bf16.msra.mxu0 %v2441
  %3569 = vmatprep.subr.bf16.mxu0 %v2446
  %3570 = vmatpush1.bf16.msra.mxu0 %v2445
  %3571 = vmatprep.subr.bf16.mxu0 %v2450
  %3572 = vmatpush1.bf16.msra.mxu0 %v2449
  %3573 = vmatprep.mubr.bf16.mxu0 %v46
  %3574 = vmatmul.mubr.bf16.gmra.mrb[0].mxu0 %v45
  %v3575 = vpop.f32.mrb[0].mxu0
  %v3576 = vadd.f32 %v644, %v3575
  %v3577 = vpop.f32.mrb[0].mxu0
  %v3578 = vadd.f32 %v648, %v3577
  %v3579 = vpop.f32.mrb[0].mxu0
  %v3580 = vpop.f32.mrb[0].mxu0
  %3581 = vdwg.mxu0
  %3582 = vmatprep.subr.bf16.mxu0 %v2454
  %3583 = vmatpush1.bf16.msra.mxu0 %v2453
  %3584 = vmatprep.subr.bf16.mxu0 %v2458
  %3585 = vmatpush1.bf16.msra.mxu0 %v2457
  %3586 = vmatprep.subr.bf16.mxu0 %v2462
  %3587 = vmatpush1.bf16.msra.mxu0 %v2461
  %3588 = vmatprep.subr.bf16.mxu0 %v2466
  %3589 = vmatpush1.bf16.msra.mxu0 %v2465
  %3590 = vmatprep.subr.bf16.mxu0 %v2470
  %3591 = vmatpush1.bf16.msra.mxu0 %v2469
  %3592 = vmatprep.subr.bf16.mxu0 %v2474
  %3593 = vmatpush1.bf16.msra.mxu0 %v2473
  %3594 = vmatprep.subr.bf16.mxu0 %v2478
  %3595 = vmatpush1.bf16.msra.mxu0 %v2477
  %3596 = vmatprep.subr.bf16.mxu0 %v2482
  %3597 = vmatpush1.bf16.msra.mxu0 %v2481
  %3598 = vmatprep.subr.bf16.mxu0 %v2486
  %3599 = vmatpush1.bf16.msra.mxu0 %v2485
  %3600 = vmatprep.subr.bf16.mxu0 %v2490
  %3601 = vmatpush1.bf16.msra.mxu0 %v2489
  %3602 = vmatprep.subr.bf16.mxu0 %v2494
  %3603 = vmatpush1.bf16.msra.mxu0 %v2493
  %3604 = vmatprep.subr.bf16.mxu0 %v2498
  %3605 = vmatpush1.bf16.msra.mxu0 %v2497
  %3606 = vmatprep.subr.bf16.mxu0 %v2502
  %3607 = vmatpush1.bf16.msra.mxu0 %v2501
  %3608 = vmatprep.subr.bf16.mxu0 %v2506
  %3609 = vmatpush1.bf16.msra.mxu0 %v2505
  %3610 = vmatprep.subr.bf16.mxu0 %v2510
  %3611 = vmatpush1.bf16.msra.mxu0 %v2509
  %3612 = vmatprep.subr.bf16.mxu0 %v2514
  %3613 = vmatpush1.bf16.msra.mxu0 %v2513
  %3614 = vmatprep.mubr.bf16.mxu0 %v48
  %3615 = vmatmul.mubr.bf16.gmra.mrb[0].mxu0 %v47
  %v3616 = vpop.f32.mrb[0].mxu0
  %v3617 = vadd.f32 %v3576, %v3616
  %v3618 = vpop.f32.mrb[0].mxu0
  %v3619 = vadd.f32 %v3578, %v3618
  %v3620 = vpop.f32.mrb[0].mxu0
  %v3621 = vpop.f32.mrb[0].mxu0
  %3622 = vdwg.mxu0
  %3623 = vmatprep.subr.bf16.mxu0 %v2518
  %3624 = vmatpush1.bf16.msra.mxu0 %v2517
  %3625 = vmatprep.subr.bf16.mxu0 %v2522
  %3626 = vmatpush1.bf16.msra.mxu0 %v2521
  %3627 = vmatprep.subr.bf16.mxu0 %v2526
  %3628 = vmatpush1.bf16.msra.mxu0 %v2525
  %3629 = vmatprep.subr.bf16.mxu0 %v2530
  %3630 = vmatpush1.bf16.msra.mxu0 %v2529
  %3631 = vmatprep.subr.bf16.mxu0 %v2534
  %3632 = vmatpush1.bf16.msra.mxu0 %v2533
  %3633 = vmatprep.subr.bf16.mxu0 %v2538
  %3634 = vmatpush1.bf16.msra.mxu0 %v2537
  %3635 = vmatprep.subr.bf16.mxu0 %v2542
  %3636 = vmatpush1.bf16.msra.mxu0 %v2541
  %3637 = vmatprep.subr.bf16.mxu0 %v2546
  %3638 = vmatpush1.bf16.msra.mxu0 %v2545
  %3639 = vmatprep.subr.bf16.mxu0 %v2550
  %3640 = vmatpush1.bf16.msra.mxu0 %v2549
  %3641 = vmatprep.subr.bf16.mxu0 %v2554
  %3642 = vmatpush1.bf16.msra.mxu0 %v2553
  %3643 = vmatprep.subr.bf16.mxu0 %v2558
  %3644 = vmatpush1.bf16.msra.mxu0 %v2557
  %3645 = vmatprep.subr.bf16.mxu0 %v2562
  %3646 = vmatpush1.bf16.msra.mxu0 %v2561
  %3647 = vmatprep.subr.bf16.mxu0 %v2566
  %3648 = vmatpush1.bf16.msra.mxu0 %v2565
  %3649 = vmatprep.subr.bf16.mxu0 %v2570
  %3650 = vmatpush1.bf16.msra.mxu0 %v2569
  %3651 = vmatprep.subr.bf16.mxu0 %v2574
  %3652 = vmatpush1.bf16.msra.mxu0 %v2573
  %3653 = vmatprep.subr.bf16.mxu0 %v2578
  %3654 = vmatpush1.bf16.msra.mxu0 %v2577
  %3655 = vmatprep.mubr.bf16.mxu0 %v50
  %3656 = vmatmul.mubr.bf16.gmra.mrb[0].mxu0 %v49
  %v3657 = vpop.f32.mrb[0].mxu0
  %v3658 = vadd.f32 %v3617, %v3657
  %v3659 = vpop.f32.mrb[0].mxu0
  %v3660 = vadd.f32 %v3619, %v3659
  %v3661 = vpop.f32.mrb[0].mxu0
  %v3662 = vpop.f32.mrb[0].mxu0
  %3663 = vdwg.mxu0
  %3664 = vmatprep.subr.bf16.mxu0 %v2582
  %3665 = vmatpush1.bf16.msra.mxu0 %v2581
  %3666 = vmatprep.subr.bf16.mxu0 %v2586
  %3667 = vmatpush1.bf16.msra.mxu0 %v2585
  %3668 = vmatprep.subr.bf16.mxu0 %v2590
  %3669 = vmatpush1.bf16.msra.mxu0 %v2589
  %3670 = vmatprep.subr.bf16.mxu0 %v2594
  %3671 = vmatpush1.bf16.msra.mxu0 %v2593
  %3672 = vmatprep.subr.bf16.mxu0 %v2598
  %3673 = vmatpush1.bf16.msra.mxu0 %v2597
  %3674 = vmatprep.subr.bf16.mxu0 %v2602
  %3675 = vmatpush1.bf16.msra.mxu0 %v2601
  %3676 = vmatprep.subr.bf16.mxu0 %v2606
  %3677 = vmatpush1.bf16.msra.mxu0 %v2605
  %3678 = vmatprep.subr.bf16.mxu0 %v2610
  %3679 = vmatpush1.bf16.msra.mxu0 %v2609
  %3680 = vmatprep.subr.bf16.mxu0 %v2614
  %3681 = vmatpush1.bf16.msra.mxu0 %v2613
  %3682 = vmatprep.subr.bf16.mxu0 %v2618
  %3683 = vmatpush1.bf16.msra.mxu0 %v2617
  %3684 = vmatprep.subr.bf16.mxu0 %v2622
  %3685 = vmatpush1.bf16.msra.mxu0 %v2621
  %3686 = vmatprep.subr.bf16.mxu0 %v2626
  %3687 = vmatpush1.bf16.msra.mxu0 %v2625
  %3688 = vmatprep.subr.bf16.mxu0 %v2630
  %3689 = vmatpush1.bf16.msra.mxu0 %v2629
  %3690 = vmatprep.subr.bf16.mxu0 %v2634
  %3691 = vmatpush1.bf16.msra.mxu0 %v2633
  %3692 = vmatprep.subr.bf16.mxu0 %v2638
  %3693 = vmatpush1.bf16.msra.mxu0 %v2637
  %3694 = vmatprep.subr.bf16.mxu0 %v2642
  %3695 = vmatpush1.bf16.msra.mxu0 %v2641
  %3696 = vmatprep.mubr.bf16.mxu0 %v52
  %3697 = vmatmul.mubr.bf16.gmra.mrb[0].mxu0 %v51
  %v3698 = vpop.f32.mrb[0].mxu0
  %v3699 = vadd.f32 %v3658, %v3698
  %v3700 = vpop.f32.mrb[0].mxu0
  %v3701 = vadd.f32 %v3660, %v3700
  %v3702 = vpop.f32.mrb[0].mxu0
  %v3703 = vpop.f32.mrb[0].mxu0
  %3704 = vdwg.mxu0
  %3705 = vmatprep.subr.bf16.mxu0 %v2646
  %3706 = vmatpush1.bf16.msra.mxu0 %v2645
  %3707 = vmatprep.subr.bf16.mxu0 %v2650
  %3708 = vmatpush1.bf16.msra.mxu0 %v2649
  %3709 = vmatprep.subr.bf16.mxu0 %v2654
  %3710 = vmatpush1.bf16.msra.mxu0 %v2653
  %3711 = vmatprep.subr.bf16.mxu0 %v2658
  %3712 = vmatpush1.bf16.msra.mxu0 %v2657
  %3713 = vmatprep.subr.bf16.mxu0 %v2662
  %3714 = vmatpush1.bf16.msra.mxu0 %v2661
  %3715 = vmatprep.subr.bf16.mxu0 %v2666
  %3716 = vmatpush1.bf16.msra.mxu0 %v2665
  %3717 = vmatprep.subr.bf16.mxu0 %v2670
  %3718 = vmatpush1.bf16.msra.mxu0 %v2669
  %3719 = vmatprep.subr.bf16.mxu0 %v2674
  %3720 = vmatpush1.bf16.msra.mxu0 %v2673
  %3721 = vmatprep.subr.bf16.mxu0 %v2678
  %3722 = vmatpush1.bf16.msra.mxu0 %v2677
  %3723 = vmatprep.subr.bf16.mxu0 %v2682
  %3724 = vmatpush1.bf16.msra.mxu0 %v2681
  %3725 = vmatprep.subr.bf16.mxu0 %v2686
  %3726 = vmatpush1.bf16.msra.mxu0 %v2685
  %3727 = vmatprep.subr.bf16.mxu0 %v2690
  %3728 = vmatpush1.bf16.msra.mxu0 %v2689
  %3729 = vmatprep.subr.bf16.mxu0 %v2694
  %3730 = vmatpush1.bf16.msra.mxu0 %v2693
  %3731 = vmatprep.subr.bf16.mxu0 %v2698
  %3732 = vmatpush1.bf16.msra.mxu0 %v2697
  %3733 = vmatprep.subr.bf16.mxu0 %v2702
  %3734 = vmatpush1.bf16.msra.mxu0 %v2701
  %3735 = vmatprep.subr.bf16.mxu0 %v2706
  %3736 = vmatpush1.bf16.msra.mxu0 %v2705
  %3737 = vmatprep.mubr.bf16.mxu0 %v54
  %3738 = vmatmul.mubr.bf16.gmra.mrb[0].mxu0 %v53
  %v3739 = vpop.f32.mrb[0].mxu0
  %v3740 = vadd.f32 %v3699, %v3739
  %v3741 = vpop.f32.mrb[0].mxu0
  %v3742 = vadd.f32 %v3701, %v3741
  %v3743 = vpop.f32.mrb[0].mxu0
  %v3744 = vpop.f32.mrb[0].mxu0
  %3745 = vdwg.mxu0
  %3746 = vmatprep.subr.bf16.mxu0 %v2710
  %3747 = vmatpush1.bf16.msra.mxu0 %v2709
  %3748 = vmatprep.subr.bf16.mxu0 %v2714
  %3749 = vmatpush1.bf16.msra.mxu0 %v2713
  %3750 = vmatprep.subr.bf16.mxu0 %v2718
  %3751 = vmatpush1.bf16.msra.mxu0 %v2717
  %3752 = vmatprep.subr.bf16.mxu0 %v2722
  %3753 = vmatpush1.bf16.msra.mxu0 %v2721
  %3754 = vmatprep.subr.bf16.mxu0 %v2726
  %3755 = vmatpush1.bf16.msra.mxu0 %v2725
  %3756 = vmatprep.subr.bf16.mxu0 %v2730
  %3757 = vmatpush1.bf16.msra.mxu0 %v2729
  %3758 = vmatprep.subr.bf16.mxu0 %v2734
  %3759 = vmatpush1.bf16.msra.mxu0 %v2733
  %3760 = vmatprep.subr.bf16.mxu0 %v2738
  %3761 = vmatpush1.bf16.msra.mxu0 %v2737
  %3762 = vmatprep.subr.bf16.mxu0 %v2742
  %3763 = vmatpush1.bf16.msra.mxu0 %v2741
  %3764 = vmatprep.subr.bf16.mxu0 %v2746
  %3765 = vmatpush1.bf16.msra.mxu0 %v2745
  %3766 = vmatprep.subr.bf16.mxu0 %v2750
  %3767 = vmatpush1.bf16.msra.mxu0 %v2749
  %3768 = vmatprep.subr.bf16.mxu0 %v2754
  %3769 = vmatpush1.bf16.msra.mxu0 %v2753
  %3770 = vmatprep.subr.bf16.mxu0 %v2758
  %3771 = vmatpush1.bf16.msra.mxu0 %v2757
  %3772 = vmatprep.subr.bf16.mxu0 %v2762
  %3773 = vmatpush1.bf16.msra.mxu0 %v2761
  %3774 = vmatprep.subr.bf16.mxu0 %v2766
  %3775 = vmatpush1.bf16.msra.mxu0 %v2765
  %3776 = vmatprep.subr.bf16.mxu0 %v2770
  %3777 = vmatpush1.bf16.msra.mxu0 %v2769
  %3778 = vmatprep.mubr.bf16.mxu0 %v56
  %3779 = vmatmul.mubr.bf16.gmra.mrb[0].mxu0 %v55
  %v3780 = vpop.f32.mrb[0].mxu0
  %v3781 = vadd.f32 %v3740, %v3780
  %v3782 = vpop.f32.mrb[0].mxu0
  %v3783 = vadd.f32 %v3742, %v3782
  %v3784 = vpop.f32.mrb[0].mxu0
  %v3785 = vpop.f32.mrb[0].mxu0
  %3786 = vdwg.mxu0
  %3787 = vmatprep.subr.bf16.mxu0 %v2774
  %3788 = vmatpush1.bf16.msra.mxu0 %v2773
  %3789 = vmatprep.subr.bf16.mxu0 %v2778
  %3790 = vmatpush1.bf16.msra.mxu0 %v2777
  %3791 = vmatprep.subr.bf16.mxu0 %v2782
  %3792 = vmatpush1.bf16.msra.mxu0 %v2781
  %3793 = vmatprep.subr.bf16.mxu0 %v2786
  %3794 = vmatpush1.bf16.msra.mxu0 %v2785
  %3795 = vmatprep.subr.bf16.mxu0 %v2790
  %3796 = vmatpush1.bf16.msra.mxu0 %v2789
  %3797 = vmatprep.subr.bf16.mxu0 %v2794
  %3798 = vmatpush1.bf16.msra.mxu0 %v2793
  %3799 = vmatprep.subr.bf16.mxu0 %v2798
  %3800 = vmatpush1.bf16.msra.mxu0 %v2797
  %3801 = vmatprep.subr.bf16.mxu0 %v2802
  %3802 = vmatpush1.bf16.msra.mxu0 %v2801
  %3803 = vmatprep.subr.bf16.mxu0 %v2806
  %3804 = vmatpush1.bf16.msra.mxu0 %v2805
  %3805 = vmatprep.subr.bf16.mxu0 %v2810
  %3806 = vmatpush1.bf16.msra.mxu0 %v2809
  %3807 = vmatprep.subr.bf16.mxu0 %v2814
  %3808 = vmatpush1.bf16.msra.mxu0 %v2813
  %3809 = vmatprep.subr.bf16.mxu0 %v2818
  %3810 = vmatpush1.bf16.msra.mxu0 %v2817
  %3811 = vmatprep.subr.bf16.mxu0 %v2822
  %3812 = vmatpush1.bf16.msra.mxu0 %v2821
  %3813 = vmatprep.subr.bf16.mxu0 %v2826
  %3814 = vmatpush1.bf16.msra.mxu0 %v2825
  %3815 = vmatprep.subr.bf16.mxu0 %v2830
  %3816 = vmatpush1.bf16.msra.mxu0 %v2829
  %3817 = vmatprep.subr.bf16.mxu0 %v2834
  %3818 = vmatpush1.bf16.msra.mxu0 %v2833
  %3819 = vmatprep.mubr.bf16.mxu0 %v58
  %3820 = vmatmul.mubr.bf16.gmra.mrb[0].mxu0 %v57
  %v3821 = vpop.f32.mrb[0].mxu0
  %v3822 = vadd.f32 %v3781, %v3821
  %v3823 = vpop.f32.mrb[0].mxu0
  %v3824 = vadd.f32 %v3783, %v3823
  %v3825 = vpop.f32.mrb[0].mxu0
  %v3826 = vpop.f32.mrb[0].mxu0
  %3827 = vdwg.mxu0
  %3828 = vmatprep.subr.bf16.mxu0 %v2838
  %3829 = vmatpush1.bf16.msra.mxu0 %v2837
  %3830 = vmatprep.subr.bf16.mxu0 %v2842
  %3831 = vmatpush1.bf16.msra.mxu0 %v2841
  %3832 = vmatprep.subr.bf16.mxu0 %v2846
  %3833 = vmatpush1.bf16.msra.mxu0 %v2845
  %3834 = vmatprep.subr.bf16.mxu0 %v2850
  %3835 = vmatpush1.bf16.msra.mxu0 %v2849
  %3836 = vmatprep.subr.bf16.mxu0 %v2854
  %3837 = vmatpush1.bf16.msra.mxu0 %v2853
  %3838 = vmatprep.subr.bf16.mxu0 %v2858
  %3839 = vmatpush1.bf16.msra.mxu0 %v2857
  %3840 = vmatprep.subr.bf16.mxu0 %v2862
  %3841 = vmatpush1.bf16.msra.mxu0 %v2861
  %3842 = vmatprep.subr.bf16.mxu0 %v2866
  %3843 = vmatpush1.bf16.msra.mxu0 %v2865
  %3844 = vmatprep.subr.bf16.mxu0 %v2870
  %3845 = vmatpush1.bf16.msra.mxu0 %v2869
  %3846 = vmatprep.subr.bf16.mxu0 %v2874
  %3847 = vmatpush1.bf16.msra.mxu0 %v2873
  %3848 = vmatprep.subr.bf16.mxu0 %v2878
  %3849 = vmatpush1.bf16.msra.mxu0 %v2877
  %3850 = vmatprep.subr.bf16.mxu0 %v2882
  %3851 = vmatpush1.bf16.msra.mxu0 %v2881
  %3852 = vmatprep.subr.bf16.mxu0 %v2886
  %3853 = vmatpush1.bf16.msra.mxu0 %v2885
  %3854 = vmatprep.subr.bf16.mxu0 %v2890
  %3855 = vmatpush1.bf16.msra.mxu0 %v2889
  %3856 = vmatprep.subr.bf16.mxu0 %v2894
  %3857 = vmatpush1.bf16.msra.mxu0 %v2893
  %3858 = vmatprep.subr.bf16.mxu0 %v2898
  %3859 = vmatpush1.bf16.msra.mxu0 %v2897
  %3860 = vmatprep.mubr.bf16.mxu0 %v60
  %3861 = vmatmul.mubr.bf16.gmra.mrb[0].mxu0 %v59
  %v3862 = vpop.f32.mrb[0].mxu0
  %v3863 = vadd.f32 %v3822, %v3862
  %v3864 = vpop.f32.mrb[0].mxu0
  %v3865 = vadd.f32 %v3824, %v3864
  %v3866 = vpop.f32.mrb[0].mxu0
  %v3867 = vpop.f32.mrb[0].mxu0
  %3868 = vdwg.mxu0
  %3869 = vmatprep.subr.bf16.mxu0 %v2902
  %3870 = vmatpush1.bf16.msra.mxu0 %v2901
  %3871 = vmatprep.subr.bf16.mxu0 %v2906
  %3872 = vmatpush1.bf16.msra.mxu0 %v2905
  %3873 = vmatprep.subr.bf16.mxu0 %v2910
  %3874 = vmatpush1.bf16.msra.mxu0 %v2909
  %3875 = vmatprep.subr.bf16.mxu0 %v2914
  %3876 = vmatpush1.bf16.msra.mxu0 %v2913
  %3877 = vmatprep.subr.bf16.mxu0 %v2918
  %3878 = vmatpush1.bf16.msra.mxu0 %v2917
  %3879 = vmatprep.subr.bf16.mxu0 %v2922
  %3880 = vmatpush1.bf16.msra.mxu0 %v2921
  %3881 = vmatprep.subr.bf16.mxu0 %v2926
  %3882 = vmatpush1.bf16.msra.mxu0 %v2925
  %3883 = vmatprep.subr.bf16.mxu0 %v2930
  %3884 = vmatpush1.bf16.msra.mxu0 %v2929
  %3885 = vmatprep.subr.bf16.mxu0 %v2934
  %3886 = vmatpush1.bf16.msra.mxu0 %v2933
  %3887 = vmatprep.subr.bf16.mxu0 %v2938
  %3888 = vmatpush1.bf16.msra.mxu0 %v2937
  %3889 = vmatprep.subr.bf16.mxu0 %v2942
  %3890 = vmatpush1.bf16.msra.mxu0 %v2941
  %3891 = vmatprep.subr.bf16.mxu0 %v2946
  %3892 = vmatpush1.bf16.msra.mxu0 %v2945
  %3893 = vmatprep.subr.bf16.mxu0 %v2950
  %3894 = vmatpush1.bf16.msra.mxu0 %v2949
  %3895 = vmatprep.subr.bf16.mxu0 %v2954
  %3896 = vmatpush1.bf16.msra.mxu0 %v2953
  %3897 = vmatprep.subr.bf16.mxu0 %v2958
  %3898 = vmatpush1.bf16.msra.mxu0 %v2957
  %3899 = vmatprep.subr.bf16.mxu0 %v2962
  %3900 = vmatpush1.bf16.msra.mxu0 %v2961
  %3901 = vmatprep.mubr.bf16.mxu0 %v62
  %3902 = vmatmul.mubr.bf16.gmra.mrb[0].mxu0 %v61
  %v3903 = vpop.f32.mrb[0].mxu0
  %v3904 = vadd.f32 %v3863, %v3903
  %v3905 = vpop.f32.mrb[0].mxu0
  %v3906 = vadd.f32 %v3865, %v3905
  %v3907 = vpop.f32.mrb[0].mxu0
  %v3908 = vpop.f32.mrb[0].mxu0
  %3909 = vdwg.mxu0
  %3910 = vmatprep.subr.bf16.mxu0 %v2392
  %3911 = vmatpush1.bf16.msra.mxu0 %v2391
  %3912 = vmatprep.subr.bf16.mxu0 %v2396
  %3913 = vmatpush1.bf16.msra.mxu0 %v2395
  %3914 = vmatprep.subr.bf16.mxu0 %v2400
  %3915 = vmatpush1.bf16.msra.mxu0 %v2399
  %3916 = vmatprep.subr.bf16.mxu0 %v2404
  %3917 = vmatpush1.bf16.msra.mxu0 %v2403
  %3918 = vmatprep.subr.bf16.mxu0 %v2408
  %3919 = vmatpush1.bf16.msra.mxu0 %v2407
  %3920 = vmatprep.subr.bf16.mxu0 %v2412
  %3921 = vmatpush1.bf16.msra.mxu0 %v2411
  %3922 = vmatprep.subr.bf16.mxu0 %v2416
  %3923 = vmatpush1.bf16.msra.mxu0 %v2415
  %3924 = vmatprep.subr.bf16.mxu0 %v2420
  %3925 = vmatpush1.bf16.msra.mxu0 %v2419
  %3926 = vmatprep.subr.bf16.mxu0 %v2424
  %3927 = vmatpush1.bf16.msra.mxu0 %v2423
  %3928 = vmatprep.subr.bf16.mxu0 %v2428
  %3929 = vmatpush1.bf16.msra.mxu0 %v2427
  %3930 = vmatprep.subr.bf16.mxu0 %v2432
  %3931 = vmatpush1.bf16.msra.mxu0 %v2431
  %3932 = vmatprep.subr.bf16.mxu0 %v2436
  %3933 = vmatpush1.bf16.msra.mxu0 %v2435
  %3934 = vmatprep.subr.bf16.mxu0 %v2440
  %3935 = vmatpush1.bf16.msra.mxu0 %v2439
  %3936 = vmatprep.subr.bf16.mxu0 %v2444
  %3937 = vmatpush1.bf16.msra.mxu0 %v2443
  %3938 = vmatprep.subr.bf16.mxu0 %v2448
  %3939 = vmatpush1.bf16.msra.mxu0 %v2447
  %3940 = vmatprep.subr.bf16.mxu0 %v2452
  %3941 = vmatpush1.bf16.msra.mxu0 %v2451
  %3942 = vmatprep.mubr.bf16.mxu0 %v46
  %3943 = vmatmul.mubr.bf16.gmra.mrb[0].mxu0 %v45
  %v3944 = vpop.f32.mrb[0].mxu0
  %v3945 = vadd.f32 %v652, %v3944
  %v3946 = vpop.f32.mrb[0].mxu0
  %v3947 = vadd.f32 %v656, %v3946
  %v3948 = vpop.f32.mrb[0].mxu0
  %v3949 = vpop.f32.mrb[0].mxu0
  %3950 = vdwg.mxu0
  %3951 = vmatprep.subr.bf16.mxu0 %v2456
  %3952 = vmatpush1.bf16.msra.mxu0 %v2455
  %3953 = vmatprep.subr.bf16.mxu0 %v2460
  %3954 = vmatpush1.bf16.msra.mxu0 %v2459
  %3955 = vmatprep.subr.bf16.mxu0 %v2464
  %3956 = vmatpush1.bf16.msra.mxu0 %v2463
  %3957 = vmatprep.subr.bf16.mxu0 %v2468
  %3958 = vmatpush1.bf16.msra.mxu0 %v2467
  %3959 = vmatprep.subr.bf16.mxu0 %v2472
  %3960 = vmatpush1.bf16.msra.mxu0 %v2471
  %3961 = vmatprep.subr.bf16.mxu0 %v2476
  %3962 = vmatpush1.bf16.msra.mxu0 %v2475
  %3963 = vmatprep.subr.bf16.mxu0 %v2480
  %3964 = vmatpush1.bf16.msra.mxu0 %v2479
  %3965 = vmatprep.subr.bf16.mxu0 %v2484
  %3966 = vmatpush1.bf16.msra.mxu0 %v2483
  %3967 = vmatprep.subr.bf16.mxu0 %v2488
  %3968 = vmatpush1.bf16.msra.mxu0 %v2487
  %3969 = vmatprep.subr.bf16.mxu0 %v2492
  %3970 = vmatpush1.bf16.msra.mxu0 %v2491
  %3971 = vmatprep.subr.bf16.mxu0 %v2496
  %3972 = vmatpush1.bf16.msra.mxu0 %v2495
  %3973 = vmatprep.subr.bf16.mxu0 %v2500
  %3974 = vmatpush1.bf16.msra.mxu0 %v2499
  %3975 = vmatprep.subr.bf16.mxu0 %v2504
  %3976 = vmatpush1.bf16.msra.mxu0 %v2503
  %3977 = vmatprep.subr.bf16.mxu0 %v2508
  %3978 = vmatpush1.bf16.msra.mxu0 %v2507
  %3979 = vmatprep.subr.bf16.mxu0 %v2512
  %3980 = vmatpush1.bf16.msra.mxu0 %v2511
  %3981 = vmatprep.subr.bf16.mxu0 %v2516
  %3982 = vmatpush1.bf16.msra.mxu0 %v2515
  %3983 = vmatprep.mubr.bf16.mxu0 %v48
  %3984 = vmatmul.mubr.bf16.gmra.mrb[0].mxu0 %v47
  %v3985 = vpop.f32.mrb[0].mxu0
  %v3986 = vadd.f32 %v3945, %v3985
  %v3987 = vpop.f32.mrb[0].mxu0
  %v3988 = vadd.f32 %v3947, %v3987
  %v3989 = vpop.f32.mrb[0].mxu0
  %v3990 = vpop.f32.mrb[0].mxu0
  %3991 = vdwg.mxu0
  %3992 = vmatprep.subr.bf16.mxu0 %v2520
  %3993 = vmatpush1.bf16.msra.mxu0 %v2519
  %3994 = vmatprep.subr.bf16.mxu0 %v2524
  %3995 = vmatpush1.bf16.msra.mxu0 %v2523
  %3996 = vmatprep.subr.bf16.mxu0 %v2528
  %3997 = vmatpush1.bf16.msra.mxu0 %v2527
  %3998 = vmatprep.subr.bf16.mxu0 %v2532
  %3999 = vmatpush1.bf16.msra.mxu0 %v2531
  %4000 = vmatprep.subr.bf16.mxu0 %v2536
  %4001 = vmatpush1.bf16.msra.mxu0 %v2535
  %4002 = vmatprep.subr.bf16.mxu0 %v2540
  %4003 = vmatpush1.bf16.msra.mxu0 %v2539
  %4004 = vmatprep.subr.bf16.mxu0 %v2544
  %4005 = vmatpush1.bf16.msra.mxu0 %v2543
  %4006 = vmatprep.subr.bf16.mxu0 %v2548
  %4007 = vmatpush1.bf16.msra.mxu0 %v2547
  %4008 = vmatprep.subr.bf16.mxu0 %v2552
  %4009 = vmatpush1.bf16.msra.mxu0 %v2551
  %4010 = vmatprep.subr.bf16.mxu0 %v2556
  %4011 = vmatpush1.bf16.msra.mxu0 %v2555
  %4012 = vmatprep.subr.bf16.mxu0 %v2560
  %4013 = vmatpush1.bf16.msra.mxu0 %v2559
  %4014 = vmatprep.subr.bf16.mxu0 %v2564
  %4015 = vmatpush1.bf16.msra.mxu0 %v2563
  %4016 = vmatprep.subr.bf16.mxu0 %v2568
  %4017 = vmatpush1.bf16.msra.mxu0 %v2567
  %4018 = vmatprep.subr.bf16.mxu0 %v2572
  %4019 = vmatpush1.bf16.msra.mxu0 %v2571
  %4020 = vmatprep.subr.bf16.mxu0 %v2576
  %4021 = vmatpush1.bf16.msra.mxu0 %v2575
  %4022 = vmatprep.subr.bf16.mxu0 %v2580
  %4023 = vmatpush1.bf16.msra.mxu0 %v2579
  %4024 = vmatprep.mubr.bf16.mxu0 %v50
  %4025 = vmatmul.mubr.bf16.gmra.mrb[0].mxu0 %v49
  %v4026 = vpop.f32.mrb[0].mxu0
  %v4027 = vadd.f32 %v3986, %v4026
  %v4028 = vpop.f32.mrb[0].mxu0
  %v4029 = vadd.f32 %v3988, %v4028
  %v4030 = vpop.f32.mrb[0].mxu0
  %v4031 = vpop.f32.mrb[0].mxu0
  %4032 = vdwg.mxu0
  %4033 = vmatprep.subr.bf16.mxu0 %v2584
  %4034 = vmatpush1.bf16.msra.mxu0 %v2583
  %4035 = vmatprep.subr.bf16.mxu0 %v2588
  %4036 = vmatpush1.bf16.msra.mxu0 %v2587
  %4037 = vmatprep.subr.bf16.mxu0 %v2592
  %4038 = vmatpush1.bf16.msra.mxu0 %v2591
  %4039 = vmatprep.subr.bf16.mxu0 %v2596
  %4040 = vmatpush1.bf16.msra.mxu0 %v2595
  %4041 = vmatprep.subr.bf16.mxu0 %v2600
  %4042 = vmatpush1.bf16.msra.mxu0 %v2599
  %4043 = vmatprep.subr.bf16.mxu0 %v2604
  %4044 = vmatpush1.bf16.msra.mxu0 %v2603
  %4045 = vmatprep.subr.bf16.mxu0 %v2608
  %4046 = vmatpush1.bf16.msra.mxu0 %v2607
  %4047 = vmatprep.subr.bf16.mxu0 %v2612
  %4048 = vmatpush1.bf16.msra.mxu0 %v2611
  %4049 = vmatprep.subr.bf16.mxu0 %v2616
  %4050 = vmatpush1.bf16.msra.mxu0 %v2615
  %4051 = vmatprep.subr.bf16.mxu0 %v2620
  %4052 = vmatpush1.bf16.msra.mxu0 %v2619
  %4053 = vmatprep.subr.bf16.mxu0 %v2624
  %4054 = vmatpush1.bf16.msra.mxu0 %v2623
  %4055 = vmatprep.subr.bf16.mxu0 %v2628
  %4056 = vmatpush1.bf16.msra.mxu0 %v2627
  %4057 = vmatprep.subr.bf16.mxu0 %v2632
  %4058 = vmatpush1.bf16.msra.mxu0 %v2631
  %4059 = vmatprep.subr.bf16.mxu0 %v2636
  %4060 = vmatpush1.bf16.msra.mxu0 %v2635
  %4061 = vmatprep.subr.bf16.mxu0 %v2640
  %4062 = vmatpush1.bf16.msra.mxu0 %v2639
  %4063 = vmatprep.subr.bf16.mxu0 %v2644
  %4064 = vmatpush1.bf16.msra.mxu0 %v2643
  %4065 = vmatprep.mubr.bf16.mxu0 %v52
  %4066 = vmatmul.mubr.bf16.gmra.mrb[0].mxu0 %v51
  %v4067 = vpop.f32.mrb[0].mxu0
  %v4068 = vadd.f32 %v4027, %v4067
  %v4069 = vpop.f32.mrb[0].mxu0
  %v4070 = vadd.f32 %v4029, %v4069
  %v4071 = vpop.f32.mrb[0].mxu0
  %v4072 = vpop.f32.mrb[0].mxu0
  %4073 = vdwg.mxu0
  %4074 = vmatprep.subr.bf16.mxu0 %v2648
  %4075 = vmatpush1.bf16.msra.mxu0 %v2647
  %4076 = vmatprep.subr.bf16.mxu0 %v2652
  %4077 = vmatpush1.bf16.msra.mxu0 %v2651
  %4078 = vmatprep.subr.bf16.mxu0 %v2656
  %4079 = vmatpush1.bf16.msra.mxu0 %v2655
  %4080 = vmatprep.subr.bf16.mxu0 %v2660
  %4081 = vmatpush1.bf16.msra.mxu0 %v2659
  %4082 = vmatprep.subr.bf16.mxu0 %v2664
  %4083 = vmatpush1.bf16.msra.mxu0 %v2663
  %4084 = vmatprep.subr.bf16.mxu0 %v2668
  %4085 = vmatpush1.bf16.msra.mxu0 %v2667
  %4086 = vmatprep.subr.bf16.mxu0 %v2672
  %4087 = vmatpush1.bf16.msra.mxu0 %v2671
  %4088 = vmatprep.subr.bf16.mxu0 %v2676
  %4089 = vmatpush1.bf16.msra.mxu0 %v2675
  %4090 = vmatprep.subr.bf16.mxu0 %v2680
  %4091 = vmatpush1.bf16.msra.mxu0 %v2679
  %4092 = vmatprep.subr.bf16.mxu0 %v2684
  %4093 = vmatpush1.bf16.msra.mxu0 %v2683
  %4094 = vmatprep.subr.bf16.mxu0 %v2688
  %4095 = vmatpush1.bf16.msra.mxu0 %v2687
  %4096 = vmatprep.subr.bf16.mxu0 %v2692
  %4097 = vmatpush1.bf16.msra.mxu0 %v2691
  %4098 = vmatprep.subr.bf16.mxu0 %v2696
  %4099 = vmatpush1.bf16.msra.mxu0 %v2695
  %4100 = vmatprep.subr.bf16.mxu0 %v2700
  %4101 = vmatpush1.bf16.msra.mxu0 %v2699
  %4102 = vmatprep.subr.bf16.mxu0 %v2704
  %4103 = vmatpush1.bf16.msra.mxu0 %v2703
  %4104 = vmatprep.subr.bf16.mxu0 %v2708
  %4105 = vmatpush1.bf16.msra.mxu0 %v2707
  %4106 = vmatprep.mubr.bf16.mxu0 %v54
  %4107 = vmatmul.mubr.bf16.gmra.mrb[0].mxu0 %v53
  %v4108 = vpop.f32.mrb[0].mxu0
  %v4109 = vadd.f32 %v4068, %v4108
  %v4110 = vpop.f32.mrb[0].mxu0
  %v4111 = vadd.f32 %v4070, %v4110
  %v4112 = vpop.f32.mrb[0].mxu0
  %v4113 = vpop.f32.mrb[0].mxu0
  %4114 = vdwg.mxu0
  %4115 = vmatprep.subr.bf16.mxu0 %v2712
  %4116 = vmatpush1.bf16.msra.mxu0 %v2711
  %4117 = vmatprep.subr.bf16.mxu0 %v2716
  %4118 = vmatpush1.bf16.msra.mxu0 %v2715
  %4119 = vmatprep.subr.bf16.mxu0 %v2720
  %4120 = vmatpush1.bf16.msra.mxu0 %v2719
  %4121 = vmatprep.subr.bf16.mxu0 %v2724
  %4122 = vmatpush1.bf16.msra.mxu0 %v2723
  %4123 = vmatprep.subr.bf16.mxu0 %v2728
  %4124 = vmatpush1.bf16.msra.mxu0 %v2727
  %4125 = vmatprep.subr.bf16.mxu0 %v2732
  %4126 = vmatpush1.bf16.msra.mxu0 %v2731
  %4127 = vmatprep.subr.bf16.mxu0 %v2736
  %4128 = vmatpush1.bf16.msra.mxu0 %v2735
  %4129 = vmatprep.subr.bf16.mxu0 %v2740
  %4130 = vmatpush1.bf16.msra.mxu0 %v2739
  %4131 = vmatprep.subr.bf16.mxu0 %v2744
  %4132 = vmatpush1.bf16.msra.mxu0 %v2743
  %4133 = vmatprep.subr.bf16.mxu0 %v2748
  %4134 = vmatpush1.bf16.msra.mxu0 %v2747
  %4135 = vmatprep.subr.bf16.mxu0 %v2752
  %4136 = vmatpush1.bf16.msra.mxu0 %v2751
  %4137 = vmatprep.subr.bf16.mxu0 %v2756
  %4138 = vmatpush1.bf16.msra.mxu0 %v2755
  %4139 = vmatprep.subr.bf16.mxu0 %v2760
  %4140 = vmatpush1.bf16.msra.mxu0 %v2759
  %4141 = vmatprep.subr.bf16.mxu0 %v2764
  %4142 = vmatpush1.bf16.msra.mxu0 %v2763
  %4143 = vmatprep.subr.bf16.mxu0 %v2768
  %4144 = vmatpush1.bf16.msra.mxu0 %v2767
  %4145 = vmatprep.subr.bf16.mxu0 %v2772
  %4146 = vmatpush1.bf16.msra.mxu0 %v2771
  %4147 = vmatprep.mubr.bf16.mxu0 %v56
  %4148 = vmatmul.mubr.bf16.gmra.mrb[0].mxu0 %v55
  %v4149 = vpop.f32.mrb[0].mxu0
  %v4150 = vadd.f32 %v4109, %v4149
  %v4151 = vpop.f32.mrb[0].mxu0
  %v4152 = vadd.f32 %v4111, %v4151
  %v4153 = vpop.f32.mrb[0].mxu0
  %v4154 = vpop.f32.mrb[0].mxu0
  %4155 = vdwg.mxu0
  %4156 = vmatprep.subr.bf16.mxu0 %v2776
  %4157 = vmatpush1.bf16.msra.mxu0 %v2775
  %4158 = vmatprep.subr.bf16.mxu0 %v2780
  %4159 = vmatpush1.bf16.msra.mxu0 %v2779
  %4160 = vmatprep.subr.bf16.mxu0 %v2784
  %4161 = vmatpush1.bf16.msra.mxu0 %v2783
  %4162 = vmatprep.subr.bf16.mxu0 %v2788
  %4163 = vmatpush1.bf16.msra.mxu0 %v2787
  %4164 = vmatprep.subr.bf16.mxu0 %v2792
  %4165 = vmatpush1.bf16.msra.mxu0 %v2791
  %4166 = vmatprep.subr.bf16.mxu0 %v2796
  %4167 = vmatpush1.bf16.msra.mxu0 %v2795
  %4168 = vmatprep.subr.bf16.mxu0 %v2800
  %4169 = vmatpush1.bf16.msra.mxu0 %v2799
  %4170 = vmatprep.subr.bf16.mxu0 %v2804
  %4171 = vmatpush1.bf16.msra.mxu0 %v2803
  %4172 = vmatprep.subr.bf16.mxu0 %v2808
  %4173 = vmatpush1.bf16.msra.mxu0 %v2807
  %4174 = vmatprep.subr.bf16.mxu0 %v2812
  %4175 = vmatpush1.bf16.msra.mxu0 %v2811
  %4176 = vmatprep.subr.bf16.mxu0 %v2816
  %4177 = vmatpush1.bf16.msra.mxu0 %v2815
  %4178 = vmatprep.subr.bf16.mxu0 %v2820
  %4179 = vmatpush1.bf16.msra.mxu0 %v2819
  %4180 = vmatprep.subr.bf16.mxu0 %v2824
  %4181 = vmatpush1.bf16.msra.mxu0 %v2823
  %4182 = vmatprep.subr.bf16.mxu0 %v2828
  %4183 = vmatpush1.bf16.msra.mxu0 %v2827
  %4184 = vmatprep.subr.bf16.mxu0 %v2832
  %4185 = vmatpush1.bf16.msra.mxu0 %v2831
  %4186 = vmatprep.subr.bf16.mxu0 %v2836
  %4187 = vmatpush1.bf16.msra.mxu0 %v2835
  %4188 = vmatprep.mubr.bf16.mxu0 %v58
  %4189 = vmatmul.mubr.bf16.gmra.mrb[0].mxu0 %v57
  %v4190 = vpop.f32.mrb[0].mxu0
  %v4191 = vadd.f32 %v4150, %v4190
  %v4192 = vpop.f32.mrb[0].mxu0
  %v4193 = vadd.f32 %v4152, %v4192
  %v4194 = vpop.f32.mrb[0].mxu0
  %v4195 = vpop.f32.mrb[0].mxu0
  %4196 = vdwg.mxu0
  %4197 = vmatprep.subr.bf16.mxu0 %v2840
  %4198 = vmatpush1.bf16.msra.mxu0 %v2839
  %4199 = vmatprep.subr.bf16.mxu0 %v2844
  %4200 = vmatpush1.bf16.msra.mxu0 %v2843
  %4201 = vmatprep.subr.bf16.mxu0 %v2848
  %4202 = vmatpush1.bf16.msra.mxu0 %v2847
  %4203 = vmatprep.subr.bf16.mxu0 %v2852
  %4204 = vmatpush1.bf16.msra.mxu0 %v2851
  %4205 = vmatprep.subr.bf16.mxu0 %v2856
  %4206 = vmatpush1.bf16.msra.mxu0 %v2855
  %4207 = vmatprep.subr.bf16.mxu0 %v2860
  %4208 = vmatpush1.bf16.msra.mxu0 %v2859
  %4209 = vmatprep.subr.bf16.mxu0 %v2864
  %4210 = vmatpush1.bf16.msra.mxu0 %v2863
  %4211 = vmatprep.subr.bf16.mxu0 %v2868
  %4212 = vmatpush1.bf16.msra.mxu0 %v2867
  %4213 = vmatprep.subr.bf16.mxu0 %v2872
  %4214 = vmatpush1.bf16.msra.mxu0 %v2871
  %4215 = vmatprep.subr.bf16.mxu0 %v2876
  %4216 = vmatpush1.bf16.msra.mxu0 %v2875
  %4217 = vmatprep.subr.bf16.mxu0 %v2880
  %4218 = vmatpush1.bf16.msra.mxu0 %v2879
  %4219 = vmatprep.subr.bf16.mxu0 %v2884
  %4220 = vmatpush1.bf16.msra.mxu0 %v2883
  %4221 = vmatprep.subr.bf16.mxu0 %v2888
  %4222 = vmatpush1.bf16.msra.mxu0 %v2887
  %4223 = vmatprep.subr.bf16.mxu0 %v2892
  %4224 = vmatpush1.bf16.msra.mxu0 %v2891
  %4225 = vmatprep.subr.bf16.mxu0 %v2896
  %4226 = vmatpush1.bf16.msra.mxu0 %v2895
  %4227 = vmatprep.subr.bf16.mxu0 %v2900
  %4228 = vmatpush1.bf16.msra.mxu0 %v2899
  %4229 = vmatprep.mubr.bf16.mxu0 %v60
  %4230 = vmatmul.mubr.bf16.gmra.mrb[0].mxu0 %v59
  %v4231 = vpop.f32.mrb[0].mxu0
  %v4232 = vadd.f32 %v4191, %v4231
  %v4233 = vpop.f32.mrb[0].mxu0
  %v4234 = vadd.f32 %v4193, %v4233
  %v4235 = vpop.f32.mrb[0].mxu0
  %v4236 = vpop.f32.mrb[0].mxu0
  %4237 = vdwg.mxu0
  %4238 = vmatprep.subr.bf16.mxu0 %v2904
  %4239 = vmatpush1.bf16.msra.mxu0 %v2903
  %4240 = vmatprep.subr.bf16.mxu0 %v2908
  %4241 = vmatpush1.bf16.msra.mxu0 %v2907
  %4242 = vmatprep.subr.bf16.mxu0 %v2912
  %4243 = vmatpush1.bf16.msra.mxu0 %v2911
  %4244 = vmatprep.subr.bf16.mxu0 %v2916
  %4245 = vmatpush1.bf16.msra.mxu0 %v2915
  %4246 = vmatprep.subr.bf16.mxu0 %v2920
  %4247 = vmatpush1.bf16.msra.mxu0 %v2919
  %4248 = vmatprep.subr.bf16.mxu0 %v2924
  %4249 = vmatpush1.bf16.msra.mxu0 %v2923
  %4250 = vmatprep.subr.bf16.mxu0 %v2928
  %4251 = vmatpush1.bf16.msra.mxu0 %v2927
  %4252 = vmatprep.subr.bf16.mxu0 %v2932
  %4253 = vmatpush1.bf16.msra.mxu0 %v2931
  %4254 = vmatprep.subr.bf16.mxu0 %v2936
  %4255 = vmatpush1.bf16.msra.mxu0 %v2935
  %4256 = vmatprep.subr.bf16.mxu0 %v2940
  %4257 = vmatpush1.bf16.msra.mxu0 %v2939
  %4258 = vmatprep.subr.bf16.mxu0 %v2944
  %4259 = vmatpush1.bf16.msra.mxu0 %v2943
  %4260 = vmatprep.subr.bf16.mxu0 %v2948
  %4261 = vmatpush1.bf16.msra.mxu0 %v2947
  %4262 = vmatprep.subr.bf16.mxu0 %v2952
  %4263 = vmatpush1.bf16.msra.mxu0 %v2951
  %4264 = vmatprep.subr.bf16.mxu0 %v2956
  %4265 = vmatpush1.bf16.msra.mxu0 %v2955
  %4266 = vmatprep.subr.bf16.mxu0 %v2960
  %4267 = vmatpush1.bf16.msra.mxu0 %v2959
  %4268 = vmatprep.subr.bf16.mxu0 %v2964
  %4269 = vmatpush1.bf16.msra.mxu0 %v2963
  %4270 = vmatprep.mubr.bf16.mxu0 %v62
  %4271 = vmatmul.mubr.bf16.gmra.mrb[0].mxu0 %v61
  %v4272 = vpop.f32.mrb[0].mxu0
  %v4273 = vadd.f32 %v4232, %v4272
  %v4274 = vpop.f32.mrb[0].mxu0
  %v4275 = vadd.f32 %v4234, %v4274
  %v4276 = vpop.f32.mrb[0].mxu0
  %v4277 = vpop.f32.mrb[0].mxu0
  %4278 = vdwg.mxu0
  %v4279 = vmax.f32 %v3904, 0.0
  %v4280 = vmax.f32 %v3906, 0.0
  %v4281 = vmax.f32 %v4273, 0.0
  %v4282 = vmax.f32 %v4275, 0.0
  %v4283 = vpack.c.bf16 %v4279, %v4279
  %v4284 = vpack.c.bf16 %v4280, %v4280
  %v4285 = vpack.c.bf16 %v4281, %v4281
  %v4286 = vpack.c.bf16 %v4282, %v4282
  %v4287 = vld [vmem:[%s3] sm:$0xff]
  %v4288 = vld [vmem:[%s3 + $0x8] sm:$0xff]
  %v4289 = vld [vmem:[%s3 + $0x10] sm:$0xff]
  %v4290 = vld [vmem:[%s3 + $0x18] sm:$0xff]
  %v4291 = vld [vmem:[%s3 + $0x20] sm:$0xff]
  %v4292 = vld [vmem:[%s3 + $0x28] sm:$0xff]
  %v4293 = vld [vmem:[%s3 + $0x30] sm:$0xff]
  %v4294 = vld [vmem:[%s3 + $0x38] sm:$0xff]
  %v4295 = vld [vmem:[%s3 + $0x40] sm:$0xff]
  %v4296 = vld [vmem:[%s3 + $0x48] sm:$0xff]
  %v4297 = vld [vmem:[%s3 + $0x50] sm:$0xff]
  %v4298 = vld [vmem:[%s3 + $0x58] sm:$0xff]
  %v4299 = vld [vmem:[%s3 + $0x60] sm:$0xff]
  %v4300 = vld [vmem:[%s3 + $0x68] sm:$0xff]
  %v4301 = vld [vmem:[%s3 + $0x70] sm:$0xff]
  %v4302 = vld [vmem:[%s3 + $0x78] sm:$0xff]
  %v4303 = vld [vmem:[%s3 + $0x80] sm:$0xff]
  %v4304 = vld [vmem:[%s3 + $0x88] sm:$0xff]
  %v4305 = vld [vmem:[%s3 + $0x90] sm:$0xff]
  %v4306 = vld [vmem:[%s3 + $0x98] sm:$0xff]
  %v4307 = vld [vmem:[%s3 + $0xa0] sm:$0xff]
  %v4308 = vld [vmem:[%s3 + $0xa8] sm:$0xff]
  %v4309 = vld [vmem:[%s3 + $0xb0] sm:$0xff]
  %v4310 = vld [vmem:[%s3 + $0xb8] sm:$0xff]
  %v4311 = vld [vmem:[%s3 + $0xc0] sm:$0xff]
  %v4312 = vld [vmem:[%s3 + $0xc8] sm:$0xff]
  %v4313 = vld [vmem:[%s3 + $0xd0] sm:$0xff]
  %v4314 = vld [vmem:[%s3 + $0xd8] sm:$0xff]
  %v4315 = vld [vmem:[%s3 + $0xe0] sm:$0xff]
  %v4316 = vld [vmem:[%s3 + $0xe8] sm:$0xff]
  %v4317 = vld [vmem:[%s3 + $0xf0] sm:$0xff]
  %v4318 = vld [vmem:[%s3 + $0xf8] sm:$0xff]
  %v4319 = vld [vmem:[%s3 + $0x100] sm:$0xff]
  %v4320 = vld [vmem:[%s3 + $0x108] sm:$0xff]
  %v4321 = vld [vmem:[%s3 + $0x110] sm:$0xff]
  %v4322 = vld [vmem:[%s3 + $0x118] sm:$0xff]
  %v4323 = vld [vmem:[%s3 + $0x120] sm:$0xff]
  %v4324 = vld [vmem:[%s3 + $0x128] sm:$0xff]
  %v4325 = vld [vmem:[%s3 + $0x130] sm:$0xff]
  %v4326 = vld [vmem:[%s3 + $0x138] sm:$0xff]
  %v4327 = vld [vmem:[%s3 + $0x140] sm:$0xff]
  %v4328 = vld [vmem:[%s3 + $0x148] sm:$0xff]
  %v4329 = vld [vmem:[%s3 + $0x150] sm:$0xff]
  %v4330 = vld [vmem:[%s3 + $0x158] sm:$0xff]
  %v4331 = vld [vmem:[%s3 + $0x160] sm:$0xff]
  %v4332 = vld [vmem:[%s3 + $0x168] sm:$0xff]
  %v4333 = vld [vmem:[%s3 + $0x170] sm:$0xff]
  %v4334 = vld [vmem:[%s3 + $0x178] sm:$0xff]
  %v4335 = vld [vmem:[%s3 + $0x180] sm:$0xff]
  %v4336 = vld [vmem:[%s3 + $0x188] sm:$0xff]
  %v4337 = vld [vmem:[%s3 + $0x190] sm:$0xff]
  %v4338 = vld [vmem:[%s3 + $0x198] sm:$0xff]
  %v4339 = vld [vmem:[%s3 + $0x1a0] sm:$0xff]
  %v4340 = vld [vmem:[%s3 + $0x1a8] sm:$0xff]
  %v4341 = vld [vmem:[%s3 + $0x1b0] sm:$0xff]
  %v4342 = vld [vmem:[%s3 + $0x1b8] sm:$0xff]
  %v4343 = vld [vmem:[%s3 + $0x1c0] sm:$0xff]
  %v4344 = vld [vmem:[%s3 + $0x1c8] sm:$0xff]
  %v4345 = vld [vmem:[%s3 + $0x1d0] sm:$0xff]
  %v4346 = vld [vmem:[%s3 + $0x1d8] sm:$0xff]
  %v4347 = vld [vmem:[%s3 + $0x1e0] sm:$0xff]
  %v4348 = vld [vmem:[%s3 + $0x1e8] sm:$0xff]
  %v4349 = vld [vmem:[%s3 + $0x1f0] sm:$0xff]
  %v4350 = vld [vmem:[%s3 + $0x1f8] sm:$0xff]
  %v4351 = vld [vmem:[%s4] sm:$0x3]
  %v4353 = vlaneseq
  %v4354 = vshrl.u32 %v4353, 7
  %v4355 = vsub.s32 0, %v4354
  %v4356 = vrot.slane %v4351, %v4355
  %v4357 = vlaneseq
  %v4358 = vshrl.u32 %v4357, 7
  %v4359 = vsub.s32 1, %v4358
  %v4360 = vrot.slane %v4351, %v4359
  %v4427 = vunpack.c.l.b16 %v4287
  %v4428 = vunpack.c.h.b16 %v4287
  %v4429 = vunpack.c.l.b16 %v4288
  %v4430 = vunpack.c.h.b16 %v4288
  %v4431 = vunpack.c.l.b16 %v4289
  %v4432 = vunpack.c.h.b16 %v4289
  %v4433 = vunpack.c.l.b16 %v4290
  %v4434 = vunpack.c.h.b16 %v4290
  %v4435 = vunpack.c.l.b16 %v4291
  %v4436 = vunpack.c.h.b16 %v4291
  %v4437 = vunpack.c.l.b16 %v4292
  %v4438 = vunpack.c.h.b16 %v4292
  %v4439 = vunpack.c.l.b16 %v4293
  %v4440 = vunpack.c.h.b16 %v4293
  %v4441 = vunpack.c.l.b16 %v4294
  %v4442 = vunpack.c.h.b16 %v4294
  %v4443 = vunpack.c.l.b16 %v4295
  %v4444 = vunpack.c.h.b16 %v4295
  %v4445 = vunpack.c.l.b16 %v4296
  %v4446 = vunpack.c.h.b16 %v4296
  %v4447 = vunpack.c.l.b16 %v4297
  %v4448 = vunpack.c.h.b16 %v4297
  %v4449 = vunpack.c.l.b16 %v4298
  %v4450 = vunpack.c.h.b16 %v4298
  %v4451 = vunpack.c.l.b16 %v4299
  %v4452 = vunpack.c.h.b16 %v4299
  %v4453 = vunpack.c.l.b16 %v4300
  %v4454 = vunpack.c.h.b16 %v4300
  %v4455 = vunpack.c.l.b16 %v4301
  %v4456 = vunpack.c.h.b16 %v4301
  %v4457 = vunpack.c.l.b16 %v4302
  %v4458 = vunpack.c.h.b16 %v4302
  %v4459 = vunpack.c.l.b16 %v4303
  %v4460 = vunpack.c.h.b16 %v4303
  %v4461 = vunpack.c.l.b16 %v4304
  %v4462 = vunpack.c.h.b16 %v4304
  %v4463 = vunpack.c.l.b16 %v4305
  %v4464 = vunpack.c.h.b16 %v4305
  %v4465 = vunpack.c.l.b16 %v4306
  %v4466 = vunpack.c.h.b16 %v4306
  %v4467 = vunpack.c.l.b16 %v4307
  %v4468 = vunpack.c.h.b16 %v4307
  %v4469 = vunpack.c.l.b16 %v4308
  %v4470 = vunpack.c.h.b16 %v4308
  %v4471 = vunpack.c.l.b16 %v4309
  %v4472 = vunpack.c.h.b16 %v4309
  %v4473 = vunpack.c.l.b16 %v4310
  %v4474 = vunpack.c.h.b16 %v4310
  %v4475 = vunpack.c.l.b16 %v4311
  %v4476 = vunpack.c.h.b16 %v4311
  %v4477 = vunpack.c.l.b16 %v4312
  %v4478 = vunpack.c.h.b16 %v4312
  %v4479 = vunpack.c.l.b16 %v4313
  %v4480 = vunpack.c.h.b16 %v4313
  %v4481 = vunpack.c.l.b16 %v4314
  %v4482 = vunpack.c.h.b16 %v4314
  %v4483 = vunpack.c.l.b16 %v4315
  %v4484 = vunpack.c.h.b16 %v4315
  %v4485 = vunpack.c.l.b16 %v4316
  %v4486 = vunpack.c.h.b16 %v4316
  %v4487 = vunpack.c.l.b16 %v4317
  %v4488 = vunpack.c.h.b16 %v4317
  %v4489 = vunpack.c.l.b16 %v4318
  %v4490 = vunpack.c.h.b16 %v4318
  %v4491 = vunpack.c.l.b16 %v4319
  %v4492 = vunpack.c.h.b16 %v4319
  %v4493 = vunpack.c.l.b16 %v4320
  %v4494 = vunpack.c.h.b16 %v4320
  %v4495 = vunpack.c.l.b16 %v4321
  %v4496 = vunpack.c.h.b16 %v4321
  %v4497 = vunpack.c.l.b16 %v4322
  %v4498 = vunpack.c.h.b16 %v4322
  %v4499 = vunpack.c.l.b16 %v4323
  %v4500 = vunpack.c.h.b16 %v4323
  %v4501 = vunpack.c.l.b16 %v4324
  %v4502 = vunpack.c.h.b16 %v4324
  %v4503 = vunpack.c.l.b16 %v4325
  %v4504 = vunpack.c.h.b16 %v4325
  %v4505 = vunpack.c.l.b16 %v4326
  %v4506 = vunpack.c.h.b16 %v4326
  %v4507 = vunpack.c.l.b16 %v4327
  %v4508 = vunpack.c.h.b16 %v4327
  %v4509 = vunpack.c.l.b16 %v4328
  %v4510 = vunpack.c.h.b16 %v4328
  %v4511 = vunpack.c.l.b16 %v4329
  %v4512 = vunpack.c.h.b16 %v4329
  %v4513 = vunpack.c.l.b16 %v4330
  %v4514 = vunpack.c.h.b16 %v4330
  %v4515 = vunpack.c.l.b16 %v4331
  %v4516 = vunpack.c.h.b16 %v4331
  %v4517 = vunpack.c.l.b16 %v4332
  %v4518 = vunpack.c.h.b16 %v4332
  %v4519 = vunpack.c.l.b16 %v4333
  %v4520 = vunpack.c.h.b16 %v4333
  %v4521 = vunpack.c.l.b16 %v4334
  %v4522 = vunpack.c.h.b16 %v4334
  %v4523 = vunpack.c.l.b16 %v4335
  %v4524 = vunpack.c.h.b16 %v4335
  %v4525 = vunpack.c.l.b16 %v4336
  %v4526 = vunpack.c.h.b16 %v4336
  %v4527 = vunpack.c.l.b16 %v4337
  %v4528 = vunpack.c.h.b16 %v4337
  %v4529 = vunpack.c.l.b16 %v4338
  %v4530 = vunpack.c.h.b16 %v4338
  %v4531 = vunpack.c.l.b16 %v4339
  %v4532 = vunpack.c.h.b16 %v4339
  %v4533 = vunpack.c.l.b16 %v4340
  %v4534 = vunpack.c.h.b16 %v4340
  %v4535 = vunpack.c.l.b16 %v4341
  %v4536 = vunpack.c.h.b16 %v4341
  %v4537 = vunpack.c.l.b16 %v4342
  %v4538 = vunpack.c.h.b16 %v4342
  %v4539 = vunpack.c.l.b16 %v4343
  %v4540 = vunpack.c.h.b16 %v4343
  %v4541 = vunpack.c.l.b16 %v4344
  %v4542 = vunpack.c.h.b16 %v4344
  %v4543 = vunpack.c.l.b16 %v4345
  %v4544 = vunpack.c.h.b16 %v4345
  %v4545 = vunpack.c.l.b16 %v4346
  %v4546 = vunpack.c.h.b16 %v4346
  %v4547 = vunpack.c.l.b16 %v4347
  %v4548 = vunpack.c.h.b16 %v4347
  %v4549 = vunpack.c.l.b16 %v4348
  %v4550 = vunpack.c.h.b16 %v4348
  %v4551 = vunpack.c.l.b16 %v4349
  %v4552 = vunpack.c.h.b16 %v4349
  %v4553 = vunpack.c.l.b16 %v4350
  %v4554 = vunpack.c.h.b16 %v4350
  %v4555 = vpack.c.b16 %v4429, %v4427
  %v4556 = vpack.c.b16 %v4430, %v4428
  %v4557 = vpack.c.b16 %v4433, %v4431
  %v4558 = vpack.c.b16 %v4434, %v4432
  %v4559 = vpack.c.b16 %v4437, %v4435
  %v4560 = vpack.c.b16 %v4438, %v4436
  %v4561 = vpack.c.b16 %v4441, %v4439
  %v4562 = vpack.c.b16 %v4442, %v4440
  %v4563 = vpack.c.b16 %v4445, %v4443
  %v4564 = vpack.c.b16 %v4446, %v4444
  %v4565 = vpack.c.b16 %v4449, %v4447
  %v4566 = vpack.c.b16 %v4450, %v4448
  %v4567 = vpack.c.b16 %v4453, %v4451
  %v4568 = vpack.c.b16 %v4454, %v4452
  %v4569 = vpack.c.b16 %v4457, %v4455
  %v4570 = vpack.c.b16 %v4458, %v4456
  %v4571 = vpack.c.b16 %v4461, %v4459
  %v4572 = vpack.c.b16 %v4462, %v4460
  %v4573 = vpack.c.b16 %v4465, %v4463
  %v4574 = vpack.c.b16 %v4466, %v4464
  %v4575 = vpack.c.b16 %v4469, %v4467
  %v4576 = vpack.c.b16 %v4470, %v4468
  %v4577 = vpack.c.b16 %v4473, %v4471
  %v4578 = vpack.c.b16 %v4474, %v4472
  %v4579 = vpack.c.b16 %v4477, %v4475
  %v4580 = vpack.c.b16 %v4478, %v4476
  %v4581 = vpack.c.b16 %v4481, %v4479
  %v4582 = vpack.c.b16 %v4482, %v4480
  %v4583 = vpack.c.b16 %v4485, %v4483
  %v4584 = vpack.c.b16 %v4486, %v4484
  %v4585 = vpack.c.b16 %v4489, %v4487
  %v4586 = vpack.c.b16 %v4490, %v4488
  %v4587 = vpack.c.b16 %v4493, %v4491
  %v4588 = vpack.c.b16 %v4494, %v4492
  %v4589 = vpack.c.b16 %v4497, %v4495
  %v4590 = vpack.c.b16 %v4498, %v4496
  %v4591 = vpack.c.b16 %v4501, %v4499
  %v4592 = vpack.c.b16 %v4502, %v4500
  %v4593 = vpack.c.b16 %v4505, %v4503
  %v4594 = vpack.c.b16 %v4506, %v4504
  %v4595 = vpack.c.b16 %v4509, %v4507
  %v4596 = vpack.c.b16 %v4510, %v4508
  %v4597 = vpack.c.b16 %v4513, %v4511
  %v4598 = vpack.c.b16 %v4514, %v4512
  %v4599 = vpack.c.b16 %v4517, %v4515
  %v4600 = vpack.c.b16 %v4518, %v4516
  %v4601 = vpack.c.b16 %v4521, %v4519
  %v4602 = vpack.c.b16 %v4522, %v4520
  %v4603 = vpack.c.b16 %v4525, %v4523
  %v4604 = vpack.c.b16 %v4526, %v4524
  %v4605 = vpack.c.b16 %v4529, %v4527
  %v4606 = vpack.c.b16 %v4530, %v4528
  %v4607 = vpack.c.b16 %v4533, %v4531
  %v4608 = vpack.c.b16 %v4534, %v4532
  %v4609 = vpack.c.b16 %v4537, %v4535
  %v4610 = vpack.c.b16 %v4538, %v4536
  %v4611 = vpack.c.b16 %v4541, %v4539
  %v4612 = vpack.c.b16 %v4542, %v4540
  %v4613 = vpack.c.b16 %v4545, %v4543
  %v4614 = vpack.c.b16 %v4546, %v4544
  %v4615 = vpack.c.b16 %v4549, %v4547
  %v4616 = vpack.c.b16 %v4550, %v4548
  %v4617 = vpack.c.b16 %v4553, %v4551
  %v4618 = vpack.c.b16 %v4554, %v4552
  %4683 = vmatprep.subr.bf16.mxu0 %v4556
  %4684 = vmatpush1.bf16.msra.mxu0 %v4555
  %4685 = vmatprep.subr.bf16.mxu0 %v4558
  %4686 = vmatpush1.bf16.msra.mxu0 %v4557
  %4687 = vmatprep.subr.bf16.mxu0 %v4560
  %4688 = vmatpush1.bf16.msra.mxu0 %v4559
  %4689 = vmatprep.subr.bf16.mxu0 %v4562
  %4690 = vmatpush1.bf16.msra.mxu0 %v4561
  %4691 = vmatprep.subr.bf16.mxu0 %v4564
  %4692 = vmatpush1.bf16.msra.mxu0 %v4563
  %4693 = vmatprep.subr.bf16.mxu0 %v4566
  %4694 = vmatpush1.bf16.msra.mxu0 %v4565
  %4695 = vmatprep.subr.bf16.mxu0 %v4568
  %4696 = vmatpush1.bf16.msra.mxu0 %v4567
  %4697 = vmatprep.subr.bf16.mxu0 %v4570
  %4698 = vmatpush1.bf16.msra.mxu0 %v4569
  %4699 = vmatprep.subr.bf16.mxu0 %v4572
  %4700 = vmatpush1.bf16.msra.mxu0 %v4571
  %4701 = vmatprep.subr.bf16.mxu0 %v4574
  %4702 = vmatpush1.bf16.msra.mxu0 %v4573
  %4703 = vmatprep.subr.bf16.mxu0 %v4576
  %4704 = vmatpush1.bf16.msra.mxu0 %v4575
  %4705 = vmatprep.subr.bf16.mxu0 %v4578
  %4706 = vmatpush1.bf16.msra.mxu0 %v4577
  %4707 = vmatprep.subr.bf16.mxu0 %v4580
  %4708 = vmatpush1.bf16.msra.mxu0 %v4579
  %4709 = vmatprep.subr.bf16.mxu0 %v4582
  %4710 = vmatpush1.bf16.msra.mxu0 %v4581
  %4711 = vmatprep.subr.bf16.mxu0 %v4584
  %4712 = vmatpush1.bf16.msra.mxu0 %v4583
  %4713 = vmatprep.subr.bf16.mxu0 %v4586
  %4714 = vmatpush1.bf16.msra.mxu0 %v4585
  %4715 = vmatprep.mubr.bf16.mxu0 %v4284
  %4716 = vmatmul.mubr.bf16.gmra.mrb[0].mxu0 %v4283
  %v4717 = vpop.f32.mrb[0].mxu0
  %v4718 = vadd.f32 %v4356, %v4717
  %v4719 = vpop.f32.mrb[0].mxu0
  %v4720 = vadd.f32 %v4360, %v4719
  %v4721 = vpop.f32.mrb[0].mxu0
  %v4722 = vpop.f32.mrb[0].mxu0
  %4723 = vdwg.mxu0
  %4724 = vmatprep.subr.bf16.mxu0 %v4588
  %4725 = vmatpush1.bf16.msra.mxu0 %v4587
  %4726 = vmatprep.subr.bf16.mxu0 %v4590
  %4727 = vmatpush1.bf16.msra.mxu0 %v4589
  %4728 = vmatprep.subr.bf16.mxu0 %v4592
  %4729 = vmatpush1.bf16.msra.mxu0 %v4591
  %4730 = vmatprep.subr.bf16.mxu0 %v4594
  %4731 = vmatpush1.bf16.msra.mxu0 %v4593
  %4732 = vmatprep.subr.bf16.mxu0 %v4596
  %4733 = vmatpush1.bf16.msra.mxu0 %v4595
  %4734 = vmatprep.subr.bf16.mxu0 %v4598
  %4735 = vmatpush1.bf16.msra.mxu0 %v4597
  %4736 = vmatprep.subr.bf16.mxu0 %v4600
  %4737 = vmatpush1.bf16.msra.mxu0 %v4599
  %4738 = vmatprep.subr.bf16.mxu0 %v4602
  %4739 = vmatpush1.bf16.msra.mxu0 %v4601
  %4740 = vmatprep.subr.bf16.mxu0 %v4604
  %4741 = vmatpush1.bf16.msra.mxu0 %v4603
  %4742 = vmatprep.subr.bf16.mxu0 %v4606
  %4743 = vmatpush1.bf16.msra.mxu0 %v4605
  %4744 = vmatprep.subr.bf16.mxu0 %v4608
  %4745 = vmatpush1.bf16.msra.mxu0 %v4607
  %4746 = vmatprep.subr.bf16.mxu0 %v4610
  %4747 = vmatpush1.bf16.msra.mxu0 %v4609
  %4748 = vmatprep.subr.bf16.mxu0 %v4612
  %4749 = vmatpush1.bf16.msra.mxu0 %v4611
  %4750 = vmatprep.subr.bf16.mxu0 %v4614
  %4751 = vmatpush1.bf16.msra.mxu0 %v4613
  %4752 = vmatprep.subr.bf16.mxu0 %v4616
  %4753 = vmatpush1.bf16.msra.mxu0 %v4615
  %4754 = vmatprep.subr.bf16.mxu0 %v4618
  %4755 = vmatpush1.bf16.msra.mxu0 %v4617
  %4756 = vmatprep.mubr.bf16.mxu0 %v4286
  %4757 = vmatmul.mubr.bf16.gmra.mrb[0].mxu0 %v4285
  %v4758 = vpop.f32.mrb[0].mxu0
  %v4759 = vadd.f32 %v4718, %v4758
  %v4760 = vpop.f32.mrb[0].mxu0
  %v4761 = vadd.f32 %v4720, %v4760
  %v4762 = vpop.f32.mrb[0].mxu0
  %v4763 = vpop.f32.mrb[0].mxu0
  %4764 = vdwg.mxu0
  %v4765 = vmax.f32 %v4759, 0.0
  %v4766 = vmax.f32 %v4761, 0.0
  %v4767 = vpack.c.bf16 %v4765, %v4765
  %v4768 = vpack.c.bf16 %v4766, %v4766
  %v4769 = vld [vmem:[%s5] sm:$0xf]
  %v4770 = vld [vmem:[%s5 + $0x4] sm:$0xf]
  %v4771 = vld [vmem:[%s5 + $0x8] sm:$0xf]
  %v4772 = vld [vmem:[%s5 + $0xc] sm:$0xf]
  %v4773 = vld [vmem:[%s5 + $0x10] sm:$0xf]
  %v4774 = vld [vmem:[%s5 + $0x14] sm:$0xf]
  %v4775 = vld [vmem:[%s5 + $0x18] sm:$0xf]
  %v4776 = vld [vmem:[%s5 + $0x1c] sm:$0xf]
  %v4777 = vld [vmem:[%s5 + $0x20] sm:$0xf]
  %v4778 = vld [vmem:[%s5 + $0x24] sm:$0xf]
  %v4779 = vld [vmem:[%s5 + $0x28] sm:$0xf]
  %v4780 = vld [vmem:[%s5 + $0x2c] sm:$0xf]
  %v4781 = vld [vmem:[%s5 + $0x30] sm:$0xf]
  %v4782 = vld [vmem:[%s5 + $0x34] sm:$0xf]
  %v4783 = vld [vmem:[%s5 + $0x38] sm:$0xf]
  %v4784 = vld [vmem:[%s5 + $0x3c] sm:$0xf]
  %v4785 = vld [vmem:[%s5 + $0x40] sm:$0xf]
  %v4786 = vld [vmem:[%s5 + $0x44] sm:$0xf]
  %v4787 = vld [vmem:[%s5 + $0x48] sm:$0xf]
  %v4788 = vld [vmem:[%s5 + $0x4c] sm:$0xf]
  %v4789 = vld [vmem:[%s5 + $0x50] sm:$0xf]
  %v4790 = vld [vmem:[%s5 + $0x54] sm:$0xf]
  %v4791 = vld [vmem:[%s5 + $0x58] sm:$0xf]
  %v4792 = vld [vmem:[%s5 + $0x5c] sm:$0xf]
  %v4793 = vld [vmem:[%s5 + $0x60] sm:$0xf]
  %v4794 = vld [vmem:[%s5 + $0x64] sm:$0xf]
  %v4795 = vld [vmem:[%s5 + $0x68] sm:$0xf]
  %v4796 = vld [vmem:[%s5 + $0x6c] sm:$0xf]
  %v4797 = vld [vmem:[%s5 + $0x70] sm:$0xf]
  %v4798 = vld [vmem:[%s5 + $0x74] sm:$0xf]
  %v4799 = vld [vmem:[%s5 + $0x78] sm:$0xf]
  %v4800 = vld [vmem:[%s5 + $0x7c] sm:$0xf]
  %v4801 = vld [vmem:[%s6] sm:$0x1]
  %v4803 = vlaneseq
  %v4804 = vshrl.u32 %v4803, 7
  %v4805 = vsub.s32 0, %v4804
  %v4806 = vrot.slane %v4801, %v4805
  %v4840 = vunpack.c.l.b16 %v4769
  %v4841 = vunpack.c.l.b16 %v4770
  %v4842 = vunpack.c.l.b16 %v4771
  %v4843 = vunpack.c.l.b16 %v4772
  %v4844 = vunpack.c.l.b16 %v4773
  %v4845 = vunpack.c.l.b16 %v4774
  %v4846 = vunpack.c.l.b16 %v4775
  %v4847 = vunpack.c.l.b16 %v4776
  %v4848 = vunpack.c.l.b16 %v4777
  %v4849 = vunpack.c.l.b16 %v4778
  %v4850 = vunpack.c.l.b16 %v4779
  %v4851 = vunpack.c.l.b16 %v4780
  %v4852 = vunpack.c.l.b16 %v4781
  %v4853 = vunpack.c.l.b16 %v4782
  %v4854 = vunpack.c.l.b16 %v4783
  %v4855 = vunpack.c.l.b16 %v4784
  %v4856 = vunpack.c.l.b16 %v4785
  %v4857 = vunpack.c.l.b16 %v4786
  %v4858 = vunpack.c.l.b16 %v4787
  %v4859 = vunpack.c.l.b16 %v4788
  %v4860 = vunpack.c.l.b16 %v4789
  %v4861 = vunpack.c.l.b16 %v4790
  %v4862 = vunpack.c.l.b16 %v4791
  %v4863 = vunpack.c.l.b16 %v4792
  %v4864 = vunpack.c.l.b16 %v4793
  %v4865 = vunpack.c.l.b16 %v4794
  %v4866 = vunpack.c.l.b16 %v4795
  %v4867 = vunpack.c.l.b16 %v4796
  %v4868 = vunpack.c.l.b16 %v4797
  %v4869 = vunpack.c.l.b16 %v4798
  %v4870 = vunpack.c.l.b16 %v4799
  %v4871 = vunpack.c.l.b16 %v4800
  %v4872 = vpack.c.b16 %v4841, %v4840
  %v4873 = vpack.c.b16 %v4843, %v4842
  %v4874 = vpack.c.b16 %v4845, %v4844
  %v4875 = vpack.c.b16 %v4847, %v4846
  %v4876 = vpack.c.b16 %v4849, %v4848
  %v4877 = vpack.c.b16 %v4851, %v4850
  %v4878 = vpack.c.b16 %v4853, %v4852
  %v4879 = vpack.c.b16 %v4855, %v4854
  %v4880 = vpack.c.b16 %v4857, %v4856
  %v4881 = vpack.c.b16 %v4859, %v4858
  %v4882 = vpack.c.b16 %v4861, %v4860
  %v4883 = vpack.c.b16 %v4863, %v4862
  %v4884 = vpack.c.b16 %v4865, %v4864
  %v4885 = vpack.c.b16 %v4867, %v4866
  %v4886 = vpack.c.b16 %v4869, %v4868
  %v4887 = vpack.c.b16 %v4871, %v4870
  %4904 = vmatprep.subr.bf16.mxu0 0
  %4905 = vmatpush1.bf16.msra.mxu0 %v4872
  %4906 = vmatprep.subr.bf16.mxu0 0
  %4907 = vmatpush1.bf16.msra.mxu0 %v4873
  %4908 = vmatprep.subr.bf16.mxu0 0
  %4909 = vmatpush1.bf16.msra.mxu0 %v4874
  %4910 = vmatprep.subr.bf16.mxu0 0
  %4911 = vmatpush1.bf16.msra.mxu0 %v4875
  %4912 = vmatprep.subr.bf16.mxu0 0
  %4913 = vmatpush1.bf16.msra.mxu0 %v4876
  %4914 = vmatprep.subr.bf16.mxu0 0
  %4915 = vmatpush1.bf16.msra.mxu0 %v4877
  %4916 = vmatprep.subr.bf16.mxu0 0
  %4917 = vmatpush1.bf16.msra.mxu0 %v4878
  %4918 = vmatprep.subr.bf16.mxu0 0
  %4919 = vmatpush1.bf16.msra.mxu0 %v4879
  %4920 = vmatprep.subr.bf16.mxu0 0
  %4921 = vmatpush1.bf16.msra.mxu0 %v4880
  %4922 = vmatprep.subr.bf16.mxu0 0
  %4923 = vmatpush1.bf16.msra.mxu0 %v4881
  %4924 = vmatprep.subr.bf16.mxu0 0
  %4925 = vmatpush1.bf16.msra.mxu0 %v4882
  %4926 = vmatprep.subr.bf16.mxu0 0
  %4927 = vmatpush1.bf16.msra.mxu0 %v4883
  %4928 = vmatprep.subr.bf16.mxu0 0
  %4929 = vmatpush1.bf16.msra.mxu0 %v4884
  %4930 = vmatprep.subr.bf16.mxu0 0
  %4931 = vmatpush1.bf16.msra.mxu0 %v4885
  %4932 = vmatprep.subr.bf16.mxu0 0
  %4933 = vmatpush1.bf16.msra.mxu0 %v4886
  %4934 = vmatprep.subr.bf16.mxu0 0
  %4935 = vmatpush1.bf16.msra.mxu0 %v4887
  %4936 = vmatprep.mubr.bf16.mxu0 %v4768
  %4937 = vmatmul.mubr.bf16.gmra.mrb[0].mxu0 %v4767
  %v4938 = vpop.f32.mrb[0].mxu0
  %v4939 = vadd.f32 %v4806, %v4938
  %v4940 = vpop.f32.mrb[0].mxu0
  %v4941 = vpop.f32.mrb[0].mxu0
  %v4942 = vpop.f32.mrb[0].mxu0
  %4943 = vdwg.mxu0
  %4944 = vst [vmem:[%s7] sm:$0xff] %v4939
  // Predicated region
  $region30: #{cnn_policy_forward.7} parent=0 // pred_check
    _
  $region31: #{cnn_policy_forward.7} parent=0 // pred_check_branch
    %4946 = sbr.rel (0) target = $region33
  $region32: #{cnn_policy_forward.7} parent=0 // pred_region
    _
  $region33: #{cnn_policy_forward.7} parent=0 // pred_fallthru
    _
  // Predicated region
  $region34: #{cnn_policy_forward.7} parent=0 // pred_check
    _
  $region35: #{cnn_policy_forward.7} parent=0 // pred_check_branch
    %4948 = sbr.rel (0) target = $region37
  $region36: #{cnn_policy_forward.7} parent=0 // pred_region
    _
  $region37: #{cnn_policy_forward.7} parent=0 // pred_fallthru
    _

</llo_original>
